<compile_context>
chip_gen: v7x
topology: tpu7x:2x2x1
jax: 0.10.0
libtpu: 0.0.40
codegen_flags: <defaults>
</compile_context>

<pallas_src>
import numpy as np
import jax
import jax.numpy as jnp
from jax.experimental import pallas as pl
from jax.experimental.pallas import tpu as pltpu

# Fixed hyper-parameters of the PyTorch ConvAutoencoder module.
C0, C1, C2 = 1, 16, 4          # input / conv1 / conv2 channel counts
K = 5                          # conv kernel size
KK = K * K
PAD = 2                        # 'same' padding for the 5x5 convs
TK = 2                         # transposed-conv kernel size == stride


def _derive_dims(H1, W1):
    WP1 = W1 + 2 * PAD                  # padded row width, stage 1
    LP1 = (H1 + K) * WP1                # flat padded slab length (+ tap overrun)
    L1 = (H1 - 1) * WP1 - 1             # width of the 4-way-max slab, stage 1
    H2, W2 = H1 // 2, W1 // 2
    WP2 = W2 + 2 * PAD
    LP2 = (H2 + K) * WP2
    L2 = (H2 - 1) * WP2 - 1
    H3, W3 = H2 // 2, W2 // 2
    OUT_PAD = ((H1 * W1 + 127) // 128) * 128   # lane-dense output width
    return dict(WP1=WP1, LP1=LP1, L1=L1, H2=H2, W2=W2, WP2=WP2, LP2=LP2,
                L2=L2, H3=H3, W3=W3, OUT_PAD=OUT_PAD)


def _pick_batch_tile(B):
    # >= 2 grid steps keeps both v7x TensorCores busy; up to 16 samples/step
    # amortizes the per-grid-step overhead on larger batches.
    for bt in (16, 8, 4, 2):
        if B % bt == 0 and B // bt >= 2:
            return bt
    return 1


def _make_kernel(H1, W1, d, BT):
    WP1, L1 = d["WP1"], d["L1"]
    H2, W2, WP2, L2 = d["H2"], d["W2"], d["WP2"], d["L2"]
    H3, W3 = d["H3"], d["W3"]

    def kernel(x_ref, w1_ref, b1_ref, w2_ref, b2_ref, wt1_ref, bt1_ref,
               wt2_ref, bt2_ref, s1_ref, s2_ref, t1_ref, t2_ref, o_ref,
               patches2):
        f32, bf16 = jnp.float32, jnp.bfloat16

        for s in range(BT):                      # unrolled batch tile
            # ---- conv1 (5x5 'same'): value im2col + fused matmul+bias+ReLU ----
            xp = x_ref[s]                        # (1, LP1), already zero-padded
            taps = [xp[:, dy * WP1 + dx: dy * WP1 + dx + H1 * WP1]
                    for dy in range(K) for dx in range(K)]
            patches1 = jnp.concatenate(taps, axis=0).astype(bf16)  # (KK, H1*WP1)
            c1 = jnp.dot(w1_ref[...], patches1, preferred_element_type=f32)
            c1 = jnp.maximum(c1 + b1_ref[...], 0.0)                # (C1, H1*WP1)

            # ---- maxpool1: 4-way max + bf16 0/1 scatter (downsample + re-pad) --
            v1 = jnp.maximum(
                jnp.maximum(c1[:, 0:L1], c1[:, 1:1 + L1]),
                jnp.maximum(c1[:, WP1:WP1 + L1], c1[:, WP1 + 1:WP1 + 1 + L1]))
            xpad2 = jnp.dot(v1.astype(bf16), s1_ref[...],
                            preferred_element_type=f32)            # (C1, LP2)

            # ---- conv2 (5x5 'same'): bf16 im2col scratch + fused matmul --------
            for t in range(KK):
                dy, dx = t // K, t % K
                patches2[pl.ds(t * C1, C1), :] = xpad2[
                    :, dy * WP2 + dx: dy * WP2 + dx + H2 * WP2].astype(bf16)
            c2 = jnp.dot(w2_ref[...], patches2[...], preferred_element_type=f32)
            c2 = jnp.maximum(c2 + b2_ref[...], 0.0)                # (C2, H2*WP2)

            # ---- maxpool2 + bf16 scatter to dense (C2, H3*W3) -------------------
            v2 = jnp.maximum(
                jnp.maximum(c2[:, 0:L2], c2[:, 1:1 + L2]),
                jnp.maximum(c2[:, WP2:WP2 + L2], c2[:, WP2 + 1:WP2 + 1 + L2]))
            enc = jnp.dot(v2.astype(bf16), s2_ref[...],
                          preferred_element_type=f32)              # (C2, H3*W3)

            # ---- t_conv1 (2x2 /2) + ReLU: matmul + bf16 depth-to-space scatter --
            y1 = jnp.dot(wt1_ref[...], enc.astype(bf16),
                         preferred_element_type=f32)               # (4*C1, H3*W3)
            a_pre = None
            for t in range(TK * TK):
                blk = y1[t * C1:(t + 1) * C1, :].astype(bf16)      # (C1, H3*W3)
                contrib = jnp.dot(blk, t1_ref[pl.ds(t * (H3 * W3), H3 * W3), :],
                                  preferred_element_type=f32)      # (C1, H2*W2)
                a_pre = contrib if a_pre is None else a_pre + contrib
            a = jnp.maximum(a_pre + bt1_ref[...], 0.0)             # (C1, H2*W2)

            # ---- t_conv2 (2x2 /2) + sigmoid; T2 kept f32 (feeds the output) -----
            y2 = jnp.dot(wt2_ref[...], a.astype(bf16),
                         preferred_element_type=f32)               # (4, H2*W2)
            o_pre = None
            for t in range(TK * TK):
                contrib = jnp.dot(y2[t:t + 1, :],
                                  t2_ref[pl.ds(t * (H2 * W2), H2 * W2), :],
                                  preferred_element_type=f32)      # (1, OUT_PAD)
                o_pre = contrib if o_pre is None else o_pre + contrib
            o_ref[s] = jax.nn.sigmoid(o_pre + bt2_ref[...])        # lane-dense row

    return kernel


def _build_constants(H1, W1, d):
    """Constant 0/1 matrices: pool-downsample+re-pad (S) and depth-to-space (T)."""
    WP1, WP2, L1, L2, LP2 = d["WP1"], d["WP2"], d["L1"], d["L2"], d["LP2"]
    H2, W2, H3, W3, OUT_PAD = d["H2"], d["W2"], d["H3"], d["W3"], d["OUT_PAD"]

    s1 = np.zeros((L1, LP2), np.float32)
    for i in range(H2):
        for j in range(W2):
            s1[WP1 * 2 * i + 2 * j, (i + PAD) * WP2 + (j + PAD)] = 1.0

    s2 = np.zeros((L2, H3 * W3), np.float32)
    for i in range(H3):
        for j in range(W3):
            s2[WP2 * 2 * i + 2 * j, W3 * i + j] = 1.0

    t1 = np.zeros((TK * TK * H3 * W3, H2 * W2), np.float32)
    t2 = np.zeros((TK * TK * H2 * W2, OUT_PAD), np.float32)
    for t in range(TK * TK):
        dy, dx = t // TK, t % TK
        for i in range(H3):
            for j in range(W3):
                t1[t * (H3 * W3) + W3 * i + j,
                   W2 * (2 * i + dy) + (2 * j + dx)] = 1.0
        for u in range(H2):
            for v in range(W2):
                t2[t * (H2 * W2) + W2 * u + v,
                   W1 * (2 * u + dy) + (2 * v + dx)] = 1.0

    # 0/1 entries are exact in bf16 -> single-pass MXU scatter matmuls.
    # T2 stays f32 because it feeds the sigmoid output directly.
    return (jnp.asarray(s1, jnp.bfloat16), jnp.asarray(s2, jnp.bfloat16),
            jnp.asarray(t1, jnp.bfloat16), jnp.asarray(t2, jnp.float32))


def conv_autoencoder_forward(x_nchw, params):
    """Matches ConvAutoencoder.forward; input/output are NCHW like PyTorch."""
    B, C, H1, W1 = x_nchw.shape
    assert C == C0 and H1 % 4 == 0 and W1 % 4 == 0
    d = _derive_dims(H1, W1)
    BT = _pick_batch_tile(B)
    kernel = _make_kernel(H1, W1, d, BT)
    s1, s2, t1, t2 = _build_constants(H1, W1, d)

    f32, bf16 = jnp.float32, jnp.bfloat16
    LP1, OUT_PAD = d["LP1"], d["OUT_PAD"]

    # Zero-pad + flatten in the wrapper (layout plumbing XLA does for free);
    # all blocks DMA'd into the kernel are lane-dense.
    x2 = x_nchw.reshape(B, H1, W1).astype(f32)
    xpad = jnp.pad(x2, ((0, 0), (PAD, K - PAD), (PAD, PAD)))   # (B, H1+K, WP1)
    xflat = xpad.reshape(B, 1, LP1)

    # Weight matrices in (rows = output block, cols = contraction) layout; bf16
    # MXU operands, f32 biases for the epilogues.
    w1m = params["conv1_w"].reshape(C1, KK).astype(bf16)
    b1 = params["conv1_b"].reshape(C1, 1).astype(f32)
    w2m = jnp.transpose(params["conv2_w"], (0, 2, 3, 1)).reshape(
        C2, KK * C1).astype(bf16)
    b2 = params["conv2_b"].reshape(C2, 1).astype(f32)
    wt1m = jnp.transpose(params["tconv1_w"], (2, 3, 1, 0)).reshape(
        TK * TK * C1, C2).astype(bf16)
    bt1 = params["tconv1_b"].reshape(C1, 1).astype(f32)
    wt2m = jnp.transpose(params["tconv2_w"], (2, 3, 1, 0)).reshape(
        TK * TK * C0, C1).astype(bf16)
    bt2 = params["tconv2_b"].reshape(C0, 1).astype(f32)

    def const2d(a):
        return pl.BlockSpec(a.shape, lambda g: (0, 0))

    # Advisory cost estimate (per whole call).
    per_sample_flops = 2 * (
        C1 * KK * H1 * d["WP1"]
        + C1 * d["L1"] * d["LP2"]
        + C2 * KK * C1 * d["H2"] * d["WP2"]
        + C2 * d["L2"] * d["H3"] * d["W3"]
        + (TK * TK * C1) * C2 * d["H3"] * d["W3"]
        + TK * TK * C1 * d["H3"] * d["W3"] * d["H2"] * d["W2"]
        + (TK * TK * C0) * C1 * d["H2"] * d["W2"]
        + TK * TK * d["H2"] * d["W2"] * OUT_PAD)
    const_bytes = sum(int(a.size) * a.dtype.itemsize
                      for a in (s1, s2, t1, t2, w1m, w2m, wt1m, wt2m))
    cost = pl.CostEstimate(
        flops=int(B * per_sample_flops),
        transcendentals=int(B * OUT_PAD),
        bytes_accessed=int(4 * B * (LP1 + OUT_PAD) + const_bytes))

    out = pl.pallas_call(
        kernel,
        out_shape=jax.ShapeDtypeStruct((B, 1, OUT_PAD), f32),
        grid=(B // BT,),
        in_specs=[
            pl.BlockSpec((BT, 1, LP1), lambda g: (g, 0, 0)),        # padded x
            const2d(w1m), const2d(b1),                              # conv1
            const2d(w2m), const2d(b2),                              # conv2
            const2d(wt1m), const2d(bt1),                            # t_conv1
            const2d(wt2m), const2d(bt2),                            # t_conv2
            const2d(s1), const2d(s2), const2d(t1), const2d(t2),     # scatters
        ],
        out_specs=pl.BlockSpec((BT, 1, OUT_PAD), lambda g: (g, 0, 0)),
        scratch_shapes=[
            pltpu.VMEM((KK * C1, d["H2"] * d["WP2"]), bf16),        # conv2 im2col
        ],
        compiler_params=pltpu.CompilerParams(
            dimension_semantics=("parallel",),
            vmem_limit_bytes=32 * 1024 * 1024),
        cost_estimate=cost,
    )(xflat, w1m, b1, w2m, b2, wt1m, bt1, wt2m, bt2, s1, s2, t1, t2)

    return out[:, :, :H1 * W1].reshape(B, 1, H1, W1)


# ------------------------- pure-JAX reference (check) -------------------------

def _reference_forward(x_nchw, params):
    hp = jax.lax.Precision.HIGHEST
    x = x_nchw.astype(jnp.float32)

    def conv_same(h, w, b):
        y = jax.lax.conv_general_dilated(
            h, w, window_strides=(1, 1), padding=((PAD, PAD), (PAD, PAD)),
            dimension_numbers=("NCHW", "OIHW", "NCHW"), precision=hp)
        return y + b[None, :, None, None]

    def pool2(h):
        B, C, H, W = h.shape
        return jnp.max(h.reshape(B, C, H // 2, 2, W // 2, 2), axis=(3, 5))

    def tconv2x2(h, w, b):
        B, C, H, W = h.shape
        y = jnp.einsum("bchw,cokl->bohkwl", h, w, precision=hp)
        y = y.reshape(B, w.shape[1], 2 * H, 2 * W)
        return y + b[None, :, None, None]

    h = pool2(jax.nn.relu(conv_same(x, params["conv1_w"], params["conv1_b"])))
    h = pool2(jax.nn.relu(conv_same(h, params["conv2_w"], params["conv2_b"])))
    h = jax.nn.relu(tconv2x2(h, params["tconv1_w"], params["tconv1_b"]))
    return jax.nn.sigmoid(tconv2x2(h, params["tconv2_w"], params["tconv2_b"]))


# ------------------------------------ main ------------------------------------

if __name__ == "__main__":
    key = jax.random.PRNGKey(0)
    ks = jax.random.split(key, 9)

    params = {
        "conv1_w": 0.1 * jax.random.normal(ks[0], (16, 1, 5, 5), jnp.float32),
        "conv1_b": 0.1 * jax.random.normal(ks[1], (16,), jnp.float32),
        "conv2_w": 0.1 * jax.random.normal(ks[2], (4, 16, 5, 5), jnp.float32),
        "conv2_b": 0.1 * jax.random.normal(ks[3], (4,), jnp.float32),
        "tconv1_w": 0.1 * jax.random.normal(ks[4], (4, 16, 2, 2), jnp.float32),
        "tconv1_b": 0.1 * jax.random.normal(ks[5], (16,), jnp.float32),
        "tconv2_w": 0.1 * jax.random.normal(ks[6], (16, 1, 2, 2), jnp.float32),
        "tconv2_b": 0.1 * jax.random.normal(ks[7], (1,), jnp.float32),
    }
    x = jax.random.normal(ks[8], (2, 1, 16, 16), jnp.float32)

    fwd = jax.jit(conv_autoencoder_forward)
    out = jax.block_until_ready(fwd(x, params))
    out_np = np.asarray(out)

    assert out_np.shape == (2, 1, 16, 16), out_np.shape
    assert np.all(np.isfinite(out_np))
    assert np.all(out_np > 0.0) and np.all(out_np < 1.0)  # sigmoid range

    # Tolerance check vs a pure-JAX reference (bf16 MXU operands -> ~1e-3 err).
    ref_np = np.asarray(jax.jit(_reference_forward)(x, params))
    max_err = float(np.max(np.abs(out_np - ref_np)))
    assert max_err < 3e-2, f"max abs err vs reference: {max_err}"

    print("KERNEL_OK")
</pallas_src>

<mosaic_0001>
module attributes {stable_mosaic.version = 11 : i64} {
  func.func @kernel(%arg0: i32, %arg1: memref<1x1x420xf32, #tpu.memory_space<vmem>>, %arg2: memref<16x25xbf16, #tpu.memory_space<vmem>>, %arg3: memref<16x1xf32, #tpu.memory_space<vmem>>, %arg4: memref<4x400xbf16, #tpu.memory_space<vmem>>, %arg5: memref<4x1xf32, #tpu.memory_space<vmem>>, %arg6: memref<64x4xbf16, #tpu.memory_space<vmem>>, %arg7: memref<16x1xf32, #tpu.memory_space<vmem>>, %arg8: memref<4x16xbf16, #tpu.memory_space<vmem>>, %arg9: memref<1x1xf32, #tpu.memory_space<vmem>>, %arg10: memref<299x156xbf16, #tpu.memory_space<vmem>>, %arg11: memref<83x16xbf16, #tpu.memory_space<vmem>>, %arg12: memref<64x64xbf16, #tpu.memory_space<vmem>>, %arg13: memref<256x256xf32, #tpu.memory_space<vmem>>, %arg14: memref<1x1x256xf32, #tpu.memory_space<vmem>>, %arg15: memref<400x96xbf16, #tpu.memory_space<vmem>>) attributes {dimension_semantics = [#tpu.dimension_semantics<parallel>], iteration_bounds = array<i64: 2>, scalar_prefetch = 0 : i64, scratch_operands = 1 : i64, tpu.core_type = #tpu.core_type<tc>, window_params = [{transform_indices = @transform_0, window_bounds = array<i64: 1, 1, 420>}, {pipeline_mode = #tpu.pipeline_mode<synchronous>, transform_indices = @transform_1, window_bounds = array<i64: 16, 25>}, {pipeline_mode = #tpu.pipeline_mode<synchronous>, transform_indices = @transform_2, window_bounds = array<i64: 16, 1>}, {pipeline_mode = #tpu.pipeline_mode<synchronous>, transform_indices = @transform_3, window_bounds = array<i64: 4, 400>}, {pipeline_mode = #tpu.pipeline_mode<synchronous>, transform_indices = @transform_4, window_bounds = array<i64: 4, 1>}, {pipeline_mode = #tpu.pipeline_mode<synchronous>, transform_indices = @transform_5, window_bounds = array<i64: 64, 4>}, {pipeline_mode = #tpu.pipeline_mode<synchronous>, transform_indices = @transform_6, window_bounds = array<i64: 16, 1>}, {pipeline_mode = #tpu.pipeline_mode<synchronous>, transform_indices = @transform_7, window_bounds = array<i64: 4, 16>}, {pipeline_mode = #tpu.pipeline_mode<synchronous>, transform_indices = @transform_8, window_bounds = array<i64: 1, 1>}, {pipeline_mode = #tpu.pipeline_mode<synchronous>, transform_indices = @transform_9, window_bounds = array<i64: 299, 156>}, {pipeline_mode = #tpu.pipeline_mode<synchronous>, transform_indices = @transform_10, window_bounds = array<i64: 83, 16>}, {pipeline_mode = #tpu.pipeline_mode<synchronous>, transform_indices = @transform_11, window_bounds = array<i64: 64, 64>}, {pipeline_mode = #tpu.pipeline_mode<synchronous>, transform_indices = @transform_12, window_bounds = array<i64: 256, 256>}, {transform_indices = @transform_13, window_bounds = array<i64: 1, 1, 256>}]} {
    %c0 = arith.constant 0 : index
    %c0_0 = arith.constant 0 : index
    %c0_1 = arith.constant 0 : index
    %0 = vector.load %arg1[%c0, %c0_0, %c0_1] : memref<1x1x420xf32, #tpu.memory_space<vmem>>, vector<1x1x420xf32>
    %1 = vector.shape_cast %0 : vector<1x1x420xf32> to vector<1x420xf32>
    %2 = vector.extract_strided_slice %1 {offsets = [0, 0], sizes = [1, 320], strides = [1, 1]} : vector<1x420xf32> to vector<1x320xf32>
    %3 = vector.extract_strided_slice %1 {offsets = [0, 1], sizes = [1, 320], strides = [1, 1]} : vector<1x420xf32> to vector<1x320xf32>
    %4 = vector.extract_strided_slice %1 {offsets = [0, 2], sizes = [1, 320], strides = [1, 1]} : vector<1x420xf32> to vector<1x320xf32>
    %5 = vector.extract_strided_slice %1 {offsets = [0, 3], sizes = [1, 320], strides = [1, 1]} : vector<1x420xf32> to vector<1x320xf32>
    %6 = vector.extract_strided_slice %1 {offsets = [0, 4], sizes = [1, 320], strides = [1, 1]} : vector<1x420xf32> to vector<1x320xf32>
    %7 = vector.extract_strided_slice %1 {offsets = [0, 20], sizes = [1, 320], strides = [1, 1]} : vector<1x420xf32> to vector<1x320xf32>
    %8 = vector.extract_strided_slice %1 {offsets = [0, 21], sizes = [1, 320], strides = [1, 1]} : vector<1x420xf32> to vector<1x320xf32>
    %9 = vector.extract_strided_slice %1 {offsets = [0, 22], sizes = [1, 320], strides = [1, 1]} : vector<1x420xf32> to vector<1x320xf32>
    %10 = vector.extract_strided_slice %1 {offsets = [0, 23], sizes = [1, 320], strides = [1, 1]} : vector<1x420xf32> to vector<1x320xf32>
    %11 = vector.extract_strided_slice %1 {offsets = [0, 24], sizes = [1, 320], strides = [1, 1]} : vector<1x420xf32> to vector<1x320xf32>
    %12 = vector.extract_strided_slice %1 {offsets = [0, 40], sizes = [1, 320], strides = [1, 1]} : vector<1x420xf32> to vector<1x320xf32>
    %13 = vector.extract_strided_slice %1 {offsets = [0, 41], sizes = [1, 320], strides = [1, 1]} : vector<1x420xf32> to vector<1x320xf32>
    %14 = vector.extract_strided_slice %1 {offsets = [0, 42], sizes = [1, 320], strides = [1, 1]} : vector<1x420xf32> to vector<1x320xf32>
    %15 = vector.extract_strided_slice %1 {offsets = [0, 43], sizes = [1, 320], strides = [1, 1]} : vector<1x420xf32> to vector<1x320xf32>
    %16 = vector.extract_strided_slice %1 {offsets = [0, 44], sizes = [1, 320], strides = [1, 1]} : vector<1x420xf32> to vector<1x320xf32>
    %17 = vector.extract_strided_slice %1 {offsets = [0, 60], sizes = [1, 320], strides = [1, 1]} : vector<1x420xf32> to vector<1x320xf32>
    %18 = vector.extract_strided_slice %1 {offsets = [0, 61], sizes = [1, 320], strides = [1, 1]} : vector<1x420xf32> to vector<1x320xf32>
    %19 = vector.extract_strided_slice %1 {offsets = [0, 62], sizes = [1, 320], strides = [1, 1]} : vector<1x420xf32> to vector<1x320xf32>
    %20 = vector.extract_strided_slice %1 {offsets = [0, 63], sizes = [1, 320], strides = [1, 1]} : vector<1x420xf32> to vector<1x320xf32>
    %21 = vector.extract_strided_slice %1 {offsets = [0, 64], sizes = [1, 320], strides = [1, 1]} : vector<1x420xf32> to vector<1x320xf32>
    %22 = vector.extract_strided_slice %1 {offsets = [0, 80], sizes = [1, 320], strides = [1, 1]} : vector<1x420xf32> to vector<1x320xf32>
    %23 = vector.extract_strided_slice %1 {offsets = [0, 81], sizes = [1, 320], strides = [1, 1]} : vector<1x420xf32> to vector<1x320xf32>
    %24 = vector.extract_strided_slice %1 {offsets = [0, 82], sizes = [1, 320], strides = [1, 1]} : vector<1x420xf32> to vector<1x320xf32>
    %25 = vector.extract_strided_slice %1 {offsets = [0, 83], sizes = [1, 320], strides = [1, 1]} : vector<1x420xf32> to vector<1x320xf32>
    %26 = vector.extract_strided_slice %1 {offsets = [0, 84], sizes = [1, 320], strides = [1, 1]} : vector<1x420xf32> to vector<1x320xf32>
    %27 = tpu.concatenate %2, %3, %4, %5, %6, %7, %8, %9, %10, %11, %12, %13, %14, %15, %16, %17 in 0 : vector<1x320xf32>, vector<1x320xf32>, vector<1x320xf32>, vector<1x320xf32>, vector<1x320xf32>, vector<1x320xf32>, vector<1x320xf32>, vector<1x320xf32>, vector<1x320xf32>, vector<1x320xf32>, vector<1x320xf32>, vector<1x320xf32>, vector<1x320xf32>, vector<1x320xf32>, vector<1x320xf32>, vector<1x320xf32> -> vector<16x320xf32>
    %28 = tpu.concatenate %18, %19, %20, %21, %22, %23, %24, %25, %26 in 0 : vector<1x320xf32>, vector<1x320xf32>, vector<1x320xf32>, vector<1x320xf32>, vector<1x320xf32>, vector<1x320xf32>, vector<1x320xf32>, vector<1x320xf32>, vector<1x320xf32> -> vector<9x320xf32>
    %29 = tpu.concatenate %27, %28 in 0 : vector<16x320xf32>, vector<9x320xf32> -> vector<25x320xf32>
    %30 = arith.truncf %29 : vector<25x320xf32> to vector<25x320xbf16>
    %c0_2 = arith.constant 0 : index
    %c0_3 = arith.constant 0 : index
    %31 = vector.load %arg2[%c0_2, %c0_3] : memref<16x25xbf16, #tpu.memory_space<vmem>>, vector<16x25xbf16>
    %cst = arith.constant dense<0.000000e+00> : vector<16x320xf32>
    %32 = tpu.matmul %31, %30, %cst {dimension_numbers = #tpu.dot_dimension_numbers<[1], [0], [0], [1], [0, 0, 1, 1], [], []>} : vector<16x25xbf16>, vector<25x320xbf16>, vector<16x320xf32> -> vector<16x320xf32>
    %c0_4 = arith.constant 0 : index
    %c0_5 = arith.constant 0 : index
    %33 = vector.load %arg3[%c0_4, %c0_5] : memref<16x1xf32, #tpu.memory_space<vmem>>, vector<16x1xf32>
    %34 = vector.broadcast %33 : vector<16x1xf32> to vector<16x320xf32>
    %35 = arith.addf %32, %34 : vector<16x320xf32>
    %cst_6 = arith.constant 0.000000e+00 : f32
    %36 = vector.broadcast %cst_6 : f32 to vector<16x320xf32>
    %37 = arith.maximumf %35, %36 : vector<16x320xf32>
    %38 = vector.extract_strided_slice %37 {offsets = [0, 0], sizes = [16, 299], strides = [1, 1]} : vector<16x320xf32> to vector<16x299xf32>
    %39 = vector.extract_strided_slice %37 {offsets = [0, 1], sizes = [16, 299], strides = [1, 1]} : vector<16x320xf32> to vector<16x299xf32>
    %40 = arith.maximumf %38, %39 : vector<16x299xf32>
    %41 = vector.extract_strided_slice %37 {offsets = [0, 20], sizes = [16, 299], strides = [1, 1]} : vector<16x320xf32> to vector<16x299xf32>
    %42 = vector.extract_strided_slice %37 {offsets = [0, 21], sizes = [16, 299], strides = [1, 1]} : vector<16x320xf32> to vector<16x299xf32>
    %43 = arith.maximumf %41, %42 : vector<16x299xf32>
    %44 = arith.maximumf %40, %43 : vector<16x299xf32>
    %45 = arith.truncf %44 : vector<16x299xf32> to vector<16x299xbf16>
    %c0_7 = arith.constant 0 : index
    %c0_8 = arith.constant 0 : index
    %46 = vector.load %arg10[%c0_7, %c0_8] : memref<299x156xbf16, #tpu.memory_space<vmem>>, vector<299x156xbf16>
    %cst_9 = arith.constant dense<0.000000e+00> : vector<16x156xf32>
    %47 = tpu.matmul %45, %46, %cst_9 {dimension_numbers = #tpu.dot_dimension_numbers<[1], [0], [0], [1], [0, 0, 1, 1], [], []>} : vector<16x299xbf16>, vector<299x156xbf16>, vector<16x156xf32> -> vector<16x156xf32>
    %48 = vector.extract_strided_slice %47 {offsets = [0, 0], sizes = [16, 96], strides = [1, 1]} : vector<16x156xf32> to vector<16x96xf32>
    %49 = arith.truncf %48 : vector<16x96xf32> to vector<16x96xbf16>
    %c0_10 = arith.constant 0 : index
    %c0_11 = arith.constant 0 : index
    %50 = vector.load %arg15[%c0_10, %c0_11] : memref<400x96xbf16, #tpu.memory_space<vmem>>, vector<16x96xbf16>
    tpu.vector_store %arg15[%c0_10, %c0_11], %49 {strides = array<i32>} : memref<400x96xbf16, #tpu.memory_space<vmem>>, vector<16x96xbf16>,
    %51 = vector.extract_strided_slice %47 {offsets = [0, 1], sizes = [16, 96], strides = [1, 1]} : vector<16x156xf32> to vector<16x96xf32>
    %52 = arith.truncf %51 : vector<16x96xf32> to vector<16x96xbf16>
    %c16 = arith.constant 16 : index
    %c0_12 = arith.constant 0 : index
    %53 = vector.load %arg15[%c16, %c0_12] : memref<400x96xbf16, #tpu.memory_space<vmem>>, vector<16x96xbf16>
    tpu.vector_store %arg15[%c16, %c0_12], %52 {strides = array<i32>} : memref<400x96xbf16, #tpu.memory_space<vmem>>, vector<16x96xbf16>,
    %54 = vector.extract_strided_slice %47 {offsets = [0, 2], sizes = [16, 96], strides = [1, 1]} : vector<16x156xf32> to vector<16x96xf32>
    %55 = arith.truncf %54 : vector<16x96xf32> to vector<16x96xbf16>
    %c32 = arith.constant 32 : index
    %c0_13 = arith.constant 0 : index
    %56 = vector.load %arg15[%c32, %c0_13] : memref<400x96xbf16, #tpu.memory_space<vmem>>, vector<16x96xbf16>
    tpu.vector_store %arg15[%c32, %c0_13], %55 {strides = array<i32>} : memref<400x96xbf16, #tpu.memory_space<vmem>>, vector<16x96xbf16>,
    %57 = vector.extract_strided_slice %47 {offsets = [0, 3], sizes = [16, 96], strides = [1, 1]} : vector<16x156xf32> to vector<16x96xf32>
    %58 = arith.truncf %57 : vector<16x96xf32> to vector<16x96xbf16>
    %c48 = arith.constant 48 : index
    %c0_14 = arith.constant 0 : index
    %59 = vector.load %arg15[%c48, %c0_14] : memref<400x96xbf16, #tpu.memory_space<vmem>>, vector<16x96xbf16>
    tpu.vector_store %arg15[%c48, %c0_14], %58 {strides = array<i32>} : memref<400x96xbf16, #tpu.memory_space<vmem>>, vector<16x96xbf16>,
    %60 = vector.extract_strided_slice %47 {offsets = [0, 4], sizes = [16, 96], strides = [1, 1]} : vector<16x156xf32> to vector<16x96xf32>
    %61 = arith.truncf %60 : vector<16x96xf32> to vector<16x96xbf16>
    %c64 = arith.constant 64 : index
    %c0_15 = arith.constant 0 : index
    %62 = vector.load %arg15[%c64, %c0_15] : memref<400x96xbf16, #tpu.memory_space<vmem>>, vector<16x96xbf16>
    tpu.vector_store %arg15[%c64, %c0_15], %61 {strides = array<i32>} : memref<400x96xbf16, #tpu.memory_space<vmem>>, vector<16x96xbf16>,
    %63 = vector.extract_strided_slice %47 {offsets = [0, 12], sizes = [16, 96], strides = [1, 1]} : vector<16x156xf32> to vector<16x96xf32>
    %64 = arith.truncf %63 : vector<16x96xf32> to vector<16x96xbf16>
    %c80 = arith.constant 80 : index
    %c0_16 = arith.constant 0 : index
    %65 = vector.load %arg15[%c80, %c0_16] : memref<400x96xbf16, #tpu.memory_space<vmem>>, vector<16x96xbf16>
    tpu.vector_store %arg15[%c80, %c0_16], %64 {strides = array<i32>} : memref<400x96xbf16, #tpu.memory_space<vmem>>, vector<16x96xbf16>,
    %66 = vector.extract_strided_slice %47 {offsets = [0, 13], sizes = [16, 96], strides = [1, 1]} : vector<16x156xf32> to vector<16x96xf32>
    %67 = arith.truncf %66 : vector<16x96xf32> to vector<16x96xbf16>
    %c96 = arith.constant 96 : index
    %c0_17 = arith.constant 0 : index
    %68 = vector.load %arg15[%c96, %c0_17] : memref<400x96xbf16, #tpu.memory_space<vmem>>, vector<16x96xbf16>
    tpu.vector_store %arg15[%c96, %c0_17], %67 {strides = array<i32>} : memref<400x96xbf16, #tpu.memory_space<vmem>>, vector<16x96xbf16>,
    %69 = vector.extract_strided_slice %47 {offsets = [0, 14], sizes = [16, 96], strides = [1, 1]} : vector<16x156xf32> to vector<16x96xf32>
    %70 = arith.truncf %69 : vector<16x96xf32> to vector<16x96xbf16>
    %c112 = arith.constant 112 : index
    %c0_18 = arith.constant 0 : index
    %71 = vector.load %arg15[%c112, %c0_18] : memref<400x96xbf16, #tpu.memory_space<vmem>>, vector<16x96xbf16>
    tpu.vector_store %arg15[%c112, %c0_18], %70 {strides = array<i32>} : memref<400x96xbf16, #tpu.memory_space<vmem>>, vector<16x96xbf16>,
    %72 = vector.extract_strided_slice %47 {offsets = [0, 15], sizes = [16, 96], strides = [1, 1]} : vector<16x156xf32> to vector<16x96xf32>
    %73 = arith.truncf %72 : vector<16x96xf32> to vector<16x96xbf16>
    %c128 = arith.constant 128 : index
    %c0_19 = arith.constant 0 : index
    %74 = vector.load %arg15[%c128, %c0_19] : memref<400x96xbf16, #tpu.memory_space<vmem>>, vector<16x96xbf16>
    tpu.vector_store %arg15[%c128, %c0_19], %73 {strides = array<i32>} : memref<400x96xbf16, #tpu.memory_space<vmem>>, vector<16x96xbf16>,
    %75 = vector.extract_strided_slice %47 {offsets = [0, 16], sizes = [16, 96], strides = [1, 1]} : vector<16x156xf32> to vector<16x96xf32>
    %76 = arith.truncf %75 : vector<16x96xf32> to vector<16x96xbf16>
    %c144 = arith.constant 144 : index
    %c0_20 = arith.constant 0 : index
    %77 = vector.load %arg15[%c144, %c0_20] : memref<400x96xbf16, #tpu.memory_space<vmem>>, vector<16x96xbf16>
    tpu.vector_store %arg15[%c144, %c0_20], %76 {strides = array<i32>} : memref<400x96xbf16, #tpu.memory_space<vmem>>, vector<16x96xbf16>,
    %78 = vector.extract_strided_slice %47 {offsets = [0, 24], sizes = [16, 96], strides = [1, 1]} : vector<16x156xf32> to vector<16x96xf32>
    %79 = arith.truncf %78 : vector<16x96xf32> to vector<16x96xbf16>
    %c160 = arith.constant 160 : index
    %c0_21 = arith.constant 0 : index
    %80 = vector.load %arg15[%c160, %c0_21] : memref<400x96xbf16, #tpu.memory_space<vmem>>, vector<16x96xbf16>
    tpu.vector_store %arg15[%c160, %c0_21], %79 {strides = array<i32>} : memref<400x96xbf16, #tpu.memory_space<vmem>>, vector<16x96xbf16>,
    %81 = vector.extract_strided_slice %47 {offsets = [0, 25], sizes = [16, 96], strides = [1, 1]} : vector<16x156xf32> to vector<16x96xf32>
    %82 = arith.truncf %81 : vector<16x96xf32> to vector<16x96xbf16>
    %c176 = arith.constant 176 : index
    %c0_22 = arith.constant 0 : index
    %83 = vector.load %arg15[%c176, %c0_22] : memref<400x96xbf16, #tpu.memory_space<vmem>>, vector<16x96xbf16>
    tpu.vector_store %arg15[%c176, %c0_22], %82 {strides = array<i32>} : memref<400x96xbf16, #tpu.memory_space<vmem>>, vector<16x96xbf16>,
    %84 = vector.extract_strided_slice %47 {offsets = [0, 26], sizes = [16, 96], strides = [1, 1]} : vector<16x156xf32> to vector<16x96xf32>
    %85 = arith.truncf %84 : vector<16x96xf32> to vector<16x96xbf16>
    %c192 = arith.constant 192 : index
    %c0_23 = arith.constant 0 : index
    %86 = vector.load %arg15[%c192, %c0_23] : memref<400x96xbf16, #tpu.memory_space<vmem>>, vector<16x96xbf16>
    tpu.vector_store %arg15[%c192, %c0_23], %85 {strides = array<i32>} : memref<400x96xbf16, #tpu.memory_space<vmem>>, vector<16x96xbf16>,
    %87 = vector.extract_strided_slice %47 {offsets = [0, 27], sizes = [16, 96], strides = [1, 1]} : vector<16x156xf32> to vector<16x96xf32>
    %88 = arith.truncf %87 : vector<16x96xf32> to vector<16x96xbf16>
    %c208 = arith.constant 208 : index
    %c0_24 = arith.constant 0 : index
    %89 = vector.load %arg15[%c208, %c0_24] : memref<400x96xbf16, #tpu.memory_space<vmem>>, vector<16x96xbf16>
    tpu.vector_store %arg15[%c208, %c0_24], %88 {strides = array<i32>} : memref<400x96xbf16, #tpu.memory_space<vmem>>, vector<16x96xbf16>,
    %90 = vector.extract_strided_slice %47 {offsets = [0, 28], sizes = [16, 96], strides = [1, 1]} : vector<16x156xf32> to vector<16x96xf32>
    %91 = arith.truncf %90 : vector<16x96xf32> to vector<16x96xbf16>
    %c224 = arith.constant 224 : index
    %c0_25 = arith.constant 0 : index
    %92 = vector.load %arg15[%c224, %c0_25] : memref<400x96xbf16, #tpu.memory_space<vmem>>, vector<16x96xbf16>
    tpu.vector_store %arg15[%c224, %c0_25], %91 {strides = array<i32>} : memref<400x96xbf16, #tpu.memory_space<vmem>>, vector<16x96xbf16>,
    %93 = vector.extract_strided_slice %47 {offsets = [0, 36], sizes = [16, 96], strides = [1, 1]} : vector<16x156xf32> to vector<16x96xf32>
    %94 = arith.truncf %93 : vector<16x96xf32> to vector<16x96xbf16>
    %c240 = arith.constant 240 : index
    %c0_26 = arith.constant 0 : index
    %95 = vector.load %arg15[%c240, %c0_26] : memref<400x96xbf16, #tpu.memory_space<vmem>>, vector<16x96xbf16>
    tpu.vector_store %arg15[%c240, %c0_26], %94 {strides = array<i32>} : memref<400x96xbf16, #tpu.memory_space<vmem>>, vector<16x96xbf16>,
    %96 = vector.extract_strided_slice %47 {offsets = [0, 37], sizes = [16, 96], strides = [1, 1]} : vector<16x156xf32> to vector<16x96xf32>
    %97 = arith.truncf %96 : vector<16x96xf32> to vector<16x96xbf16>
    %c256 = arith.constant 256 : index
    %c0_27 = arith.constant 0 : index
    %98 = vector.load %arg15[%c256, %c0_27] : memref<400x96xbf16, #tpu.memory_space<vmem>>, vector<16x96xbf16>
    tpu.vector_store %arg15[%c256, %c0_27], %97 {strides = array<i32>} : memref<400x96xbf16, #tpu.memory_space<vmem>>, vector<16x96xbf16>,
    %99 = vector.extract_strided_slice %47 {offsets = [0, 38], sizes = [16, 96], strides = [1, 1]} : vector<16x156xf32> to vector<16x96xf32>
    %100 = arith.truncf %99 : vector<16x96xf32> to vector<16x96xbf16>
    %c272 = arith.constant 272 : index
    %c0_28 = arith.constant 0 : index
    %101 = vector.load %arg15[%c272, %c0_28] : memref<400x96xbf16, #tpu.memory_space<vmem>>, vector<16x96xbf16>
    tpu.vector_store %arg15[%c272, %c0_28], %100 {strides = array<i32>} : memref<400x96xbf16, #tpu.memory_space<vmem>>, vector<16x96xbf16>,
    %102 = vector.extract_strided_slice %47 {offsets = [0, 39], sizes = [16, 96], strides = [1, 1]} : vector<16x156xf32> to vector<16x96xf32>
    %103 = arith.truncf %102 : vector<16x96xf32> to vector<16x96xbf16>
    %c288 = arith.constant 288 : index
    %c0_29 = arith.constant 0 : index
    %104 = vector.load %arg15[%c288, %c0_29] : memref<400x96xbf16, #tpu.memory_space<vmem>>, vector<16x96xbf16>
    tpu.vector_store %arg15[%c288, %c0_29], %103 {strides = array<i32>} : memref<400x96xbf16, #tpu.memory_space<vmem>>, vector<16x96xbf16>,
    %105 = vector.extract_strided_slice %47 {offsets = [0, 40], sizes = [16, 96], strides = [1, 1]} : vector<16x156xf32> to vector<16x96xf32>
    %106 = arith.truncf %105 : vector<16x96xf32> to vector<16x96xbf16>
    %c304 = arith.constant 304 : index
    %c0_30 = arith.constant 0 : index
    %107 = vector.load %arg15[%c304, %c0_30] : memref<400x96xbf16, #tpu.memory_space<vmem>>, vector<16x96xbf16>
    tpu.vector_store %arg15[%c304, %c0_30], %106 {strides = array<i32>} : memref<400x96xbf16, #tpu.memory_space<vmem>>, vector<16x96xbf16>,
    %108 = vector.extract_strided_slice %47 {offsets = [0, 48], sizes = [16, 96], strides = [1, 1]} : vector<16x156xf32> to vector<16x96xf32>
    %109 = arith.truncf %108 : vector<16x96xf32> to vector<16x96xbf16>
    %c320 = arith.constant 320 : index
    %c0_31 = arith.constant 0 : index
    %110 = vector.load %arg15[%c320, %c0_31] : memref<400x96xbf16, #tpu.memory_space<vmem>>, vector<16x96xbf16>
    tpu.vector_store %arg15[%c320, %c0_31], %109 {strides = array<i32>} : memref<400x96xbf16, #tpu.memory_space<vmem>>, vector<16x96xbf16>,
    %111 = vector.extract_strided_slice %47 {offsets = [0, 49], sizes = [16, 96], strides = [1, 1]} : vector<16x156xf32> to vector<16x96xf32>
    %112 = arith.truncf %111 : vector<16x96xf32> to vector<16x96xbf16>
    %c336 = arith.constant 336 : index
    %c0_32 = arith.constant 0 : index
    %113 = vector.load %arg15[%c336, %c0_32] : memref<400x96xbf16, #tpu.memory_space<vmem>>, vector<16x96xbf16>
    tpu.vector_store %arg15[%c336, %c0_32], %112 {strides = array<i32>} : memref<400x96xbf16, #tpu.memory_space<vmem>>, vector<16x96xbf16>,
    %114 = vector.extract_strided_slice %47 {offsets = [0, 50], sizes = [16, 96], strides = [1, 1]} : vector<16x156xf32> to vector<16x96xf32>
    %115 = arith.truncf %114 : vector<16x96xf32> to vector<16x96xbf16>
    %c352 = arith.constant 352 : index
    %c0_33 = arith.constant 0 : index
    %116 = vector.load %arg15[%c352, %c0_33] : memref<400x96xbf16, #tpu.memory_space<vmem>>, vector<16x96xbf16>
    tpu.vector_store %arg15[%c352, %c0_33], %115 {strides = array<i32>} : memref<400x96xbf16, #tpu.memory_space<vmem>>, vector<16x96xbf16>,
    %117 = vector.extract_strided_slice %47 {offsets = [0, 51], sizes = [16, 96], strides = [1, 1]} : vector<16x156xf32> to vector<16x96xf32>
    %118 = arith.truncf %117 : vector<16x96xf32> to vector<16x96xbf16>
    %c368 = arith.constant 368 : index
    %c0_34 = arith.constant 0 : index
    %119 = vector.load %arg15[%c368, %c0_34] : memref<400x96xbf16, #tpu.memory_space<vmem>>, vector<16x96xbf16>
    tpu.vector_store %arg15[%c368, %c0_34], %118 {strides = array<i32>} : memref<400x96xbf16, #tpu.memory_space<vmem>>, vector<16x96xbf16>,
    %120 = vector.extract_strided_slice %47 {offsets = [0, 52], sizes = [16, 96], strides = [1, 1]} : vector<16x156xf32> to vector<16x96xf32>
    %121 = arith.truncf %120 : vector<16x96xf32> to vector<16x96xbf16>
    %c384 = arith.constant 384 : index
    %c0_35 = arith.constant 0 : index
    %122 = vector.load %arg15[%c384, %c0_35] : memref<400x96xbf16, #tpu.memory_space<vmem>>, vector<16x96xbf16>
    tpu.vector_store %arg15[%c384, %c0_35], %121 {strides = array<i32>} : memref<400x96xbf16, #tpu.memory_space<vmem>>, vector<16x96xbf16>,
    %c0_36 = arith.constant 0 : index
    %c0_37 = arith.constant 0 : index
    %123 = vector.load %arg4[%c0_36, %c0_37] : memref<4x400xbf16, #tpu.memory_space<vmem>>, vector<4x400xbf16>
    %c0_38 = arith.constant 0 : index
    %c0_39 = arith.constant 0 : index
    %124 = vector.load %arg15[%c0_38, %c0_39] : memref<400x96xbf16, #tpu.memory_space<vmem>>, vector<400x96xbf16>
    %cst_40 = arith.constant dense<0.000000e+00> : vector<4x96xf32>
    %125 = tpu.matmul %123, %124, %cst_40 {dimension_numbers = #tpu.dot_dimension_numbers<[1], [0], [0], [1], [0, 0, 1, 1], [], []>} : vector<4x400xbf16>, vector<400x96xbf16>, vector<4x96xf32> -> vector<4x96xf32>
    %c0_41 = arith.constant 0 : index
    %c0_42 = arith.constant 0 : index
    %126 = vector.load %arg5[%c0_41, %c0_42] : memref<4x1xf32, #tpu.memory_space<vmem>>, vector<4x1xf32>
    %127 = vector.broadcast %126 : vector<4x1xf32> to vector<4x96xf32>
    %128 = arith.addf %125, %127 : vector<4x96xf32>
    %cst_43 = arith.constant 0.000000e+00 : f32
    %129 = vector.broadcast %cst_43 : f32 to vector<4x96xf32>
    %130 = arith.maximumf %128, %129 : vector<4x96xf32>
    %131 = vector.extract_strided_slice %130 {offsets = [0, 0], sizes = [4, 83], strides = [1, 1]} : vector<4x96xf32> to vector<4x83xf32>
    %132 = vector.extract_strided_slice %130 {offsets = [0, 1], sizes = [4, 83], strides = [1, 1]} : vector<4x96xf32> to vector<4x83xf32>
    %133 = arith.maximumf %131, %132 : vector<4x83xf32>
    %134 = vector.extract_strided_slice %130 {offsets = [0, 12], sizes = [4, 83], strides = [1, 1]} : vector<4x96xf32> to vector<4x83xf32>
    %135 = vector.extract_strided_slice %130 {offsets = [0, 13], sizes = [4, 83], strides = [1, 1]} : vector<4x96xf32> to vector<4x83xf32>
    %136 = arith.maximumf %134, %135 : vector<4x83xf32>
    %137 = arith.maximumf %133, %136 : vector<4x83xf32>
    %138 = arith.truncf %137 : vector<4x83xf32> to vector<4x83xbf16>
    %c0_44 = arith.constant 0 : index
    %c0_45 = arith.constant 0 : index
    %139 = vector.load %arg11[%c0_44, %c0_45] : memref<83x16xbf16, #tpu.memory_space<vmem>>, vector<83x16xbf16>
    %cst_46 = arith.constant dense<0.000000e+00> : vector<4x16xf32>
    %140 = tpu.matmul %138, %139, %cst_46 {dimension_numbers = #tpu.dot_dimension_numbers<[1], [0], [0], [1], [0, 0, 1, 1], [], []>} : vector<4x83xbf16>, vector<83x16xbf16>, vector<4x16xf32> -> vector<4x16xf32>
    %c0_47 = arith.constant 0 : index
    %c0_48 = arith.constant 0 : index
    %141 = vector.load %arg6[%c0_47, %c0_48] : memref<64x4xbf16, #tpu.memory_space<vmem>>, vector<64x4xbf16>
    %142 = arith.truncf %140 : vector<4x16xf32> to vector<4x16xbf16>
    %cst_49 = arith.constant dense<0.000000e+00> : vector<64x16xf32>
    %143 = tpu.matmul %141, %142, %cst_49 {dimension_numbers = #tpu.dot_dimension_numbers<[1], [0], [0], [1], [0, 0, 1, 1], [], []>} : vector<64x4xbf16>, vector<4x16xbf16>, vector<64x16xf32> -> vector<64x16xf32>
    %144 = vector.extract_strided_slice %143 {offsets = [0, 0], sizes = [16, 16], strides = [1, 1]} : vector<64x16xf32> to vector<16x16xf32>
    %145 = arith.truncf %144 : vector<16x16xf32> to vector<16x16xbf16>
    %c0_50 = arith.constant 0 : index
    %c0_51 = arith.constant 0 : index
    %146 = vector.load %arg12[%c0_50, %c0_51] : memref<64x64xbf16, #tpu.memory_space<vmem>>, vector<16x64xbf16>
    %cst_52 = arith.constant dense<0.000000e+00> : vector<16x64xf32>
    %147 = tpu.matmul %145, %146, %cst_52 {dimension_numbers = #tpu.dot_dimension_numbers<[1], [0], [0], [1], [0, 0, 1, 1], [], []>} : vector<16x16xbf16>, vector<16x64xbf16>, vector<16x64xf32> -> vector<16x64xf32>
    %148 = vector.extract_strided_slice %143 {offsets = [16, 0], sizes = [16, 16], strides = [1, 1]} : vector<64x16xf32> to vector<16x16xf32>
    %149 = arith.truncf %148 : vector<16x16xf32> to vector<16x16xbf16>
    %c16_53 = arith.constant 16 : index
    %c0_54 = arith.constant 0 : index
    %150 = vector.load %arg12[%c16_53, %c0_54] : memref<64x64xbf16, #tpu.memory_space<vmem>>, vector<16x64xbf16>
    %cst_55 = arith.constant dense<0.000000e+00> : vector<16x64xf32>
    %151 = tpu.matmul %149, %150, %cst_55 {dimension_numbers = #tpu.dot_dimension_numbers<[1], [0], [0], [1], [0, 0, 1, 1], [], []>} : vector<16x16xbf16>, vector<16x64xbf16>, vector<16x64xf32> -> vector<16x64xf32>
    %152 = arith.addf %147, %151 : vector<16x64xf32>
    %153 = vector.extract_strided_slice %143 {offsets = [32, 0], sizes = [16, 16], strides = [1, 1]} : vector<64x16xf32> to vector<16x16xf32>
    %154 = arith.truncf %153 : vector<16x16xf32> to vector<16x16xbf16>
    %c32_56 = arith.constant 32 : index
    %c0_57 = arith.constant 0 : index
    %155 = vector.load %arg12[%c32_56, %c0_57] : memref<64x64xbf16, #tpu.memory_space<vmem>>, vector<16x64xbf16>
    %cst_58 = arith.constant dense<0.000000e+00> : vector<16x64xf32>
    %156 = tpu.matmul %154, %155, %cst_58 {dimension_numbers = #tpu.dot_dimension_numbers<[1], [0], [0], [1], [0, 0, 1, 1], [], []>} : vector<16x16xbf16>, vector<16x64xbf16>, vector<16x64xf32> -> vector<16x64xf32>
    %157 = arith.addf %152, %156 : vector<16x64xf32>
    %158 = vector.extract_strided_slice %143 {offsets = [48, 0], sizes = [16, 16], strides = [1, 1]} : vector<64x16xf32> to vector<16x16xf32>
    %159 = arith.truncf %158 : vector<16x16xf32> to vector<16x16xbf16>
    %c48_59 = arith.constant 48 : index
    %c0_60 = arith.constant 0 : index
    %160 = vector.load %arg12[%c48_59, %c0_60] : memref<64x64xbf16, #tpu.memory_space<vmem>>, vector<16x64xbf16>
    %cst_61 = arith.constant dense<0.000000e+00> : vector<16x64xf32>
    %161 = tpu.matmul %159, %160, %cst_61 {dimension_numbers = #tpu.dot_dimension_numbers<[1], [0], [0], [1], [0, 0, 1, 1], [], []>} : vector<16x16xbf16>, vector<16x64xbf16>, vector<16x64xf32> -> vector<16x64xf32>
    %162 = arith.addf %157, %161 : vector<16x64xf32>
    %c0_62 = arith.constant 0 : index
    %c0_63 = arith.constant 0 : index
    %163 = vector.load %arg7[%c0_62, %c0_63] : memref<16x1xf32, #tpu.memory_space<vmem>>, vector<16x1xf32>
    %164 = vector.broadcast %163 : vector<16x1xf32> to vector<16x64xf32>
    %165 = arith.addf %162, %164 : vector<16x64xf32>
    %cst_64 = arith.constant 0.000000e+00 : f32
    %166 = vector.broadcast %cst_64 : f32 to vector<16x64xf32>
    %167 = arith.maximumf %165, %166 : vector<16x64xf32>
    %c0_65 = arith.constant 0 : index
    %c0_66 = arith.constant 0 : index
    %168 = vector.load %arg8[%c0_65, %c0_66] : memref<4x16xbf16, #tpu.memory_space<vmem>>, vector<4x16xbf16>
    %169 = arith.truncf %167 : vector<16x64xf32> to vector<16x64xbf16>
    %cst_67 = arith.constant dense<0.000000e+00> : vector<4x64xf32>
    %170 = tpu.matmul %168, %169, %cst_67 {dimension_numbers = #tpu.dot_dimension_numbers<[1], [0], [0], [1], [0, 0, 1, 1], [], []>} : vector<4x16xbf16>, vector<16x64xbf16>, vector<4x64xf32> -> vector<4x64xf32>
    %171 = vector.extract_strided_slice %170 {offsets = [0, 0], sizes = [1, 64], strides = [1, 1]} : vector<4x64xf32> to vector<1x64xf32>
    %c0_68 = arith.constant 0 : index
    %c0_69 = arith.constant 0 : index
    %172 = vector.load %arg13[%c0_68, %c0_69] : memref<256x256xf32, #tpu.memory_space<vmem>>, vector<64x256xf32>
    %cst_70 = arith.constant dense<0.000000e+00> : vector<1x256xf32>
    %173 = tpu.matmul %171, %172, %cst_70 {dimension_numbers = #tpu.dot_dimension_numbers<[1], [0], [0], [1], [0, 0, 1, 1], [], []>} : vector<1x64xf32>, vector<64x256xf32>, vector<1x256xf32> -> vector<1x256xf32>
    %174 = vector.extract_strided_slice %170 {offsets = [1, 0], sizes = [1, 64], strides = [1, 1]} : vector<4x64xf32> to vector<1x64xf32>
    %c64_71 = arith.constant 64 : index
    %c0_72 = arith.constant 0 : index
    %175 = vector.load %arg13[%c64_71, %c0_72] : memref<256x256xf32, #tpu.memory_space<vmem>>, vector<64x256xf32>
    %cst_73 = arith.constant dense<0.000000e+00> : vector<1x256xf32>
    %176 = tpu.matmul %174, %175, %cst_73 {dimension_numbers = #tpu.dot_dimension_numbers<[1], [0], [0], [1], [0, 0, 1, 1], [], []>} : vector<1x64xf32>, vector<64x256xf32>, vector<1x256xf32> -> vector<1x256xf32>
    %177 = arith.addf %173, %176 : vector<1x256xf32>
    %178 = vector.extract_strided_slice %170 {offsets = [2, 0], sizes = [1, 64], strides = [1, 1]} : vector<4x64xf32> to vector<1x64xf32>
    %c128_74 = arith.constant 128 : index
    %c0_75 = arith.constant 0 : index
    %179 = vector.load %arg13[%c128_74, %c0_75] : memref<256x256xf32, #tpu.memory_space<vmem>>, vector<64x256xf32>
    %cst_76 = arith.constant dense<0.000000e+00> : vector<1x256xf32>
    %180 = tpu.matmul %178, %179, %cst_76 {dimension_numbers = #tpu.dot_dimension_numbers<[1], [0], [0], [1], [0, 0, 1, 1], [], []>} : vector<1x64xf32>, vector<64x256xf32>, vector<1x256xf32> -> vector<1x256xf32>
    %181 = arith.addf %177, %180 : vector<1x256xf32>
    %182 = vector.extract_strided_slice %170 {offsets = [3, 0], sizes = [1, 64], strides = [1, 1]} : vector<4x64xf32> to vector<1x64xf32>
    %c192_77 = arith.constant 192 : index
    %c0_78 = arith.constant 0 : index
    %183 = vector.load %arg13[%c192_77, %c0_78] : memref<256x256xf32, #tpu.memory_space<vmem>>, vector<64x256xf32>
    %cst_79 = arith.constant dense<0.000000e+00> : vector<1x256xf32>
    %184 = tpu.matmul %182, %183, %cst_79 {dimension_numbers = #tpu.dot_dimension_numbers<[1], [0], [0], [1], [0, 0, 1, 1], [], []>} : vector<1x64xf32>, vector<64x256xf32>, vector<1x256xf32> -> vector<1x256xf32>
    %185 = arith.addf %181, %184 : vector<1x256xf32>
    %c0_80 = arith.constant 0 : index
    %c0_81 = arith.constant 0 : index
    %186 = vector.load %arg9[%c0_80, %c0_81] : memref<1x1xf32, #tpu.memory_space<vmem>>, vector<1x1xf32>
    %187 = vector.broadcast %186 : vector<1x1xf32> to vector<1x256xf32>
    %188 = arith.addf %185, %187 : vector<1x256xf32>
    %189 = arith.negf %188 : vector<1x256xf32>
    %190 = math.exp %189 : vector<1x256xf32>
    %cst_82 = arith.constant 1.000000e+00 : f32
    %191 = vector.broadcast %cst_82 : f32 to vector<1x256xf32>
    %192 = arith.addf %191, %190 : vector<1x256xf32>
    %193 = arith.divf %191, %192 : vector<1x256xf32>
    %c0_83 = arith.constant 0 : index
    %c0_84 = arith.constant 0 : index
    %c0_85 = arith.constant 0 : index
    %194 = vector.load %arg14[%c0_83, %c0_84, %c0_85] : memref<1x1x256xf32, #tpu.memory_space<vmem>>, vector<1x1x256xf32>
    %195 = vector.shape_cast %194 : vector<1x1x256xf32> to vector<1x256xf32>
    %196 = vector.shape_cast %193 : vector<1x256xf32> to vector<1x1x256xf32>
    tpu.vector_store %arg14[%c0_83, %c0_84, %c0_85], %196 {strides = array<i32>} : memref<1x1x256xf32, #tpu.memory_space<vmem>>, vector<1x1x256xf32>,
    return
  }
  func.func @transform_0(%arg0: i32) -> (i32, i32, i32) {
    %c0_i32 = arith.constant 0 : i32
    %c0_i32_0 = arith.constant 0 : i32
    %c0_i32_1 = arith.constant 0 : i32
    return %arg0, %c0_i32, %c0_i32_0 : i32, i32, i32
  }
  func.func @transform_1(%arg0: i32) -> (i32, i32) {
    %c0_i32 = arith.constant 0 : i32
    %c0_i32_0 = arith.constant 0 : i32
    %c0_i32_1 = arith.constant 0 : i32
    return %c0_i32, %c0_i32_0 : i32, i32
  }
  func.func @transform_2(%arg0: i32) -> (i32, i32) {
    %c0_i32 = arith.constant 0 : i32
    %c0_i32_0 = arith.constant 0 : i32
    %c0_i32_1 = arith.constant 0 : i32
    return %c0_i32, %c0_i32_0 : i32, i32
  }
  func.func @transform_3(%arg0: i32) -> (i32, i32) {
    %c0_i32 = arith.constant 0 : i32
    %c0_i32_0 = arith.constant 0 : i32
    %c0_i32_1 = arith.constant 0 : i32
    return %c0_i32, %c0_i32_0 : i32, i32
  }
  func.func @transform_4(%arg0: i32) -> (i32, i32) {
    %c0_i32 = arith.constant 0 : i32
    %c0_i32_0 = arith.constant 0 : i32
    %c0_i32_1 = arith.constant 0 : i32
    return %c0_i32, %c0_i32_0 : i32, i32
  }
  func.func @transform_5(%arg0: i32) -> (i32, i32) {
    %c0_i32 = arith.constant 0 : i32
    %c0_i32_0 = arith.constant 0 : i32
    %c0_i32_1 = arith.constant 0 : i32
    return %c0_i32, %c0_i32_0 : i32, i32
  }
  func.func @transform_6(%arg0: i32) -> (i32, i32) {
    %c0_i32 = arith.constant 0 : i32
    %c0_i32_0 = arith.constant 0 : i32
    %c0_i32_1 = arith.constant 0 : i32
    return %c0_i32, %c0_i32_0 : i32, i32
  }
  func.func @transform_7(%arg0: i32) -> (i32, i32) {
    %c0_i32 = arith.constant 0 : i32
    %c0_i32_0 = arith.constant 0 : i32
    %c0_i32_1 = arith.constant 0 : i32
    return %c0_i32, %c0_i32_0 : i32, i32
  }
  func.func @transform_8(%arg0: i32) -> (i32, i32) {
    %c0_i32 = arith.constant 0 : i32
    %c0_i32_0 = arith.constant 0 : i32
    %c0_i32_1 = arith.constant 0 : i32
    return %c0_i32, %c0_i32_0 : i32, i32
  }
  func.func @transform_9(%arg0: i32) -> (i32, i32) {
    %c0_i32 = arith.constant 0 : i32
    %c0_i32_0 = arith.constant 0 : i32
    %c0_i32_1 = arith.constant 0 : i32
    return %c0_i32, %c0_i32_0 : i32, i32
  }
  func.func @transform_10(%arg0: i32) -> (i32, i32) {
    %c0_i32 = arith.constant 0 : i32
    %c0_i32_0 = arith.constant 0 : i32
    %c0_i32_1 = arith.constant 0 : i32
    return %c0_i32, %c0_i32_0 : i32, i32
  }
  func.func @transform_11(%arg0: i32) -> (i32, i32) {
    %c0_i32 = arith.constant 0 : i32
    %c0_i32_0 = arith.constant 0 : i32
    %c0_i32_1 = arith.constant 0 : i32
    return %c0_i32, %c0_i32_0 : i32, i32
  }
  func.func @transform_12(%arg0: i32) -> (i32, i32) {
    %c0_i32 = arith.constant 0 : i32
    %c0_i32_0 = arith.constant 0 : i32
    %c0_i32_1 = arith.constant 0 : i32
    return %c0_i32, %c0_i32_0 : i32, i32
  }
  func.func @transform_13(%arg0: i32) -> (i32, i32, i32) {
    %c0_i32 = arith.constant 0 : i32
    %c0_i32_0 = arith.constant 0 : i32
    %c0_i32_1 = arith.constant 0 : i32
    return %arg0, %c0_i32, %c0_i32_0 : i32, i32, i32
  }
}

</mosaic_0001>

<llo_original>
// kernel: conv_autoencoder_forward.1
$region0: #{conv_autoencoder_forward.1}
  #allocation0 [shape = 'u32[]', space=smem, size = 0x4, offset = 0x4, fixed_abs, tag = 'smem constant byte address 0x4 - core index']
  #allocation1 [shape = 'u32[144,128]{1,0:T(1,128)}', space=vmem, size = 0x12000, scoped, tag = 'internal scratch']
  #allocation2 [shape = 'bf16[400,96]{1,0:T(16,128)(2,1)}', space=vmem, size = 0x19000, scoped, tag = 'scratch operand']
  #allocation3 [shape = 'f32[1,1]{1,0:T(1,128)S(1)}', space=vmem, size = 0x200, scoped, tag = 'scoped memory for conv_autoencoder_forward.1']
  %s0 = inlined_call_operand.vmem [shape: f32[2,1,420], index: 0, kind: input, shape index: {}]
  %s1 = inlined_call_operand.vmem [shape: bf16[16,25], index: 1, kind: input, shape index: {}]
  %s2 = inlined_call_operand.vmem [shape: f32[16,1], index: 2, kind: input, shape index: {}]
  %s3 = inlined_call_operand.vmem [shape: bf16[4,400], index: 3, kind: input, shape index: {}]
  %s4 = inlined_call_operand.vmem [shape: f32[4,1], index: 4, kind: input, shape index: {}]
  %s5 = inlined_call_operand.vmem [shape: bf16[64,4], index: 5, kind: input, shape index: {}]
  %s6 = inlined_call_operand.vmem [shape: f32[16,1], index: 6, kind: input, shape index: {}]
  %s7 = inlined_call_operand.vmem [shape: bf16[4,16], index: 7, kind: input, shape index: {}]
  %s8 = inlined_call_operand.<no memory space> [shape: f32[1,1], index: 8, kind: input, shape index: {}]
  %s9 = inlined_call_operand.hbm [shape: bf16[299,156], index: 9, kind: input, shape index: {}]
  %s10 = inlined_call_operand.vmem [shape: bf16[83,16], index: 10, kind: input, shape index: {}]
  %s11 = inlined_call_operand.vmem [shape: bf16[64,64], index: 11, kind: input, shape index: {}]
  %s12 = inlined_call_operand.vmem [shape: f32[256,256], index: 12, kind: input, shape index: {}]
  %s13 = inlined_call_operand.vmem [shape: f32[2,1,256], index: 13, kind: output, shape index: {}]
  %s14 = sld [smem:[#allocation0]]
  $region89: #{conv_autoencoder_forward.1} parent=0
    _
  %s16 = ssub.s32 1, %s14
  %s17 = scalar_select 0, %s16, %s14
  %v18 = vstv %s8
  %19 = vst [vmem:[#allocation3] sm:$0x1] %v18
  $region1: #{conv_autoencoder_forward.1} parent=0
    #allocation4 [shape = 'u8[155648]{0}', space=vmem, size = 0x26000, scoped, tag = 'input window, operand 9, single buffered']
    #allocation5 [shape = 's32[2]{0}', space=sflag, size = 0x8, scoped, tag = 'scoped memory for conv_autoencoder_forward.1']
    %20 = vsyncpa [#allocation5], 0
    loop: start=0, step=1, limit=4
    $region2: #{conv_autoencoder_forward.1} parent=1 // loop_pre_header
      _
    $region3: #{conv_autoencoder_forward.1} parent=1 // loop_header
      %s22 = sphi 0, %s26
      %p23 = scmp.ge.s32.totalorder %s22, 4
      %s32 = sphi 0, %s34
      %s35 = sphi 0, %s32
      %s36 = sphi 0, %s35
      %s52 = sphi 0, %s36
      %s56 = sphi 0, %s56
      %s58 = sphi 0, %s56
      %s59 = sphi 0, %s58
      %s73 = sphi 0, %s59
      %s77 = sphi 0, %s77
      %s79 = sphi 0, %s77
      %s80 = sphi 0, %s79
      %s94 = sphi 0, %s80
      %s98 = sphi 0, %s98
      %s100 = sphi 0, %s98
      %s101 = sphi 0, %s100
      %s115 = sphi 0, %s101
      %s119 = sphi 0, %s119
      %s121 = sphi 0, %s119
      %s122 = sphi 0, %s121
      %s136 = sphi 0, %s122
      %s140 = sphi 0, %s140
      %s142 = sphi 0, %s140
      %s143 = sphi 0, %s142
      %s157 = sphi 0, %s143
      %s161 = sphi 0, %s161
      %s163 = sphi 0, %s161
      %s164 = sphi 0, %s163
      %s178 = sphi 0, %s164
      %s182 = sphi 0, %s182
      %s184 = sphi 0, %s182
      %s185 = sphi 0, %s184
      %s199 = sphi 0, %s185
      %s203 = sphi 0, %s203
      %s205 = sphi 0, %s203
      %s206 = sphi 0, %s205
      %s220 = sphi 0, %s206
      %s224 = sphi 0, %s224
      %s226 = sphi 0, %s224
      %s227 = sphi 0, %s226
      %s241 = sphi 0, %s227
      %s245 = sphi 0, %s245
      %s247 = sphi 0, %s245
      %s248 = sphi 0, %s247
      %s262 = sphi 0, %s248
      %s266 = sphi 0, %s266
      %s268 = sphi 0, %s266
      %s269 = sphi 0, %s268
      %s283 = sphi 0, %s269
      %s287 = sphi 0, %s287
      %s289 = sphi 0, %s287
      %s290 = sphi 0, %s289
      %s304 = sphi 0, %s290
      %s310 = sphi 0, %s312
      %s313 = sphi 0, %s310
      %s314 = sphi 0, %s313
      %s330 = sphi 0, %s314
    $region4: #{conv_autoencoder_forward.1} parent=1 // loop_header_branch
      %25 = sbr.rel (%p23) target = $region8
    $region5: #{conv_autoencoder_forward.1} parent=1 // loop_body
      %s27 = ssub.s32 %s22, 1
      %s28 = ssub.s32 %s22, 2
      %s29 = sadd.s32 %s22, 1
      %s30 = ssub.s32 %s22, %s29
      %p31 = scmp.eq.s32.totalorder %s30, 0
      %s33 = sadd.s32 %s32, 1
      %s34 = scalar_select %p31, %s32, %s33
      %p37 = pneg %p31
      %p38 = scmp.eq.s32.totalorder %s22, 1
      %p39 = por %p37, %p38
      %p40 = scmp.ne.s32.totalorder %s32, %s35
      %p41 = scmp.eq.s32.totalorder %s22, 0
      %p42 = por %p40, %p41
      %p43 = scmp.ne.s32.totalorder %s32, %s35
      %p44 = scmp.eq.s32.totalorder %s27, 1
      %p45 = por %p43, %p44
      %p46 = scmp.ne.s32.totalorder %s35, %s36
      %p47 = scmp.eq.s32.totalorder %s27, 0
      %p48 = por %p46, %p47
      %p49 = scmp.ne.s32.totalorder %s35, %s36
      %p50 = scmp.eq.s32.totalorder %s28, 1
      %p51 = por %p49, %p50
      %p53 = scmp.ne.s32.totalorder %s36, %s52
      %p54 = scmp.eq.s32.totalorder %s28, 0
      %p55 = por %p53, %p54
      %s57 = sadd.s32 %s56, 1
      %p60 = scmp.eq.s32.totalorder %s22, 1
      %p61 = scmp.ne.s32.totalorder %s56, %s58
      %p62 = scmp.eq.s32.totalorder %s22, 0
      %p63 = por %p61, %p62
      %p64 = scmp.ne.s32.totalorder %s56, %s58
      %p65 = scmp.eq.s32.totalorder %s27, 1
      %p66 = por %p64, %p65
      %p67 = scmp.ne.s32.totalorder %s58, %s59
      %p68 = scmp.eq.s32.totalorder %s27, 0
      %p69 = por %p67, %p68
      %p70 = scmp.ne.s32.totalorder %s58, %s59
      %p71 = scmp.eq.s32.totalorder %s28, 1
      %p72 = por %p70, %p71
      %p74 = scmp.ne.s32.totalorder %s59, %s73
      %p75 = scmp.eq.s32.totalorder %s28, 0
      %p76 = por %p74, %p75
      %s78 = sadd.s32 %s77, 1
      %p81 = scmp.eq.s32.totalorder %s22, 1
      %p82 = scmp.ne.s32.totalorder %s77, %s79
      %p83 = scmp.eq.s32.totalorder %s22, 0
      %p84 = por %p82, %p83
      %p85 = scmp.ne.s32.totalorder %s77, %s79
      %p86 = scmp.eq.s32.totalorder %s27, 1
      %p87 = por %p85, %p86
      %p88 = scmp.ne.s32.totalorder %s79, %s80
      %p89 = scmp.eq.s32.totalorder %s27, 0
      %p90 = por %p88, %p89
      %p91 = scmp.ne.s32.totalorder %s79, %s80
      %p92 = scmp.eq.s32.totalorder %s28, 1
      %p93 = por %p91, %p92
      %p95 = scmp.ne.s32.totalorder %s80, %s94
      %p96 = scmp.eq.s32.totalorder %s28, 0
      %p97 = por %p95, %p96
      %s99 = sadd.s32 %s98, 1
      %p102 = scmp.eq.s32.totalorder %s22, 1
      %p103 = scmp.ne.s32.totalorder %s98, %s100
      %p104 = scmp.eq.s32.totalorder %s22, 0
      %p105 = por %p103, %p104
      %p106 = scmp.ne.s32.totalorder %s98, %s100
      %p107 = scmp.eq.s32.totalorder %s27, 1
      %p108 = por %p106, %p107
      %p109 = scmp.ne.s32.totalorder %s100, %s101
      %p110 = scmp.eq.s32.totalorder %s27, 0
      %p111 = por %p109, %p110
      %p112 = scmp.ne.s32.totalorder %s100, %s101
      %p113 = scmp.eq.s32.totalorder %s28, 1
      %p114 = por %p112, %p113
      %p116 = scmp.ne.s32.totalorder %s101, %s115
      %p117 = scmp.eq.s32.totalorder %s28, 0
      %p118 = por %p116, %p117
      %s120 = sadd.s32 %s119, 1
      %p123 = scmp.eq.s32.totalorder %s22, 1
      %p124 = scmp.ne.s32.totalorder %s119, %s121
      %p125 = scmp.eq.s32.totalorder %s22, 0
      %p126 = por %p124, %p125
      %p127 = scmp.ne.s32.totalorder %s119, %s121
      %p128 = scmp.eq.s32.totalorder %s27, 1
      %p129 = por %p127, %p128
      %p130 = scmp.ne.s32.totalorder %s121, %s122
      %p131 = scmp.eq.s32.totalorder %s27, 0
      %p132 = por %p130, %p131
      %p133 = scmp.ne.s32.totalorder %s121, %s122
      %p134 = scmp.eq.s32.totalorder %s28, 1
      %p135 = por %p133, %p134
      %p137 = scmp.ne.s32.totalorder %s122, %s136
      %p138 = scmp.eq.s32.totalorder %s28, 0
      %p139 = por %p137, %p138
      %s141 = sadd.s32 %s140, 1
      %p144 = scmp.eq.s32.totalorder %s22, 1
      %p145 = scmp.ne.s32.totalorder %s140, %s142
      %p146 = scmp.eq.s32.totalorder %s22, 0
      %p147 = por %p145, %p146
      %p148 = scmp.ne.s32.totalorder %s140, %s142
      %p149 = scmp.eq.s32.totalorder %s27, 1
      %p150 = por %p148, %p149
      %p151 = scmp.ne.s32.totalorder %s142, %s143
      %p152 = scmp.eq.s32.totalorder %s27, 0
      %p153 = por %p151, %p152
      %p154 = scmp.ne.s32.totalorder %s142, %s143
      %p155 = scmp.eq.s32.totalorder %s28, 1
      %p156 = por %p154, %p155
      %p158 = scmp.ne.s32.totalorder %s143, %s157
      %p159 = scmp.eq.s32.totalorder %s28, 0
      %p160 = por %p158, %p159
      %s162 = sadd.s32 %s161, 1
      %p165 = scmp.eq.s32.totalorder %s22, 1
      %p166 = scmp.ne.s32.totalorder %s161, %s163
      %p167 = scmp.eq.s32.totalorder %s22, 0
      %p168 = por %p166, %p167
      %p169 = scmp.ne.s32.totalorder %s161, %s163
      %p170 = scmp.eq.s32.totalorder %s27, 1
      %p171 = por %p169, %p170
      %p172 = scmp.ne.s32.totalorder %s163, %s164
      %p173 = scmp.eq.s32.totalorder %s27, 0
      %p174 = por %p172, %p173
      %p175 = scmp.ne.s32.totalorder %s163, %s164
      %p176 = scmp.eq.s32.totalorder %s28, 1
      %p177 = por %p175, %p176
      %p179 = scmp.ne.s32.totalorder %s164, %s178
      %p180 = scmp.eq.s32.totalorder %s28, 0
      %p181 = por %p179, %p180
      %s183 = sadd.s32 %s182, 1
      %p186 = scmp.eq.s32.totalorder %s22, 1
      %p187 = scmp.ne.s32.totalorder %s182, %s184
      %p188 = scmp.eq.s32.totalorder %s22, 0
      %p189 = por %p187, %p188
      %p190 = scmp.ne.s32.totalorder %s182, %s184
      %p191 = scmp.eq.s32.totalorder %s27, 1
      %p192 = por %p190, %p191
      %p193 = scmp.ne.s32.totalorder %s184, %s185
      %p194 = scmp.eq.s32.totalorder %s27, 0
      %p195 = por %p193, %p194
      %p196 = scmp.ne.s32.totalorder %s184, %s185
      %p197 = scmp.eq.s32.totalorder %s28, 1
      %p198 = por %p196, %p197
      %p200 = scmp.ne.s32.totalorder %s185, %s199
      %p201 = scmp.eq.s32.totalorder %s28, 0
      %p202 = por %p200, %p201
      %s204 = sadd.s32 %s203, 1
      %p207 = scmp.eq.s32.totalorder %s22, 1
      %p208 = scmp.ne.s32.totalorder %s203, %s205
      %p209 = scmp.eq.s32.totalorder %s22, 0
      %p210 = por %p208, %p209
      %p211 = scmp.ne.s32.totalorder %s203, %s205
      %p212 = scmp.eq.s32.totalorder %s27, 1
      %p213 = por %p211, %p212
      %p214 = scmp.ne.s32.totalorder %s205, %s206
      %p215 = scmp.eq.s32.totalorder %s27, 0
      %p216 = por %p214, %p215
      %p217 = scmp.ne.s32.totalorder %s205, %s206
      %p218 = scmp.eq.s32.totalorder %s28, 1
      %p219 = por %p217, %p218
      %p221 = scmp.ne.s32.totalorder %s206, %s220
      %p222 = scmp.eq.s32.totalorder %s28, 0
      %p223 = por %p221, %p222
      %s225 = sadd.s32 %s224, 1
      %p228 = scmp.eq.s32.totalorder %s22, 1
      %p229 = scmp.ne.s32.totalorder %s224, %s226
      %p230 = scmp.eq.s32.totalorder %s22, 0
      %p231 = por %p229, %p230
      %p232 = scmp.ne.s32.totalorder %s224, %s226
      %p233 = scmp.eq.s32.totalorder %s27, 1
      %p234 = por %p232, %p233
      %p235 = scmp.ne.s32.totalorder %s226, %s227
      %p236 = scmp.eq.s32.totalorder %s27, 0
      %p237 = por %p235, %p236
      %p238 = scmp.ne.s32.totalorder %s226, %s227
      %p239 = scmp.eq.s32.totalorder %s28, 1
      %p240 = por %p238, %p239
      %p242 = scmp.ne.s32.totalorder %s227, %s241
      %p243 = scmp.eq.s32.totalorder %s28, 0
      %p244 = por %p242, %p243
      %s246 = sadd.s32 %s245, 1
      %p249 = scmp.eq.s32.totalorder %s22, 1
      %p250 = scmp.ne.s32.totalorder %s245, %s247
      %p251 = scmp.eq.s32.totalorder %s22, 0
      %p252 = por %p250, %p251
      %p253 = scmp.ne.s32.totalorder %s245, %s247
      %p254 = scmp.eq.s32.totalorder %s27, 1
      %p255 = por %p253, %p254
      %p256 = scmp.ne.s32.totalorder %s247, %s248
      %p257 = scmp.eq.s32.totalorder %s27, 0
      %p258 = por %p256, %p257
      %p259 = scmp.ne.s32.totalorder %s247, %s248
      %p260 = scmp.eq.s32.totalorder %s28, 1
      %p261 = por %p259, %p260
      %p263 = scmp.ne.s32.totalorder %s248, %s262
      %p264 = scmp.eq.s32.totalorder %s28, 0
      %p265 = por %p263, %p264
      %s267 = sadd.s32 %s266, 1
      %p270 = scmp.eq.s32.totalorder %s22, 1
      %p271 = scmp.ne.s32.totalorder %s266, %s268
      %p272 = scmp.eq.s32.totalorder %s22, 0
      %p273 = por %p271, %p272
      %p274 = scmp.ne.s32.totalorder %s266, %s268
      %p275 = scmp.eq.s32.totalorder %s27, 1
      %p276 = por %p274, %p275
      %p277 = scmp.ne.s32.totalorder %s268, %s269
      %p278 = scmp.eq.s32.totalorder %s27, 0
      %p279 = por %p277, %p278
      %p280 = scmp.ne.s32.totalorder %s268, %s269
      %p281 = scmp.eq.s32.totalorder %s28, 1
      %p282 = por %p280, %p281
      %p284 = scmp.ne.s32.totalorder %s269, %s283
      %p285 = scmp.eq.s32.totalorder %s28, 0
      %p286 = por %p284, %p285
      %s288 = sadd.s32 %s287, 1
      %p291 = scmp.eq.s32.totalorder %s22, 1
      %p292 = scmp.ne.s32.totalorder %s287, %s289
      %p293 = scmp.eq.s32.totalorder %s22, 0
      %p294 = por %p292, %p293
      %p295 = scmp.ne.s32.totalorder %s287, %s289
      %p296 = scmp.eq.s32.totalorder %s27, 1
      %p297 = por %p295, %p296
      %p298 = scmp.ne.s32.totalorder %s289, %s290
      %p299 = scmp.eq.s32.totalorder %s27, 0
      %p300 = por %p298, %p299
      %p301 = scmp.ne.s32.totalorder %s289, %s290
      %p302 = scmp.eq.s32.totalorder %s28, 1
      %p303 = por %p301, %p302
      %p305 = scmp.ne.s32.totalorder %s290, %s304
      %p306 = scmp.eq.s32.totalorder %s28, 0
      %p307 = por %p305, %p306
      %s308 = ssub.s32 %s22, %s29
      %p309 = scmp.eq.s32.totalorder %s308, 0
      %s311 = sadd.s32 %s310, 1
      %s312 = scalar_select %p309, %s310, %s311
      %p315 = pneg %p309
      %p316 = scmp.eq.s32.totalorder %s22, 1
      %p317 = por %p315, %p316
      %p318 = scmp.ne.s32.totalorder %s310, %s313
      %p319 = scmp.eq.s32.totalorder %s22, 0
      %p320 = por %p318, %p319
      %p321 = scmp.ne.s32.totalorder %s310, %s313
      %p322 = scmp.eq.s32.totalorder %s27, 1
      %p323 = por %p321, %p322
      %p324 = scmp.ne.s32.totalorder %s313, %s314
      %p325 = scmp.eq.s32.totalorder %s27, 0
      %p326 = por %p324, %p325
      %p327 = scmp.ne.s32.totalorder %s313, %s314
      %p328 = scmp.eq.s32.totalorder %s28, 1
      %p329 = por %p327, %p328
      %p331 = scmp.ne.s32.totalorder %s314, %s330
      %p332 = scmp.eq.s32.totalorder %s28, 0
      %p333 = por %p331, %p332
      %p334 = scmp.le.s32.totalorder 1, %s22
      %p335 = scmp.lt.s32.totalorder %s22, 3
      %p336 = pnand %p334, %p335
      %p337 = pneg %p336
      // Predicated region
      $region9: #{conv_autoencoder_forward.1} parent=5 // pred_check
        _
      $region10: #{conv_autoencoder_forward.1} parent=5 // pred_check_branch
        %339 = sbr.rel (%p336) target = $region12
      $region11: #{conv_autoencoder_forward.1} parent=5 // pred_region
        %s340 = ssub.s32 %s22, 1
        // Predicated region
        $region13: #{conv_autoencoder_forward.1} parent=11 // pred_check
          %p341 = pneg %p69
        $region14: #{conv_autoencoder_forward.1} parent=11 // pred_check_branch
          %343 = sbr.rel (%p341) target = $region16
        $region15: #{conv_autoencoder_forward.1} parent=11 // pred_region
          _
        $region16: #{conv_autoencoder_forward.1} parent=11 // pred_fallthru
          _
        // Predicated region
        $region17: #{conv_autoencoder_forward.1} parent=11 // pred_check
          %p344 = pneg %p90
        $region18: #{conv_autoencoder_forward.1} parent=11 // pred_check_branch
          %346 = sbr.rel (%p344) target = $region20
        $region19: #{conv_autoencoder_forward.1} parent=11 // pred_region
          _
        $region20: #{conv_autoencoder_forward.1} parent=11 // pred_fallthru
          _
        // Predicated region
        $region21: #{conv_autoencoder_forward.1} parent=11 // pred_check
          %p347 = pneg %p111
        $region22: #{conv_autoencoder_forward.1} parent=11 // pred_check_branch
          %349 = sbr.rel (%p347) target = $region24
        $region23: #{conv_autoencoder_forward.1} parent=11 // pred_region
          _
        $region24: #{conv_autoencoder_forward.1} parent=11 // pred_fallthru
          _
        // Predicated region
        $region25: #{conv_autoencoder_forward.1} parent=11 // pred_check
          %p350 = pneg %p132
        $region26: #{conv_autoencoder_forward.1} parent=11 // pred_check_branch
          %352 = sbr.rel (%p350) target = $region28
        $region27: #{conv_autoencoder_forward.1} parent=11 // pred_region
          _
        $region28: #{conv_autoencoder_forward.1} parent=11 // pred_fallthru
          _
        // Predicated region
        $region29: #{conv_autoencoder_forward.1} parent=11 // pred_check
          %p353 = pneg %p153
        $region30: #{conv_autoencoder_forward.1} parent=11 // pred_check_branch
          %355 = sbr.rel (%p353) target = $region32
        $region31: #{conv_autoencoder_forward.1} parent=11 // pred_region
          _
        $region32: #{conv_autoencoder_forward.1} parent=11 // pred_fallthru
          _
        // Predicated region
        $region33: #{conv_autoencoder_forward.1} parent=11 // pred_check
          %p356 = pneg %p174
        $region34: #{conv_autoencoder_forward.1} parent=11 // pred_check_branch
          %358 = sbr.rel (%p356) target = $region36
        $region35: #{conv_autoencoder_forward.1} parent=11 // pred_region
          _
        $region36: #{conv_autoencoder_forward.1} parent=11 // pred_fallthru
          _
        // Predicated region
        $region37: #{conv_autoencoder_forward.1} parent=11 // pred_check
          %p359 = pneg %p195
        $region38: #{conv_autoencoder_forward.1} parent=11 // pred_check_branch
          %361 = sbr.rel (%p359) target = $region40
        $region39: #{conv_autoencoder_forward.1} parent=11 // pred_region
          _
        $region40: #{conv_autoencoder_forward.1} parent=11 // pred_fallthru
          _
        // Predicated region
        $region41: #{conv_autoencoder_forward.1} parent=11 // pred_check
          %p362 = pneg %p216
        $region42: #{conv_autoencoder_forward.1} parent=11 // pred_check_branch
          %364 = sbr.rel (%p362) target = $region44
        $region43: #{conv_autoencoder_forward.1} parent=11 // pred_region
          _
        $region44: #{conv_autoencoder_forward.1} parent=11 // pred_fallthru
          _
        // Predicated region
        $region45: #{conv_autoencoder_forward.1} parent=11 // pred_check
          %p365 = pneg %p237
        $region46: #{conv_autoencoder_forward.1} parent=11 // pred_check_branch
          %367 = sbr.rel (%p365) target = $region48
        $region47: #{conv_autoencoder_forward.1} parent=11 // pred_region
          %s369 = ssub.s32 4864, 4864
          %370 = vsyncadd [#allocation5], %s369
          %s371 = sshll.u32 [#allocation4], 4
          %s372 = int_to_ptr.vmem [resolvable:$true] %s371
          %377 = dma.hbm_to_vmem [thread:$0]  %s9, 4864, %s372, [#allocation5], 128, 128, 8
        $region48: #{conv_autoencoder_forward.1} parent=11 // pred_fallthru
          _
        // Predicated region
        $region49: #{conv_autoencoder_forward.1} parent=11 // pred_check
          %p378 = pneg %p258
        $region50: #{conv_autoencoder_forward.1} parent=11 // pred_check_branch
          %380 = sbr.rel (%p378) target = $region52
        $region51: #{conv_autoencoder_forward.1} parent=11 // pred_region
          _
        $region52: #{conv_autoencoder_forward.1} parent=11 // pred_fallthru
          _
        // Predicated region
        $region53: #{conv_autoencoder_forward.1} parent=11 // pred_check
          %p381 = pneg %p279
        $region54: #{conv_autoencoder_forward.1} parent=11 // pred_check_branch
          %383 = sbr.rel (%p381) target = $region56
        $region55: #{conv_autoencoder_forward.1} parent=11 // pred_region
          _
        $region56: #{conv_autoencoder_forward.1} parent=11 // pred_fallthru
          _
        // Predicated region
        $region57: #{conv_autoencoder_forward.1} parent=11 // pred_check
          %p384 = pneg %p300
        $region58: #{conv_autoencoder_forward.1} parent=11 // pred_check_branch
          %386 = sbr.rel (%p384) target = $region60
        $region59: #{conv_autoencoder_forward.1} parent=11 // pred_region
          _
        $region60: #{conv_autoencoder_forward.1} parent=11 // pred_fallthru
          _
      $region12: #{conv_autoencoder_forward.1} parent=5 // pred_fallthru
        _
      %p387 = scmp.lt.s32.totalorder %s22, 2
      // Predicated region
      $region61: #{conv_autoencoder_forward.1} parent=5 // pred_check
        %p388 = pneg %p387
      $region62: #{conv_autoencoder_forward.1} parent=5 // pred_check_branch
        %390 = sbr.rel (%p388) target = $region64
      $region63: #{conv_autoencoder_forward.1} parent=5 // pred_region
        // Predicated region
        $region65: #{conv_autoencoder_forward.1} parent=63 // pred_check
          %p391 = pneg %p42
        $region66: #{conv_autoencoder_forward.1} parent=63 // pred_check_branch
          %393 = sbr.rel (%p391) target = $region68
        $region67: #{conv_autoencoder_forward.1} parent=63 // pred_region
          %p394 = scmp.lt.s32.totalorder %s22, 1
          %s395 = scalar_select %p394, %s22, 1
          %s396 = smul.addr %s395, 4
          %s397 = scalar_lea.vmem %s0, %s396
        $region68: #{conv_autoencoder_forward.1} parent=63 // pred_fallthru
          _
      $region64: #{conv_autoencoder_forward.1} parent=5 // pred_fallthru
        _
      %p398 = scmp.le.s32.totalorder 1, %s22
      %p399 = scmp.lt.s32.totalorder %s22, 3
      %p400 = pnand %p398, %p399
      %p401 = pneg %p400
      // Predicated region
      $region69: #{conv_autoencoder_forward.1} parent=5 // pred_check
        _
      $region70: #{conv_autoencoder_forward.1} parent=5 // pred_check_branch
        %403 = sbr.rel (%p400) target = $region72
      $region71: #{conv_autoencoder_forward.1} parent=5 // pred_region
        %s404 = ssub.s32 %s22, 1
        // Predicated region
        $region73: #{conv_autoencoder_forward.1} parent=71 // pred_check
          %p405 = pneg %p237
        $region74: #{conv_autoencoder_forward.1} parent=71 // pred_check_branch
          %407 = sbr.rel (%p405) target = $region76
        $region75: #{conv_autoencoder_forward.1} parent=71 // pred_region
          %408 = dma.done [#allocation5], 4864
        $region76: #{conv_autoencoder_forward.1} parent=71 // pred_fallthru
          _
        %p409 = scmp.lt.s32.totalorder %s27, 1
        %s410 = scalar_select %p409, %s27, 1
        %s411 = smul.addr %s410, 4
        %s412 = scalar_lea.vmem %s0, %s411
        %p413 = pneg %p48
        %p414 = pneg %p45
        %p415 = pneg %p69
        %p416 = pneg %p66
        %p417 = pneg %p90
        %p418 = pneg %p87
        %p419 = pneg %p111
        %p420 = pneg %p108
        %p421 = pneg %p132
        %p422 = pneg %p129
        %p423 = pneg %p153
        %p424 = pneg %p150
        %p425 = pneg %p174
        %p426 = pneg %p171
        %p427 = pneg %p195
        %p428 = pneg %p192
        %p429 = pneg %p216
        %p430 = pneg %p213
        %p431 = pneg %p237
        %p432 = pneg %p234
        %p433 = pneg %p258
        %p434 = pneg %p255
        %p435 = pneg %p279
        %p436 = pneg %p276
        %p437 = pneg %p300
        %p438 = pneg %p297
        %p439 = pneg %p326
        %p440 = pneg %p323
        %p441 = scmp.lt.s32.totalorder %s27, 1
        %s442 = scalar_select %p441, %s27, 1
        %s443 = smul.addr %s442, 2
        %s444 = scalar_lea.vmem %s13, %s443
        %p445 = scmp.lt.s32.totalorder %s27, 1
        %s446 = scalar_select %p445, %s27, 1
        %s447 = smul.addr %s446, 4
        %s448 = scalar_lea.vmem %s0, %s447
        %p449 = scmp.lt.s32.totalorder %s27, 1
        %s450 = scalar_select %p449, %s27, 1
        %s451 = smul.addr %s450, 2
        %s452 = scalar_lea.vmem %s13, %s451
        %v454 = vld [vmem:[%s448] sm:$0xf]
        %v456 = vlaneseq
        %v457 = vshrl.u32 %v456, 7
        %v458 = vsub.s32 0, %v457
        %v459 = vrot.slane %v454, %v458
        %v460 = vlaneseq
        %v461 = vshrl.u32 %v460, 7
        %v462 = vsub.s32 1, %v461
        %v463 = vrot.slane %v454, %v462
        %v464 = vlaneseq
        %v465 = vshrl.u32 %v464, 7
        %v466 = vsub.s32 2, %v465
        %v467 = vrot.slane %v454, %v466
        %471 = vrot.lane.b32.xlu0 %v459, 127
        %v472 = vpop.permute.xlu0 %471
        %473 = vrot.lane.b32.xlu0 %v463, 127
        %v474 = vpop.permute.xlu0 %473
        %475 = vrot.lane.b32.xlu0 %v467, 127
        %v476 = vpop.permute.xlu0 %475
        %vm477 = vcmask 1039360
        %v478 = vsel %vm477, %v472, %v474
        %v479 = vsel %vm477, %v474, %v476
        %483 = vrot.lane.b32.xlu0 %v459, 126
        %v484 = vpop.permute.xlu0 %483
        %485 = vrot.lane.b32.xlu0 %v463, 126
        %v486 = vpop.permute.xlu0 %485
        %487 = vrot.lane.b32.xlu0 %v467, 126
        %v488 = vpop.permute.xlu0 %487
        %vm489 = vcmask 1031168
        %v490 = vsel %vm489, %v484, %v486
        %v491 = vsel %vm489, %v486, %v488
        %495 = vrot.lane.b32.xlu0 %v459, 125
        %v496 = vpop.permute.xlu0 %495
        %497 = vrot.lane.b32.xlu0 %v463, 125
        %v498 = vpop.permute.xlu0 %497
        %499 = vrot.lane.b32.xlu0 %v467, 125
        %v500 = vpop.permute.xlu0 %499
        %vm501 = vcmask 1022976
        %v502 = vsel %vm501, %v496, %v498
        %v503 = vsel %vm501, %v498, %v500
        %507 = vrot.lane.b32.xlu0 %v459, 124
        %v508 = vpop.permute.xlu0 %507
        %509 = vrot.lane.b32.xlu0 %v463, 124
        %v510 = vpop.permute.xlu0 %509
        %511 = vrot.lane.b32.xlu0 %v467, 124
        %v512 = vpop.permute.xlu0 %511
        %vm513 = vcmask 1014784
        %v514 = vsel %vm513, %v508, %v510
        %v515 = vsel %vm513, %v510, %v512
        %519 = vrot.lane.b32.xlu0 %v459, 108
        %v520 = vpop.permute.xlu0 %519
        %521 = vrot.lane.b32.xlu0 %v463, 108
        %v522 = vpop.permute.xlu0 %521
        %523 = vrot.lane.b32.xlu0 %v467, 108
        %v524 = vpop.permute.xlu0 %523
        %vm525 = vcmask 883712
        %v526 = vsel %vm525, %v520, %v522
        %v527 = vsel %vm525, %v522, %v524
        %531 = vrot.lane.b32.xlu0 %v459, 107
        %v532 = vpop.permute.xlu0 %531
        %533 = vrot.lane.b32.xlu0 %v463, 107
        %v534 = vpop.permute.xlu0 %533
        %535 = vrot.lane.b32.xlu0 %v467, 107
        %v536 = vpop.permute.xlu0 %535
        %vm537 = vcmask 875520
        %v538 = vsel %vm537, %v532, %v534
        %v539 = vsel %vm537, %v534, %v536
        %543 = vrot.lane.b32.xlu0 %v459, 106
        %v544 = vpop.permute.xlu0 %543
        %545 = vrot.lane.b32.xlu0 %v463, 106
        %v546 = vpop.permute.xlu0 %545
        %547 = vrot.lane.b32.xlu0 %v467, 106
        %v548 = vpop.permute.xlu0 %547
        %vm549 = vcmask 867328
        %v550 = vsel %vm549, %v544, %v546
        %v551 = vsel %vm549, %v546, %v548
        %555 = vrot.lane.b32.xlu0 %v459, 105
        %v556 = vpop.permute.xlu0 %555
        %557 = vrot.lane.b32.xlu0 %v463, 105
        %v558 = vpop.permute.xlu0 %557
        %559 = vrot.lane.b32.xlu0 %v467, 105
        %v560 = vpop.permute.xlu0 %559
        %vm561 = vcmask 859136
        %v562 = vsel %vm561, %v556, %v558
        %v563 = vsel %vm561, %v558, %v560
        %567 = vrot.lane.b32.xlu0 %v459, 104
        %v568 = vpop.permute.xlu0 %567
        %569 = vrot.lane.b32.xlu0 %v463, 104
        %v570 = vpop.permute.xlu0 %569
        %571 = vrot.lane.b32.xlu0 %v467, 104
        %v572 = vpop.permute.xlu0 %571
        %vm573 = vcmask 850944
        %v574 = vsel %vm573, %v568, %v570
        %v575 = vsel %vm573, %v570, %v572
        %579 = vrot.lane.b32.xlu0 %v459, 88
        %v580 = vpop.permute.xlu0 %579
        %581 = vrot.lane.b32.xlu0 %v463, 88
        %v582 = vpop.permute.xlu0 %581
        %583 = vrot.lane.b32.xlu0 %v467, 88
        %v584 = vpop.permute.xlu0 %583
        %vm585 = vcmask 719872
        %v586 = vsel %vm585, %v580, %v582
        %v587 = vsel %vm585, %v582, %v584
        %591 = vrot.lane.b32.xlu0 %v459, 87
        %v592 = vpop.permute.xlu0 %591
        %593 = vrot.lane.b32.xlu0 %v463, 87
        %v594 = vpop.permute.xlu0 %593
        %595 = vrot.lane.b32.xlu0 %v467, 87
        %v596 = vpop.permute.xlu0 %595
        %vm597 = vcmask 711680
        %v598 = vsel %vm597, %v592, %v594
        %v599 = vsel %vm597, %v594, %v596
        %603 = vrot.lane.b32.xlu0 %v459, 86
        %v604 = vpop.permute.xlu0 %603
        %605 = vrot.lane.b32.xlu0 %v463, 86
        %v606 = vpop.permute.xlu0 %605
        %607 = vrot.lane.b32.xlu0 %v467, 86
        %v608 = vpop.permute.xlu0 %607
        %vm609 = vcmask 703488
        %v610 = vsel %vm609, %v604, %v606
        %v611 = vsel %vm609, %v606, %v608
        %615 = vrot.lane.b32.xlu0 %v459, 85
        %v616 = vpop.permute.xlu0 %615
        %617 = vrot.lane.b32.xlu0 %v463, 85
        %v618 = vpop.permute.xlu0 %617
        %619 = vrot.lane.b32.xlu0 %v467, 85
        %v620 = vpop.permute.xlu0 %619
        %vm621 = vcmask 695296
        %v622 = vsel %vm621, %v616, %v618
        %v623 = vsel %vm621, %v618, %v620
        %627 = vrot.lane.b32.xlu0 %v459, 84
        %v628 = vpop.permute.xlu0 %627
        %629 = vrot.lane.b32.xlu0 %v463, 84
        %v630 = vpop.permute.xlu0 %629
        %631 = vrot.lane.b32.xlu0 %v467, 84
        %v632 = vpop.permute.xlu0 %631
        %vm633 = vcmask 687104
        %v634 = vsel %vm633, %v628, %v630
        %v635 = vsel %vm633, %v630, %v632
        %639 = vrot.lane.b32.xlu0 %v459, 68
        %v640 = vpop.permute.xlu0 %639
        %641 = vrot.lane.b32.xlu0 %v463, 68
        %v642 = vpop.permute.xlu0 %641
        %643 = vrot.lane.b32.xlu0 %v467, 68
        %v644 = vpop.permute.xlu0 %643
        %vm645 = vcmask 556032
        %v646 = vsel %vm645, %v640, %v642
        %v647 = vsel %vm645, %v642, %v644
        %vm651 = vcmask 1040384
        %v652 = vsel %vm651, %v459, %v478
        %v653 = vsel %vm651, %v463, %v479
        %v654 = vsel %vm651, %v467, %v476
        %vm655 = vcmask 1041408
        %v656 = vsel %vm655, %v652, %v490
        %v657 = vsel %vm655, %v653, %v491
        %v658 = vsel %vm655, %v654, %v488
        %vm659 = vcmask 1042432
        %v660 = vsel %vm659, %v656, %v502
        %v661 = vsel %vm659, %v657, %v503
        %v662 = vsel %vm659, %v658, %v500
        %vm663 = vcmask 1043456
        %v664 = vsel %vm663, %v660, %v514
        %v665 = vsel %vm663, %v661, %v515
        %v666 = vsel %vm663, %v662, %v512
        %vm667 = vcmask 1044480
        %v668 = vsel %vm667, %v664, %v526
        %v669 = vsel %vm667, %v665, %v527
        %v670 = vsel %vm667, %v666, %v524
        %vm671 = vcmask 1045504
        %v672 = vsel %vm671, %v668, %v538
        %v673 = vsel %vm671, %v669, %v539
        %v674 = vsel %vm671, %v670, %v536
        %vm675 = vcmask 1046528
        %v676 = vsel %vm675, %v672, %v550
        %v677 = vsel %vm675, %v673, %v551
        %v678 = vsel %vm675, %v674, %v548
        %v679 = vsel %vm651, %v562, %v574
        %v680 = vsel %vm651, %v563, %v575
        %v681 = vsel %vm651, %v560, %v572
        %v682 = vsel %vm655, %v679, %v586
        %v683 = vsel %vm655, %v680, %v587
        %v684 = vsel %vm655, %v681, %v584
        %v685 = vsel %vm659, %v682, %v598
        %v686 = vsel %vm659, %v683, %v599
        %v687 = vsel %vm659, %v684, %v596
        %v688 = vsel %vm663, %v685, %v610
        %v689 = vsel %vm663, %v686, %v611
        %v690 = vsel %vm663, %v687, %v608
        %v691 = vsel %vm667, %v688, %v622
        %v692 = vsel %vm667, %v689, %v623
        %v693 = vsel %vm667, %v690, %v620
        %v694 = vsel %vm671, %v691, %v634
        %v695 = vsel %vm671, %v692, %v635
        %v696 = vsel %vm671, %v693, %v632
        %v697 = vsel %vm675, %v694, %v646
        %v698 = vsel %vm675, %v695, %v647
        %v699 = vsel %vm675, %v696, %v644
        %v700 = vlaneseq
        %v701 = vshrl.u32 %v700, 7
        %v702 = vsub.s32 3, %v701
        %v703 = vrot.slane %v454, %v702
        %704 = vrot.lane.b32.xlu0 %v459, 109
        %v705 = vpop.permute.xlu0 %704
        %706 = vrot.lane.b32.xlu0 %v463, 109
        %v707 = vpop.permute.xlu0 %706
        %708 = vrot.lane.b32.xlu0 %v467, 109
        %v709 = vpop.permute.xlu0 %708
        %710 = vrot.lane.b32.xlu0 %v703, 109
        %v711 = vpop.permute.xlu0 %710
        %vm712 = vcmask 891904
        %v713 = vsel %vm712, %v705, %v707
        %v714 = vsel %vm712, %v707, %v709
        %v715 = vsel %vm712, %v709, %v711
        %719 = vrot.lane.b32.xlu0 %v703, 108
        %v720 = vpop.permute.xlu0 %719
        %v721 = vsel %vm525, %v524, %v720
        %723 = vrot.lane.b32.xlu0 %v703, 107
        %v724 = vpop.permute.xlu0 %723
        %v725 = vsel %vm537, %v536, %v724
        %727 = vrot.lane.b32.xlu0 %v703, 106
        %v728 = vpop.permute.xlu0 %727
        %v729 = vsel %vm549, %v548, %v728
        %731 = vrot.lane.b32.xlu0 %v703, 105
        %v732 = vpop.permute.xlu0 %731
        %v733 = vsel %vm561, %v560, %v732
        %v734 = vsel %vm663, %v660, %v713
        %v735 = vsel %vm663, %v661, %v714
        %v736 = vsel %vm663, %v662, %v715
        %v737 = vsel %vm667, %v734, %v526
        %v738 = vsel %vm667, %v735, %v527
        %v739 = vsel %vm667, %v736, %v721
        %v740 = vsel %vm671, %v737, %v538
        %v741 = vsel %vm671, %v738, %v539
        %v742 = vsel %vm671, %v739, %v725
        %v743 = vsel %vm675, %v740, %v550
        %v744 = vsel %vm675, %v741, %v551
        %v745 = vsel %vm675, %v742, %v729
        %749 = vrot.lane.b32.xlu0 %v743, 67
        %v750 = vpop.permute.xlu0 %749
        %751 = vrot.lane.b32.xlu0 %v744, 67
        %v752 = vpop.permute.xlu0 %751
        %753 = vrot.lane.b32.xlu0 %v745, 67
        %v754 = vpop.permute.xlu0 %753
        %755 = vrot.lane.b32.xlu0 %v562, 67
        %v756 = vpop.permute.xlu0 %755
        %757 = vrot.lane.b32.xlu0 %v563, 67
        %v758 = vpop.permute.xlu0 %757
        %759 = vrot.lane.b32.xlu0 %v733, 67
        %v760 = vpop.permute.xlu0 %759
        %vm761 = vcmask 547840
        %v762 = vsel %vm761, %v750, %v752
        %v763 = vsel %vm761, %v752, %v754
        %v764 = vsel %vm761, %v756, %v758
        %v765 = vsel %vm761, %v758, %v760
        %v772 = vpack.c.bf16 %v697, %v676
        %v773 = vpack.c.bf16 %v698, %v677
        %v774 = vpack.c.bf16 %v699, %v678
        %v775 = vpack.c.bf16 %v764, %v762
        %v776 = vpack.c.bf16 %v765, %v763
        %v777 = vpack.c.bf16 %v760, %v754
        %v778 = vld [vmem:[%s1] sm:$0xf]
        %v779 = vld [vmem:[%s1 + $0x4] sm:$0xf]
        %v780 = vld [vmem:[%s2] sm:$0xff]
        %v781 = vld [vmem:[%s2 + $0x8] sm:$0xff]
        %783 = vset.pattern.permute.xlu0 0
        %784 = vperm.xlu0 %783, %v780
        %v785 = vpop.permute.xlu0 %784
        %788 = vset.pattern.permute.xlu0 0
        %789 = vperm.xlu0 %788, %v781
        %v790 = vpop.permute.xlu0 %789
        %v794 = vunpack.c.l.b16 %v778
        %v795 = vunpack.c.l.b16 %v779
        %v796 = vpack.c.b16 %v795, %v794
        %vm797 = vcmask 203776
        %v799 = vsel %vm797, %v796, 0
        %v801 = vsel %vm663, 4294967295, 65535
        %v802 = vsel %vm667, %v801, 0
        %v804 = vand.u32 %v775, %v802
        %v807 = vand.u32 %v776, %v802
        %v810 = vand.u32 %v777, %v802
        %812 = vmatprep.subr.bf16.mxu0 %v773
        %813 = vmatpush1.bf16.msra.mxu0 %v772
        %814 = vmatprep.subr.bf16.mxu0 %v807
        %815 = vmatpush1.bf16.msra.mxu0 %v804
        %816 = vmatprep.subr.bf16.mxu0 0
        %817 = vmatpush1.bf16.msra.mxu0 0
        %818 = vmatprep.subr.bf16.mxu0 0
        %819 = vmatpush1.bf16.msra.mxu0 0
        %820 = vmatprep.subr.bf16.mxu0 0
        %821 = vmatpush1.bf16.msra.mxu0 0
        %822 = vmatprep.subr.bf16.mxu0 0
        %823 = vmatpush1.bf16.msra.mxu0 0
        %824 = vmatprep.subr.bf16.mxu0 0
        %825 = vmatpush1.bf16.msra.mxu0 0
        %826 = vmatprep.subr.bf16.mxu0 0
        %827 = vmatpush1.bf16.msra.mxu0 0
        %828 = vmatprep.subr.bf16.mxu0 0
        %829 = vmatpush1.bf16.msra.mxu0 0
        %830 = vmatprep.subr.bf16.mxu0 0
        %831 = vmatpush1.bf16.msra.mxu0 0
        %832 = vmatprep.subr.bf16.mxu0 0
        %833 = vmatpush1.bf16.msra.mxu0 0
        %834 = vmatprep.subr.bf16.mxu0 0
        %835 = vmatpush1.bf16.msra.mxu0 0
        %836 = vmatprep.subr.bf16.mxu0 0
        %837 = vmatpush1.bf16.msra.mxu0 0
        %838 = vmatprep.subr.bf16.mxu0 0
        %839 = vmatpush1.bf16.msra.mxu0 0
        %840 = vmatprep.subr.bf16.mxu0 0
        %841 = vmatpush1.bf16.msra.mxu0 0
        %842 = vmatprep.subr.bf16.mxu0 0
        %843 = vmatpush1.bf16.msra.mxu0 0
        %844 = vmatprep.mubr.bf16.mxu0 0
        %845 = vmatmul.mubr.bf16.gmra.mrb[0].mxu0 %v799
        %v846 = vpop.f32.mrb[0].mxu0
        %v847 = vadd.f32 %v785, %v846
        %v848 = vpop.f32.mrb[0].mxu0
        %v849 = vadd.f32 %v785, %v848
        %v850 = vpop.f32.mrb[0].mxu0
        %v851 = vadd.f32 %v790, %v850
        %v852 = vpop.f32.mrb[0].mxu0
        %v853 = vadd.f32 %v790, %v852
        %854 = vdwg.mxu0
        %855 = vmatprep.subr.bf16.mxu0 0
        %856 = vmatpush1.bf16.msra.mxu0 %v774
        %857 = vmatprep.subr.bf16.mxu0 0
        %858 = vmatpush1.bf16.msra.mxu0 %v810
        %859 = vmatprep.subr.bf16.mxu0 0
        %860 = vmatpush1.bf16.msra.mxu0 0
        %861 = vmatprep.subr.bf16.mxu0 0
        %862 = vmatpush1.bf16.msra.mxu0 0
        %863 = vmatprep.subr.bf16.mxu0 0
        %864 = vmatpush1.bf16.msra.mxu0 0
        %865 = vmatprep.subr.bf16.mxu0 0
        %866 = vmatpush1.bf16.msra.mxu0 0
        %867 = vmatprep.subr.bf16.mxu0 0
        %868 = vmatpush1.bf16.msra.mxu0 0
        %869 = vmatprep.subr.bf16.mxu0 0
        %870 = vmatpush1.bf16.msra.mxu0 0
        %871 = vmatprep.subr.bf16.mxu0 0
        %872 = vmatpush1.bf16.msra.mxu0 0
        %873 = vmatprep.subr.bf16.mxu0 0
        %874 = vmatpush1.bf16.msra.mxu0 0
        %875 = vmatprep.subr.bf16.mxu0 0
        %876 = vmatpush1.bf16.msra.mxu0 0
        %877 = vmatprep.subr.bf16.mxu0 0
        %878 = vmatpush1.bf16.msra.mxu0 0
        %879 = vmatprep.subr.bf16.mxu0 0
        %880 = vmatpush1.bf16.msra.mxu0 0
        %881 = vmatprep.subr.bf16.mxu0 0
        %882 = vmatpush1.bf16.msra.mxu0 0
        %883 = vmatprep.subr.bf16.mxu0 0
        %884 = vmatpush1.bf16.msra.mxu0 0
        %885 = vmatprep.subr.bf16.mxu0 0
        %886 = vmatpush1.bf16.msra.mxu0 0
        %887 = vmatprep.mubr.bf16.mxu0 0
        %888 = vmatmul.mubr.bf16.gmra.mrb[0].mxu0 %v799
        %v889 = vpop.f32.mrb[0].mxu0
        %v890 = vadd.f32 %v785, %v889
        %v891 = vpop.f32.mrb[0].mxu0
        %v892 = vpop.f32.mrb[0].mxu0
        %v893 = vadd.f32 %v790, %v892
        %v894 = vpop.f32.mrb[0].mxu0
        %895 = vdwg.mxu0
        %v896 = vmax.f32 %v847, 0.0
        %v897 = vmax.f32 %v849, 0.0
        %v898 = vmax.f32 %v890, 0.0
        %v899 = vmax.f32 %v851, 0.0
        %v900 = vmax.f32 %v853, 0.0
        %v901 = vmax.f32 %v893, 0.0
        %908 = vrot.lane.b32.xlu0 %v896, 127
        %v909 = vpop.permute.xlu0 %908
        %910 = vrot.lane.b32.xlu0 %v897, 127
        %v911 = vpop.permute.xlu0 %910
        %912 = vrot.lane.b32.xlu0 %v898, 127
        %v913 = vpop.permute.xlu0 %912
        %914 = vrot.lane.b32.xlu0 %v899, 127
        %v915 = vpop.permute.xlu0 %914
        %916 = vrot.lane.b32.xlu0 %v900, 127
        %v917 = vpop.permute.xlu0 %916
        %918 = vrot.lane.b32.xlu0 %v901, 127
        %v919 = vpop.permute.xlu0 %918
        %v920 = vsel %vm477, %v909, %v911
        %v921 = vsel %vm477, %v911, %v913
        %v922 = vsel %vm477, %v915, %v917
        %v923 = vsel %vm477, %v917, %v919
        %v930 = vmax.f32 %v896, %v920
        %v931 = vmax.f32 %v897, %v921
        %v932 = vmax.f32 %v898, %v913
        %v933 = vmax.f32 %v899, %v922
        %v934 = vmax.f32 %v900, %v923
        %v935 = vmax.f32 %v901, %v919
        %942 = vrot.lane.b32.xlu0 %v930, 108
        %v943 = vpop.permute.xlu0 %942
        %944 = vrot.lane.b32.xlu0 %v931, 108
        %v945 = vpop.permute.xlu0 %944
        %946 = vrot.lane.b32.xlu0 %v932, 108
        %v947 = vpop.permute.xlu0 %946
        %948 = vrot.lane.b32.xlu0 %v933, 108
        %v949 = vpop.permute.xlu0 %948
        %950 = vrot.lane.b32.xlu0 %v934, 108
        %v951 = vpop.permute.xlu0 %950
        %952 = vrot.lane.b32.xlu0 %v935, 108
        %v953 = vpop.permute.xlu0 %952
        %v954 = vsel %vm525, %v943, %v945
        %v955 = vsel %vm525, %v945, %v947
        %v956 = vsel %vm525, %v949, %v951
        %v957 = vsel %vm525, %v951, %v953
        %v964 = vmax.f32 %v930, %v954
        %v965 = vmax.f32 %v931, %v955
        %v966 = vmax.f32 %v932, %v947
        %v967 = vmax.f32 %v933, %v956
        %v968 = vmax.f32 %v934, %v957
        %v969 = vmax.f32 %v935, %v953
        %v970 = vpack.c.bf16 %v967, %v964
        %v971 = vpack.c.bf16 %v968, %v965
        %v972 = vpack.c.bf16 %v969, %v966
        %v973 = vld [vmem:[#allocation4] sm:$0xff]
        %v974 = vld [vmem:[#allocation4 + $0x8] sm:$0xff]
        %v975 = vld [vmem:[#allocation4 + $0x10] sm:$0xff]
        %v976 = vld [vmem:[#allocation4 + $0x18] sm:$0xff]
        %v977 = vld [vmem:[#allocation4 + $0x20] sm:$0xff]
        %v978 = vld [vmem:[#allocation4 + $0x28] sm:$0xff]
        %v979 = vld [vmem:[#allocation4 + $0x30] sm:$0xff]
        %v980 = vld [vmem:[#allocation4 + $0x38] sm:$0xff]
        %v981 = vld [vmem:[#allocation4 + $0x40] sm:$0xff]
        %v982 = vld [vmem:[#allocation4 + $0x48] sm:$0xff]
        %v983 = vld [vmem:[#allocation4 + $0x50] sm:$0xff]
        %v984 = vld [vmem:[#allocation4 + $0x58] sm:$0xff]
        %v985 = vld [vmem:[#allocation4 + $0x60] sm:$0xff]
        %v986 = vld [vmem:[#allocation4 + $0x68] sm:$0xff]
        %v987 = vld [vmem:[#allocation4 + $0x70] sm:$0xff]
        %v988 = vld [vmem:[#allocation4 + $0x78] sm:$0xff]
        %v989 = vld [vmem:[#allocation4 + $0x80] sm:$0xff]
        %v990 = vld [vmem:[#allocation4 + $0x88] sm:$0xff]
        %v991 = vld [vmem:[#allocation4 + $0x90] sm:$0xff]
        %v992 = vld [vmem:[#allocation4 + $0x98] sm:$0xff]
        %v993 = vld [vmem:[#allocation4 + $0xa0] sm:$0xff]
        %v994 = vld [vmem:[#allocation4 + $0xa8] sm:$0xff]
        %v995 = vld [vmem:[#allocation4 + $0xb0] sm:$0xff]
        %v996 = vld [vmem:[#allocation4 + $0xb8] sm:$0xff]
        %v997 = vld [vmem:[#allocation4 + $0xc0] sm:$0xff]
        %v998 = vld [vmem:[#allocation4 + $0xc8] sm:$0xff]
        %v999 = vld [vmem:[#allocation4 + $0xd0] sm:$0xff]
        %v1000 = vld [vmem:[#allocation4 + $0xd8] sm:$0xff]
        %v1001 = vld [vmem:[#allocation4 + $0xe0] sm:$0xff]
        %v1002 = vld [vmem:[#allocation4 + $0xe8] sm:$0xff]
        %v1003 = vld [vmem:[#allocation4 + $0xf0] sm:$0xff]
        %v1004 = vld [vmem:[#allocation4 + $0xf8] sm:$0xff]
        %v1005 = vld [vmem:[#allocation4 + $0x100] sm:$0xff]
        %v1006 = vld [vmem:[#allocation4 + $0x108] sm:$0xff]
        %v1007 = vld [vmem:[#allocation4 + $0x110] sm:$0xff]
        %v1008 = vld [vmem:[#allocation4 + $0x118] sm:$0xff]
        %v1009 = vld [vmem:[#allocation4 + $0x120] sm:$0xff]
        %v1010 = vld [vmem:[#allocation4 + $0x128] sm:$0x33]
        %v1049 = vunpack.c.l.b16 %v973
        %v1050 = vunpack.c.h.b16 %v973
        %v1051 = vunpack.c.l.b16 %v974
        %v1052 = vunpack.c.h.b16 %v974
        %v1053 = vunpack.c.l.b16 %v975
        %v1054 = vunpack.c.h.b16 %v975
        %v1055 = vunpack.c.l.b16 %v976
        %v1056 = vunpack.c.h.b16 %v976
        %v1057 = vunpack.c.l.b16 %v977
        %v1058 = vunpack.c.h.b16 %v977
        %v1059 = vunpack.c.l.b16 %v978
        %v1060 = vunpack.c.h.b16 %v978
        %v1061 = vunpack.c.l.b16 %v979
        %v1062 = vunpack.c.h.b16 %v979
        %v1063 = vunpack.c.l.b16 %v980
        %v1064 = vunpack.c.h.b16 %v980
        %v1065 = vunpack.c.l.b16 %v981
        %v1066 = vunpack.c.h.b16 %v981
        %v1067 = vunpack.c.l.b16 %v982
        %v1068 = vunpack.c.h.b16 %v982
        %v1069 = vunpack.c.l.b16 %v983
        %v1070 = vunpack.c.h.b16 %v983
        %v1071 = vunpack.c.l.b16 %v984
        %v1072 = vunpack.c.h.b16 %v984
        %v1073 = vunpack.c.l.b16 %v985
        %v1074 = vunpack.c.h.b16 %v985
        %v1075 = vunpack.c.l.b16 %v986
        %v1076 = vunpack.c.h.b16 %v986
        %v1077 = vunpack.c.l.b16 %v987
        %v1078 = vunpack.c.h.b16 %v987
        %v1079 = vunpack.c.l.b16 %v988
        %v1080 = vunpack.c.h.b16 %v988
        %v1081 = vunpack.c.l.b16 %v989
        %v1082 = vunpack.c.h.b16 %v989
        %v1083 = vunpack.c.l.b16 %v990
        %v1084 = vunpack.c.h.b16 %v990
        %v1085 = vunpack.c.l.b16 %v991
        %v1086 = vunpack.c.h.b16 %v991
        %v1087 = vunpack.c.l.b16 %v992
        %v1088 = vunpack.c.h.b16 %v992
        %v1089 = vunpack.c.l.b16 %v993
        %v1090 = vunpack.c.h.b16 %v993
        %v1091 = vunpack.c.l.b16 %v994
        %v1092 = vunpack.c.h.b16 %v994
        %v1093 = vunpack.c.l.b16 %v995
        %v1094 = vunpack.c.h.b16 %v995
        %v1095 = vunpack.c.l.b16 %v996
        %v1096 = vunpack.c.h.b16 %v996
        %v1097 = vunpack.c.l.b16 %v997
        %v1098 = vunpack.c.h.b16 %v997
        %v1099 = vunpack.c.l.b16 %v998
        %v1100 = vunpack.c.h.b16 %v998
        %v1101 = vunpack.c.l.b16 %v999
        %v1102 = vunpack.c.h.b16 %v999
        %v1103 = vunpack.c.l.b16 %v1000
        %v1104 = vunpack.c.h.b16 %v1000
        %v1105 = vunpack.c.l.b16 %v1001
        %v1106 = vunpack.c.h.b16 %v1001
        %v1107 = vunpack.c.l.b16 %v1002
        %v1108 = vunpack.c.h.b16 %v1002
        %v1109 = vunpack.c.l.b16 %v1003
        %v1110 = vunpack.c.h.b16 %v1003
        %v1111 = vunpack.c.l.b16 %v1004
        %v1112 = vunpack.c.h.b16 %v1004
        %v1113 = vunpack.c.l.b16 %v1005
        %v1114 = vunpack.c.h.b16 %v1005
        %v1115 = vunpack.c.l.b16 %v1006
        %v1116 = vunpack.c.h.b16 %v1006
        %v1117 = vunpack.c.l.b16 %v1007
        %v1118 = vunpack.c.h.b16 %v1007
        %v1119 = vunpack.c.l.b16 %v1008
        %v1120 = vunpack.c.h.b16 %v1008
        %v1121 = vunpack.c.l.b16 %v1009
        %v1122 = vunpack.c.h.b16 %v1009
        %v1123 = vunpack.c.l.b16 %v1010
        %v1124 = vunpack.c.h.b16 %v1010
        %v1125 = vpack.c.b16 %v1051, %v1049
        %v1126 = vpack.c.b16 %v1052, %v1050
        %v1127 = vpack.c.b16 %v1055, %v1053
        %v1128 = vpack.c.b16 %v1056, %v1054
        %v1129 = vpack.c.b16 %v1059, %v1057
        %v1130 = vpack.c.b16 %v1060, %v1058
        %v1131 = vpack.c.b16 %v1063, %v1061
        %v1132 = vpack.c.b16 %v1064, %v1062
        %v1133 = vpack.c.b16 %v1067, %v1065
        %v1134 = vpack.c.b16 %v1068, %v1066
        %v1135 = vpack.c.b16 %v1071, %v1069
        %v1136 = vpack.c.b16 %v1072, %v1070
        %v1137 = vpack.c.b16 %v1075, %v1073
        %v1138 = vpack.c.b16 %v1076, %v1074
        %v1139 = vpack.c.b16 %v1079, %v1077
        %v1140 = vpack.c.b16 %v1080, %v1078
        %v1141 = vpack.c.b16 %v1083, %v1081
        %v1142 = vpack.c.b16 %v1084, %v1082
        %v1143 = vpack.c.b16 %v1087, %v1085
        %v1144 = vpack.c.b16 %v1088, %v1086
        %v1145 = vpack.c.b16 %v1091, %v1089
        %v1146 = vpack.c.b16 %v1092, %v1090
        %v1147 = vpack.c.b16 %v1095, %v1093
        %v1148 = vpack.c.b16 %v1096, %v1094
        %v1149 = vpack.c.b16 %v1099, %v1097
        %v1150 = vpack.c.b16 %v1100, %v1098
        %v1151 = vpack.c.b16 %v1103, %v1101
        %v1152 = vpack.c.b16 %v1104, %v1102
        %v1153 = vpack.c.b16 %v1107, %v1105
        %v1154 = vpack.c.b16 %v1108, %v1106
        %v1155 = vpack.c.b16 %v1111, %v1109
        %v1156 = vpack.c.b16 %v1112, %v1110
        %v1157 = vpack.c.b16 %v1115, %v1113
        %v1158 = vpack.c.b16 %v1116, %v1114
        %v1159 = vpack.c.b16 %v1119, %v1117
        %v1160 = vpack.c.b16 %v1120, %v1118
        %v1161 = vpack.c.b16 %v1123, %v1121
        %v1162 = vpack.c.b16 %v1124, %v1122
        %vm1199 = vcmask 351232
        %v1201 = vsel %vm1199, %v972, 0
        %v1203 = vsel %vm667, 4294967295, 65535
        %v1204 = vsel %vm671, %v1203, 0
        %v1206 = vand.u32 %v1161, %v1204
        %v1209 = vand.u32 %v1162, %v1204
        %1211 = vmatprep.subr.bf16.mxu0 %v1126
        %1212 = vmatpush1.bf16.msra.mxu0 %v1125
        %1213 = vmatprep.subr.bf16.mxu0 %v1128
        %1214 = vmatpush1.bf16.msra.mxu0 %v1127
        %1215 = vmatprep.subr.bf16.mxu0 %v1130
        %1216 = vmatpush1.bf16.msra.mxu0 %v1129
        %1217 = vmatprep.subr.bf16.mxu0 %v1132
        %1218 = vmatpush1.bf16.msra.mxu0 %v1131
        %1219 = vmatprep.subr.bf16.mxu0 %v1134
        %1220 = vmatpush1.bf16.msra.mxu0 %v1133
        %1221 = vmatprep.subr.bf16.mxu0 %v1136
        %1222 = vmatpush1.bf16.msra.mxu0 %v1135
        %1223 = vmatprep.subr.bf16.mxu0 %v1138
        %1224 = vmatpush1.bf16.msra.mxu0 %v1137
        %1225 = vmatprep.subr.bf16.mxu0 %v1140
        %1226 = vmatpush1.bf16.msra.mxu0 %v1139
        %1227 = vmatprep.subr.bf16.mxu0 %v1142
        %1228 = vmatpush1.bf16.msra.mxu0 %v1141
        %1229 = vmatprep.subr.bf16.mxu0 %v1144
        %1230 = vmatpush1.bf16.msra.mxu0 %v1143
        %1231 = vmatprep.subr.bf16.mxu0 %v1146
        %1232 = vmatpush1.bf16.msra.mxu0 %v1145
        %1233 = vmatprep.subr.bf16.mxu0 %v1148
        %1234 = vmatpush1.bf16.msra.mxu0 %v1147
        %1235 = vmatprep.subr.bf16.mxu0 %v1150
        %1236 = vmatpush1.bf16.msra.mxu0 %v1149
        %1237 = vmatprep.subr.bf16.mxu0 %v1152
        %1238 = vmatpush1.bf16.msra.mxu0 %v1151
        %1239 = vmatprep.subr.bf16.mxu0 %v1154
        %1240 = vmatpush1.bf16.msra.mxu0 %v1153
        %1241 = vmatprep.subr.bf16.mxu0 %v1156
        %1242 = vmatpush1.bf16.msra.mxu0 %v1155
        %1243 = vmatprep.mubr.bf16.mxu0 %v971
        %1244 = vmatmul.mubr.bf16.gmra.mrb[0].mxu0 %v970
        %v1245 = vpop.f32.mrb[0].mxu0
        %v1246 = vadd.f32 0.0, %v1245
        %v1247 = vpop.f32.mrb[0].mxu0
        %v1248 = vadd.f32 0.0, %v1247
        %v1249 = vpop.f32.mrb[0].mxu0
        %v1250 = vadd.f32 0.0, %v1249
        %v1251 = vpop.f32.mrb[0].mxu0
        %v1252 = vadd.f32 0.0, %v1251
        %1253 = vdwg.mxu0
        %1254 = vmatprep.subr.bf16.mxu0 %v1158
        %1255 = vmatpush1.bf16.msra.mxu0 %v1157
        %1256 = vmatprep.subr.bf16.mxu0 %v1160
        %1257 = vmatpush1.bf16.msra.mxu0 %v1159
        %1258 = vmatprep.subr.bf16.mxu0 %v1209
        %1259 = vmatpush1.bf16.msra.mxu0 %v1206
        %1260 = vmatprep.subr.bf16.mxu0 0
        %1261 = vmatpush1.bf16.msra.mxu0 0
        %1262 = vmatprep.subr.bf16.mxu0 0
        %1263 = vmatpush1.bf16.msra.mxu0 0
        %1264 = vmatprep.subr.bf16.mxu0 0
        %1265 = vmatpush1.bf16.msra.mxu0 0
        %1266 = vmatprep.subr.bf16.mxu0 0
        %1267 = vmatpush1.bf16.msra.mxu0 0
        %1268 = vmatprep.subr.bf16.mxu0 0
        %1269 = vmatpush1.bf16.msra.mxu0 0
        %1270 = vmatprep.subr.bf16.mxu0 0
        %1271 = vmatpush1.bf16.msra.mxu0 0
        %1272 = vmatprep.subr.bf16.mxu0 0
        %1273 = vmatpush1.bf16.msra.mxu0 0
        %1274 = vmatprep.subr.bf16.mxu0 0
        %1275 = vmatpush1.bf16.msra.mxu0 0
        %1276 = vmatprep.subr.bf16.mxu0 0
        %1277 = vmatpush1.bf16.msra.mxu0 0
        %1278 = vmatprep.subr.bf16.mxu0 0
        %1279 = vmatpush1.bf16.msra.mxu0 0
        %1280 = vmatprep.subr.bf16.mxu0 0
        %1281 = vmatpush1.bf16.msra.mxu0 0
        %1282 = vmatprep.subr.bf16.mxu0 0
        %1283 = vmatpush1.bf16.msra.mxu0 0
        %1284 = vmatprep.subr.bf16.mxu0 0
        %1285 = vmatpush1.bf16.msra.mxu0 0
        %1286 = vmatprep.mubr.bf16.mxu0 0
        %1287 = vmatmul.mubr.bf16.gmra.mrb[0].mxu0 %v1201
        %v1288 = vpop.f32.mrb[0].mxu0
        %v1289 = vadd.f32 %v1246, %v1288
        %v1290 = vpop.f32.mrb[0].mxu0
        %v1291 = vadd.f32 %v1248, %v1290
        %v1292 = vpop.f32.mrb[0].mxu0
        %v1293 = vadd.f32 %v1250, %v1292
        %v1294 = vpop.f32.mrb[0].mxu0
        %v1295 = vadd.f32 %v1252, %v1294
        %1296 = vdwg.mxu0
        %v1297 = vpack.c.bf16 %v1293, %v1289
        %vm1298 = vcmask 785408
        %1299 = vst.msk [vmem:[#allocation2] sm:$0xff] %vm1298, %v1297
        %1301 = vrot.lane.b32.xlu0 %v1297, 127
        %v1302 = vpop.permute.xlu0 %1301
        %1304 = vst.msk [vmem:[#allocation2 + $0x8] sm:$0xff] %vm1298, %v1302
        %1305 = vrot.lane.b32.xlu0 %v1297, 126
        %v1306 = vpop.permute.xlu0 %1305
        %1308 = vst.msk [vmem:[#allocation2 + $0x10] sm:$0xff] %vm1298, %v1306
        %1309 = vrot.lane.b32.xlu0 %v1297, 125
        %v1310 = vpop.permute.xlu0 %1309
        %1312 = vst.msk [vmem:[#allocation2 + $0x18] sm:$0xff] %vm1298, %v1310
        %1313 = vrot.lane.b32.xlu0 %v1297, 124
        %v1314 = vpop.permute.xlu0 %1313
        %1316 = vst.msk [vmem:[#allocation2 + $0x20] sm:$0xff] %vm1298, %v1314
        %1317 = vrot.lane.b32.xlu0 %v1297, 116
        %v1318 = vpop.permute.xlu0 %1317
        %1320 = vst.msk [vmem:[#allocation2 + $0x28] sm:$0xff] %vm1298, %v1318
        %1321 = vrot.lane.b32.xlu0 %v1297, 115
        %v1322 = vpop.permute.xlu0 %1321
        %1324 = vst.msk [vmem:[#allocation2 + $0x30] sm:$0xff] %vm1298, %v1322
        %1325 = vrot.lane.b32.xlu0 %v1297, 114
        %v1326 = vpop.permute.xlu0 %1325
        %1328 = vst.msk [vmem:[#allocation2 + $0x38] sm:$0xff] %vm1298, %v1326
        %1329 = vrot.lane.b32.xlu0 %v1297, 113
        %v1330 = vpop.permute.xlu0 %1329
        %1332 = vst.msk [vmem:[#allocation2 + $0x40] sm:$0xff] %vm1298, %v1330
        %1333 = vrot.lane.b32.xlu0 %v1297, 112
        %v1334 = vpop.permute.xlu0 %1333
        %1336 = vst.msk [vmem:[#allocation2 + $0x48] sm:$0xff] %vm1298, %v1334
        %1337 = vrot.lane.b32.xlu0 %v1297, 104
        %v1338 = vpop.permute.xlu0 %1337
        %1340 = vst.msk [vmem:[#allocation2 + $0x50] sm:$0xff] %vm1298, %v1338
        %1341 = vrot.lane.b32.xlu0 %v1297, 103
        %v1342 = vpop.permute.xlu0 %1341
        %1344 = vst.msk [vmem:[#allocation2 + $0x58] sm:$0xff] %vm1298, %v1342
        %1345 = vrot.lane.b32.xlu0 %v1297, 102
        %v1346 = vpop.permute.xlu0 %1345
        %1348 = vst.msk [vmem:[#allocation2 + $0x60] sm:$0xff] %vm1298, %v1346
        %1349 = vrot.lane.b32.xlu0 %v1297, 101
        %v1350 = vpop.permute.xlu0 %1349
        %1352 = vst.msk [vmem:[#allocation2 + $0x68] sm:$0xff] %vm1298, %v1350
        %1353 = vrot.lane.b32.xlu0 %v1297, 100
        %v1354 = vpop.permute.xlu0 %1353
        %1356 = vst.msk [vmem:[#allocation2 + $0x70] sm:$0xff] %vm1298, %v1354
        %v1357 = vpack.c.bf16 %v1295, %v1291
        %1359 = vrot.lane.b32.xlu0 %v1297, 92
        %v1360 = vpop.permute.xlu0 %1359
        %1361 = vrot.lane.b32.xlu0 %v1357, 92
        %v1362 = vpop.permute.xlu0 %1361
        %vm1363 = vcmask 752640
        %v1364 = vsel %vm1363, %v1360, %v1362
        %1366 = vst.msk [vmem:[#allocation2 + $0x78] sm:$0xff] %vm1298, %v1364
        %1367 = vrot.lane.b32.xlu0 %v1297, 91
        %v1368 = vpop.permute.xlu0 %1367
        %1369 = vrot.lane.b32.xlu0 %v1357, 91
        %v1370 = vpop.permute.xlu0 %1369
        %vm1371 = vcmask 744448
        %v1372 = vsel %vm1371, %v1368, %v1370
        %1374 = vst.msk [vmem:[#allocation2 + $0x80] sm:$0xff] %vm1298, %v1372
        %1375 = vrot.lane.b32.xlu0 %v1297, 90
        %v1376 = vpop.permute.xlu0 %1375
        %1377 = vrot.lane.b32.xlu0 %v1357, 90
        %v1378 = vpop.permute.xlu0 %1377
        %vm1379 = vcmask 736256
        %v1380 = vsel %vm1379, %v1376, %v1378
        %1382 = vst.msk [vmem:[#allocation2 + $0x88] sm:$0xff] %vm1298, %v1380
        %1383 = vrot.lane.b32.xlu0 %v1297, 89
        %v1384 = vpop.permute.xlu0 %1383
        %1385 = vrot.lane.b32.xlu0 %v1357, 89
        %v1386 = vpop.permute.xlu0 %1385
        %vm1387 = vcmask 728064
        %v1388 = vsel %vm1387, %v1384, %v1386
        %1390 = vst.msk [vmem:[#allocation2 + $0x90] sm:$0xff] %vm1298, %v1388
        %1391 = vrot.lane.b32.xlu0 %v1297, 88
        %v1392 = vpop.permute.xlu0 %1391
        %1393 = vrot.lane.b32.xlu0 %v1357, 88
        %v1394 = vpop.permute.xlu0 %1393
        %vm1395 = vcmask 719872
        %v1396 = vsel %vm1395, %v1392, %v1394
        %1398 = vst.msk [vmem:[#allocation2 + $0x98] sm:$0xff] %vm1298, %v1396
        %1399 = vrot.lane.b32.xlu0 %v1297, 80
        %v1400 = vpop.permute.xlu0 %1399
        %1401 = vrot.lane.b32.xlu0 %v1357, 80
        %v1402 = vpop.permute.xlu0 %1401
        %vm1403 = vcmask 654336
        %v1404 = vsel %vm1403, %v1400, %v1402
        %1406 = vst.msk [vmem:[#allocation2 + $0xa0] sm:$0xff] %vm1298, %v1404
        %1407 = vrot.lane.b32.xlu0 %v1297, 79
        %v1408 = vpop.permute.xlu0 %1407
        %1409 = vrot.lane.b32.xlu0 %v1357, 79
        %v1410 = vpop.permute.xlu0 %1409
        %vm1411 = vcmask 646144
        %v1412 = vsel %vm1411, %v1408, %v1410
        %1414 = vst.msk [vmem:[#allocation2 + $0xa8] sm:$0xff] %vm1298, %v1412
        %1415 = vrot.lane.b32.xlu0 %v1297, 78
        %v1416 = vpop.permute.xlu0 %1415
        %1417 = vrot.lane.b32.xlu0 %v1357, 78
        %v1418 = vpop.permute.xlu0 %1417
        %vm1419 = vcmask 637952
        %v1420 = vsel %vm1419, %v1416, %v1418
        %1422 = vst.msk [vmem:[#allocation2 + $0xb0] sm:$0xff] %vm1298, %v1420
        %1423 = vrot.lane.b32.xlu0 %v1297, 77
        %v1424 = vpop.permute.xlu0 %1423
        %1425 = vrot.lane.b32.xlu0 %v1357, 77
        %v1426 = vpop.permute.xlu0 %1425
        %vm1427 = vcmask 629760
        %v1428 = vsel %vm1427, %v1424, %v1426
        %1430 = vst.msk [vmem:[#allocation2 + $0xb8] sm:$0xff] %vm1298, %v1428
        %1431 = vrot.lane.b32.xlu0 %v1297, 76
        %v1432 = vpop.permute.xlu0 %1431
        %1433 = vrot.lane.b32.xlu0 %v1357, 76
        %v1434 = vpop.permute.xlu0 %1433
        %vm1435 = vcmask 621568
        %v1436 = vsel %vm1435, %v1432, %v1434
        %1438 = vst.msk [vmem:[#allocation2 + $0xc0] sm:$0xff] %vm1298, %v1436
        %v1439 = vld [vmem:[%s3] sm:$0xff]
        %v1440 = vld [vmem:[#allocation2] sm:$0xff]
        %v1441 = vld [vmem:[#allocation2 + $0x8] sm:$0xff]
        %v1442 = vld [vmem:[#allocation2 + $0x10] sm:$0xff]
        %v1443 = vld [vmem:[#allocation2 + $0x18] sm:$0xff]
        %v1444 = vld [vmem:[#allocation2 + $0x20] sm:$0xff]
        %v1445 = vld [vmem:[#allocation2 + $0x28] sm:$0xff]
        %v1446 = vld [vmem:[#allocation2 + $0x30] sm:$0xff]
        %v1447 = vld [vmem:[#allocation2 + $0x38] sm:$0xff]
        %v1448 = vld [vmem:[#allocation2 + $0x40] sm:$0xff]
        %v1449 = vld [vmem:[#allocation2 + $0x48] sm:$0xff]
        %v1450 = vld [vmem:[#allocation2 + $0x50] sm:$0xff]
        %v1451 = vld [vmem:[#allocation2 + $0x58] sm:$0xff]
        %v1452 = vld [vmem:[#allocation2 + $0x60] sm:$0xff]
        %v1453 = vld [vmem:[#allocation2 + $0x68] sm:$0xff]
        %v1454 = vld [vmem:[#allocation2 + $0x70] sm:$0xff]
        %v1455 = vld [vmem:[#allocation2 + $0x78] sm:$0xff]
        %v1456 = vld [vmem:[#allocation2 + $0x80] sm:$0xff]
        %v1457 = vld [vmem:[#allocation2 + $0x88] sm:$0xff]
        %v1458 = vld [vmem:[#allocation2 + $0x90] sm:$0xff]
        %v1459 = vld [vmem:[#allocation2 + $0x98] sm:$0xff]
        %v1460 = vld [vmem:[#allocation2 + $0xa0] sm:$0xff]
        %v1461 = vld [vmem:[#allocation2 + $0xa8] sm:$0xff]
        %v1462 = vld [vmem:[#allocation2 + $0xb0] sm:$0xff]
        %v1463 = vld [vmem:[#allocation2 + $0xb8] sm:$0xff]
        %v1464 = vld [vmem:[#allocation2 + $0xc0] sm:$0xff]
        %v1465 = vld [vmem:[%s4] sm:$0xf]
        %1467 = vset.pattern.permute.xlu0 0
        %1468 = vperm.xlu0 %1467, %v1465
        %v1469 = vpop.permute.xlu0 %1468
        %v1472 = vcombine.high %v1439, %v1439
        %v1474 = vunpack.c.l.s4 1983009808
        %v1475 = vunpack.c.0.s8 %v1474
        %v1476 = vlaneseq
        %v1477 = vshrl.u32 %v1476, 7
        %v1478 = vsub.s32 %v1475, %v1477
        %v1479 = vrot.slane %v1439, %v1478
        %v1481 = vunpack.c.l.s4 1983009808
        %v1482 = vunpack.c.0.s8 %v1481
        %v1483 = vlaneseq
        %v1484 = vshrl.u32 %v1483, 7
        %v1485 = vsub.s32 %v1482, %v1484
        %v1486 = vrot.slane %v1472, %v1485
        %v1487 = vcombine.high %v1479, %v1479
        %v1488 = vcombine.high %v1486, %v1486
        %vm1492 = vcmask 130048
        %v1494 = vsel %vm1492, %v1488, 0
        %1496 = vmatprep.subr.bf16.mxu0 0
        %1497 = vmatpush1.bf16.msra.mxu0 %v1440
        %1498 = vmatprep.subr.bf16.mxu0 0
        %1499 = vmatpush1.bf16.msra.mxu0 %v1441
        %1500 = vmatprep.subr.bf16.mxu0 0
        %1501 = vmatpush1.bf16.msra.mxu0 %v1442
        %1502 = vmatprep.subr.bf16.mxu0 0
        %1503 = vmatpush1.bf16.msra.mxu0 %v1443
        %1504 = vmatprep.subr.bf16.mxu0 0
        %1505 = vmatpush1.bf16.msra.mxu0 %v1444
        %1506 = vmatprep.subr.bf16.mxu0 0
        %1507 = vmatpush1.bf16.msra.mxu0 %v1445
        %1508 = vmatprep.subr.bf16.mxu0 0
        %1509 = vmatpush1.bf16.msra.mxu0 %v1446
        %1510 = vmatprep.subr.bf16.mxu0 0
        %1511 = vmatpush1.bf16.msra.mxu0 %v1447
        %1512 = vmatprep.subr.bf16.mxu0 0
        %1513 = vmatpush1.bf16.msra.mxu0 %v1448
        %1514 = vmatprep.subr.bf16.mxu0 0
        %1515 = vmatpush1.bf16.msra.mxu0 %v1449
        %1516 = vmatprep.subr.bf16.mxu0 0
        %1517 = vmatpush1.bf16.msra.mxu0 %v1450
        %1518 = vmatprep.subr.bf16.mxu0 0
        %1519 = vmatpush1.bf16.msra.mxu0 %v1451
        %1520 = vmatprep.subr.bf16.mxu0 0
        %1521 = vmatpush1.bf16.msra.mxu0 %v1452
        %1522 = vmatprep.subr.bf16.mxu0 0
        %1523 = vmatpush1.bf16.msra.mxu0 %v1453
        %1524 = vmatprep.subr.bf16.mxu0 0
        %1525 = vmatpush1.bf16.msra.mxu0 %v1454
        %1526 = vmatprep.subr.bf16.mxu0 0
        %1527 = vmatpush1.bf16.msra.mxu0 %v1455
        %1528 = vmatprep.mubr.bf16.mxu0 %v1487
        %1529 = vmatmul.mubr.bf16.gmra.mrb[0].mxu0 %v1479
        %v1530 = vpop.f32.mrb[0].mxu0
        %v1531 = vadd.f32 %v1469, %v1530
        %v1532 = vpop.f32.mrb[0].mxu0
        %v1533 = vpop.f32.mrb[0].mxu0
        %v1534 = vpop.f32.mrb[0].mxu0
        %1535 = vdwg.mxu0
        %1536 = vmatprep.subr.bf16.mxu0 0
        %1537 = vmatpush1.bf16.msra.mxu0 %v1456
        %1538 = vmatprep.subr.bf16.mxu0 0
        %1539 = vmatpush1.bf16.msra.mxu0 %v1457
        %1540 = vmatprep.subr.bf16.mxu0 0
        %1541 = vmatpush1.bf16.msra.mxu0 %v1458
        %1542 = vmatprep.subr.bf16.mxu0 0
        %1543 = vmatpush1.bf16.msra.mxu0 %v1459
        %1544 = vmatprep.subr.bf16.mxu0 0
        %1545 = vmatpush1.bf16.msra.mxu0 %v1460
        %1546 = vmatprep.subr.bf16.mxu0 0
        %1547 = vmatpush1.bf16.msra.mxu0 %v1461
        %1548 = vmatprep.subr.bf16.mxu0 0
        %1549 = vmatpush1.bf16.msra.mxu0 %v1462
        %1550 = vmatprep.subr.bf16.mxu0 0
        %1551 = vmatpush1.bf16.msra.mxu0 %v1463
        %1552 = vmatprep.subr.bf16.mxu0 0
        %1553 = vmatpush1.bf16.msra.mxu0 %v1464
        %1554 = vmatprep.subr.bf16.mxu0 0
        %1555 = vmatpush1.bf16.msra.mxu0 0
        %1556 = vmatprep.subr.bf16.mxu0 0
        %1557 = vmatpush1.bf16.msra.mxu0 0
        %1558 = vmatprep.subr.bf16.mxu0 0
        %1559 = vmatpush1.bf16.msra.mxu0 0
        %1560 = vmatprep.subr.bf16.mxu0 0
        %1561 = vmatpush1.bf16.msra.mxu0 0
        %1562 = vmatprep.subr.bf16.mxu0 0
        %1563 = vmatpush1.bf16.msra.mxu0 0
        %1564 = vmatprep.subr.bf16.mxu0 0
        %1565 = vmatpush1.bf16.msra.mxu0 0
        %1566 = vmatprep.subr.bf16.mxu0 0
        %1567 = vmatpush1.bf16.msra.mxu0 0
        %1568 = vmatprep.mubr.bf16.mxu0 %v1494
        %1569 = vmatmul.mubr.bf16.gmra.mrb[0].mxu0 %v1486
        %v1570 = vpop.f32.mrb[0].mxu0
        %v1571 = vadd.f32 %v1531, %v1570
        %v1572 = vpop.f32.mrb[0].mxu0
        %v1573 = vpop.f32.mrb[0].mxu0
        %v1574 = vpop.f32.mrb[0].mxu0
        %1575 = vdwg.mxu0
        %v1576 = vmax.f32 %v1571, 0.0
        %1578 = vrot.lane.b32.xlu0 %v1576, 127
        %v1579 = vpop.permute.xlu0 %1578
        %v1581 = vmax.f32 %v1576, %v1579
        %1583 = vrot.lane.b32.xlu0 %v1581, 116
        %v1584 = vpop.permute.xlu0 %1583
        %v1586 = vmax.f32 %v1581, %v1584
        %v1587 = vpack.c.bf16 %v1586, %v1586
        %v1588 = vld [vmem:[%s10] sm:$0xf]
        %v1589 = vld [vmem:[%s10 + $0x4] sm:$0xf]
        %v1590 = vld [vmem:[%s10 + $0x8] sm:$0xf]
        %v1591 = vld [vmem:[%s10 + $0xc] sm:$0xf]
        %v1592 = vld [vmem:[%s10 + $0x10] sm:$0xf]
        %v1593 = vld [vmem:[%s10 + $0x14] sm:$0xf]
        %v1594 = vld [vmem:[%s10 + $0x18] sm:$0xf]
        %v1595 = vld [vmem:[%s10 + $0x1c] sm:$0xf]
        %v1596 = vld [vmem:[%s10 + $0x20] sm:$0xf]
        %v1597 = vld [vmem:[%s10 + $0x24] sm:$0xf]
        %v1598 = vld [vmem:[%s10 + $0x28] sm:$0x3]
        %v1610 = vunpack.c.l.b16 %v1588
        %v1611 = vunpack.c.l.b16 %v1589
        %v1612 = vunpack.c.l.b16 %v1590
        %v1613 = vunpack.c.l.b16 %v1591
        %v1614 = vunpack.c.l.b16 %v1592
        %v1615 = vunpack.c.l.b16 %v1593
        %v1616 = vunpack.c.l.b16 %v1594
        %v1617 = vunpack.c.l.b16 %v1595
        %v1618 = vunpack.c.l.b16 %v1596
        %v1619 = vunpack.c.l.b16 %v1597
        %v1620 = vunpack.c.l.b16 %v1598
        %v1621 = vpack.c.b16 %v1611, %v1610
        %v1622 = vpack.c.b16 %v1613, %v1612
        %v1623 = vpack.c.b16 %v1615, %v1614
        %v1624 = vpack.c.b16 %v1617, %v1616
        %v1625 = vpack.c.b16 %v1619, %v1618
        %v1626 = vpack.c.b16 %v1620, %v1620
        %vm1632 = vcmask 678912
        %v1634 = vsel %vm1632, %v1587, 0
        %v1636 = vsel %vm651, 4294967295, 65535
        %v1637 = vsel %vm655, %v1636, 0
        %v1639 = vand.u32 %v1626, %v1637
        %1641 = vmatprep.subr.bf16.mxu0 0
        %1642 = vmatpush1.bf16.msra.mxu0 %v1621
        %1643 = vmatprep.subr.bf16.mxu0 0
        %1644 = vmatpush1.bf16.msra.mxu0 %v1622
        %1645 = vmatprep.subr.bf16.mxu0 0
        %1646 = vmatpush1.bf16.msra.mxu0 %v1623
        %1647 = vmatprep.subr.bf16.mxu0 0
        %1648 = vmatpush1.bf16.msra.mxu0 %v1624
        %1649 = vmatprep.subr.bf16.mxu0 0
        %1650 = vmatpush1.bf16.msra.mxu0 %v1625
        %1651 = vmatprep.subr.bf16.mxu0 0
        %1652 = vmatpush1.bf16.msra.mxu0 %v1639
        %1653 = vmatprep.subr.bf16.mxu0 0
        %1654 = vmatpush1.bf16.msra.mxu0 0
        %1655 = vmatprep.subr.bf16.mxu0 0
        %1656 = vmatpush1.bf16.msra.mxu0 0
        %1657 = vmatprep.subr.bf16.mxu0 0
        %1658 = vmatpush1.bf16.msra.mxu0 0
        %1659 = vmatprep.subr.bf16.mxu0 0
        %1660 = vmatpush1.bf16.msra.mxu0 0
        %1661 = vmatprep.subr.bf16.mxu0 0
        %1662 = vmatpush1.bf16.msra.mxu0 0
        %1663 = vmatprep.subr.bf16.mxu0 0
        %1664 = vmatpush1.bf16.msra.mxu0 0
        %1665 = vmatprep.subr.bf16.mxu0 0
        %1666 = vmatpush1.bf16.msra.mxu0 0
        %1667 = vmatprep.subr.bf16.mxu0 0
        %1668 = vmatpush1.bf16.msra.mxu0 0
        %1669 = vmatprep.subr.bf16.mxu0 0
        %1670 = vmatpush1.bf16.msra.mxu0 0
        %1671 = vmatprep.subr.bf16.mxu0 0
        %1672 = vmatpush1.bf16.msra.mxu0 0
        %1673 = vmatprep.mubr.bf16.mxu0 0
        %1674 = vmatmul.mubr.bf16.gmra.mrb[0].mxu0 %v1634
        %v1675 = vpop.f32.mrb[0].mxu0
        %v1676 = vadd.f32 0.0, %v1675
        %v1677 = vpop.f32.mrb[0].mxu0
        %v1678 = vpop.f32.mrb[0].mxu0
        %v1679 = vpop.f32.mrb[0].mxu0
        %1680 = vdwg.mxu0
        %v1681 = vld [vmem:[%s5] sm:$0xf]
        %v1682 = vld [vmem:[%s5 + $0x4] sm:$0xf]
        %v1683 = vld [vmem:[%s5 + $0x8] sm:$0xf]
        %v1684 = vld [vmem:[%s5 + $0xc] sm:$0xf]
        %v1685 = vld [vmem:[%s5 + $0x10] sm:$0xf]
        %v1686 = vld [vmem:[%s5 + $0x14] sm:$0xf]
        %v1687 = vld [vmem:[%s5 + $0x18] sm:$0xf]
        %v1688 = vld [vmem:[%s5 + $0x1c] sm:$0xf]
        %v1689 = vpack.c.bf16 %v1676, %v1676
        %v1698 = vunpack.c.l.b16 %v1681
        %v1699 = vunpack.c.l.b16 %v1682
        %v1700 = vunpack.c.l.b16 %v1683
        %v1701 = vunpack.c.l.b16 %v1684
        %v1702 = vunpack.c.l.b16 %v1685
        %v1703 = vunpack.c.l.b16 %v1686
        %v1704 = vunpack.c.l.b16 %v1687
        %v1705 = vunpack.c.l.b16 %v1688
        %v1706 = vpack.c.b16 %v1699, %v1698
        %v1707 = vpack.c.b16 %v1701, %v1700
        %v1708 = vpack.c.b16 %v1703, %v1702
        %v1709 = vpack.c.b16 %v1705, %v1704
        %vm1710 = vcmask 31744
        %v1712 = vsel %vm1710, %v1706, 0
        %v1715 = vsel %vm1710, %v1707, 0
        %v1718 = vsel %vm1710, %v1708, 0
        %v1721 = vsel %vm1710, %v1709, 0
        %v1724 = vsel %vm655, %v1689, 0
        %1726 = vmatprep.subr.bf16.mxu0 0
        %1727 = vmatpush1.bf16.msra.mxu0 %v1724
        %1728 = vmatprep.subr.bf16.mxu0 0
        %1729 = vmatpush1.bf16.msra.mxu0 0
        %1730 = vmatprep.subr.bf16.mxu0 0
        %1731 = vmatpush1.bf16.msra.mxu0 0
        %1732 = vmatprep.subr.bf16.mxu0 0
        %1733 = vmatpush1.bf16.msra.mxu0 0
        %1734 = vmatprep.subr.bf16.mxu0 0
        %1735 = vmatpush1.bf16.msra.mxu0 0
        %1736 = vmatprep.subr.bf16.mxu0 0
        %1737 = vmatpush1.bf16.msra.mxu0 0
        %1738 = vmatprep.subr.bf16.mxu0 0
        %1739 = vmatpush1.bf16.msra.mxu0 0
        %1740 = vmatprep.subr.bf16.mxu0 0
        %1741 = vmatpush1.bf16.msra.mxu0 0
        %1742 = vmatprep.subr.bf16.mxu0 0
        %1743 = vmatpush1.bf16.msra.mxu0 0
        %1744 = vmatprep.subr.bf16.mxu0 0
        %1745 = vmatpush1.bf16.msra.mxu0 0
        %1746 = vmatprep.subr.bf16.mxu0 0
        %1747 = vmatpush1.bf16.msra.mxu0 0
        %1748 = vmatprep.subr.bf16.mxu0 0
        %1749 = vmatpush1.bf16.msra.mxu0 0
        %1750 = vmatprep.subr.bf16.mxu0 0
        %1751 = vmatpush1.bf16.msra.mxu0 0
        %1752 = vmatprep.subr.bf16.mxu0 0
        %1753 = vmatpush1.bf16.msra.mxu0 0
        %1754 = vmatprep.subr.bf16.mxu0 0
        %1755 = vmatpush1.bf16.msra.mxu0 0
        %1756 = vmatprep.subr.bf16.mxu0 0
        %1757 = vmatpush1.bf16.msra.mxu0 0
        %1758 = vmatprep.mubr.bf16.mxu0 0
        %1759 = vmatmul.mubr.bf16.gmra.mrb[0].mxu0 %v1712
        %v1760 = vpop.f32.mrb[0].mxu0
        %v1761 = vadd.f32 0.0, %v1760
        %v1762 = vpop.f32.mrb[0].mxu0
        %v1763 = vpop.f32.mrb[0].mxu0
        %v1764 = vadd.f32 0.0, %v1763
        %v1765 = vpop.f32.mrb[0].mxu0
        %1766 = vmatprep.mubr.bf16.mxu0 0
        %1767 = vmatmul.mubr.bf16.gmra.mrb[0].mxu0 %v1715
        %v1768 = vpop.f32.mrb[0].mxu0
        %v1769 = vadd.f32 0.0, %v1768
        %v1770 = vpop.f32.mrb[0].mxu0
        %v1771 = vpop.f32.mrb[0].mxu0
        %v1772 = vadd.f32 0.0, %v1771
        %v1773 = vpop.f32.mrb[0].mxu0
        %1774 = vmatprep.mubr.bf16.mxu0 0
        %1775 = vmatmul.mubr.bf16.gmra.mrb[0].mxu0 %v1718
        %v1776 = vpop.f32.mrb[0].mxu0
        %v1777 = vadd.f32 0.0, %v1776
        %v1778 = vpop.f32.mrb[0].mxu0
        %v1779 = vpop.f32.mrb[0].mxu0
        %v1780 = vadd.f32 0.0, %v1779
        %v1781 = vpop.f32.mrb[0].mxu0
        %1782 = vmatprep.mubr.bf16.mxu0 0
        %1783 = vmatmul.mubr.bf16.gmra.mrb[0].mxu0 %v1721
        %v1784 = vpop.f32.mrb[0].mxu0
        %v1785 = vadd.f32 0.0, %v1784
        %v1786 = vpop.f32.mrb[0].mxu0
        %v1787 = vpop.f32.mrb[0].mxu0
        %v1788 = vadd.f32 0.0, %v1787
        %v1789 = vpop.f32.mrb[0].mxu0
        %1790 = vdwg.mxu0
        %v1791 = vpack.c.bf16 %v1764, %v1761
        %v1792 = vld [vmem:[%s11] sm:$0xf]
        %v1793 = vld [vmem:[%s11 + $0x4] sm:$0xf]
        %v1794 = vpack.c.bf16 %v1772, %v1769
        %v1795 = vld [vmem:[%s11 + $0x8] sm:$0xf]
        %v1796 = vld [vmem:[%s11 + $0xc] sm:$0xf]
        %v1799 = vunpack.c.l.b16 %v1795
        %v1800 = vunpack.c.l.b16 %v1796
        %v1801 = vpack.c.b16 %v1800, %v1799
        %v1804 = vsel %vm1492, %v1794, 0
        %1806 = vmatprep.subr.bf16.mxu0 0
        %1807 = vmatpush1.bf16.msra.mxu0 %v1801
        %1808 = vmatprep.subr.bf16.mxu0 0
        %1809 = vmatpush1.bf16.msra.mxu0 0
        %1810 = vmatprep.subr.bf16.mxu0 0
        %1811 = vmatpush1.bf16.msra.mxu0 0
        %1812 = vmatprep.subr.bf16.mxu0 0
        %1813 = vmatpush1.bf16.msra.mxu0 0
        %1814 = vmatprep.subr.bf16.mxu0 0
        %1815 = vmatpush1.bf16.msra.mxu0 0
        %1816 = vmatprep.subr.bf16.mxu0 0
        %1817 = vmatpush1.bf16.msra.mxu0 0
        %1818 = vmatprep.subr.bf16.mxu0 0
        %1819 = vmatpush1.bf16.msra.mxu0 0
        %1820 = vmatprep.subr.bf16.mxu0 0
        %1821 = vmatpush1.bf16.msra.mxu0 0
        %1822 = vmatprep.subr.bf16.mxu0 0
        %1823 = vmatpush1.bf16.msra.mxu0 0
        %1824 = vmatprep.subr.bf16.mxu0 0
        %1825 = vmatpush1.bf16.msra.mxu0 0
        %1826 = vmatprep.subr.bf16.mxu0 0
        %1827 = vmatpush1.bf16.msra.mxu0 0
        %1828 = vmatprep.subr.bf16.mxu0 0
        %1829 = vmatpush1.bf16.msra.mxu0 0
        %1830 = vmatprep.subr.bf16.mxu0 0
        %1831 = vmatpush1.bf16.msra.mxu0 0
        %1832 = vmatprep.subr.bf16.mxu0 0
        %1833 = vmatpush1.bf16.msra.mxu0 0
        %1834 = vmatprep.subr.bf16.mxu0 0
        %1835 = vmatpush1.bf16.msra.mxu0 0
        %1836 = vmatprep.subr.bf16.mxu0 0
        %1837 = vmatpush1.bf16.msra.mxu0 0
        %1838 = vmatprep.mubr.bf16.mxu0 0
        %1839 = vmatmul.mubr.bf16.gmra.mrb[0].mxu0 %v1804
        %v1840 = vpop.f32.mrb[0].mxu0
        %v1841 = vadd.f32 0.0, %v1840
        %v1842 = vpop.f32.mrb[0].mxu0
        %v1843 = vpop.f32.mrb[0].mxu0
        %v1844 = vadd.f32 0.0, %v1843
        %v1845 = vpop.f32.mrb[0].mxu0
        %1846 = vdwg.mxu0
        %v1849 = vunpack.c.l.b16 %v1792
        %v1850 = vunpack.c.l.b16 %v1793
        %v1851 = vpack.c.b16 %v1850, %v1849
        %v1854 = vsel %vm1492, %v1791, 0
        %1856 = vmatprep.subr.bf16.mxu0 0
        %1857 = vmatpush1.bf16.msra.mxu0 %v1851
        %1858 = vmatprep.subr.bf16.mxu0 0
        %1859 = vmatpush1.bf16.msra.mxu0 0
        %1860 = vmatprep.subr.bf16.mxu0 0
        %1861 = vmatpush1.bf16.msra.mxu0 0
        %1862 = vmatprep.subr.bf16.mxu0 0
        %1863 = vmatpush1.bf16.msra.mxu0 0
        %1864 = vmatprep.subr.bf16.mxu0 0
        %1865 = vmatpush1.bf16.msra.mxu0 0
        %1866 = vmatprep.subr.bf16.mxu0 0
        %1867 = vmatpush1.bf16.msra.mxu0 0
        %1868 = vmatprep.subr.bf16.mxu0 0
        %1869 = vmatpush1.bf16.msra.mxu0 0
        %1870 = vmatprep.subr.bf16.mxu0 0
        %1871 = vmatpush1.bf16.msra.mxu0 0
        %1872 = vmatprep.subr.bf16.mxu0 0
        %1873 = vmatpush1.bf16.msra.mxu0 0
        %1874 = vmatprep.subr.bf16.mxu0 0
        %1875 = vmatpush1.bf16.msra.mxu0 0
        %1876 = vmatprep.subr.bf16.mxu0 0
        %1877 = vmatpush1.bf16.msra.mxu0 0
        %1878 = vmatprep.subr.bf16.mxu0 0
        %1879 = vmatpush1.bf16.msra.mxu0 0
        %1880 = vmatprep.subr.bf16.mxu0 0
        %1881 = vmatpush1.bf16.msra.mxu0 0
        %1882 = vmatprep.subr.bf16.mxu0 0
        %1883 = vmatpush1.bf16.msra.mxu0 0
        %1884 = vmatprep.subr.bf16.mxu0 0
        %1885 = vmatpush1.bf16.msra.mxu0 0
        %1886 = vmatprep.subr.bf16.mxu0 0
        %1887 = vmatpush1.bf16.msra.mxu0 0
        %1888 = vmatprep.mubr.bf16.mxu0 0
        %1889 = vmatmul.mubr.bf16.gmra.mrb[0].mxu0 %v1854
        %v1890 = vpop.f32.mrb[0].mxu0
        %v1891 = vadd.f32 %v1841, %v1890
        %v1892 = vpop.f32.mrb[0].mxu0
        %v1893 = vpop.f32.mrb[0].mxu0
        %v1894 = vadd.f32 %v1844, %v1893
        %v1895 = vpop.f32.mrb[0].mxu0
        %1896 = vdwg.mxu0
        %v1897 = vpack.c.bf16 %v1780, %v1777
        %v1898 = vld [vmem:[%s11 + $0x10] sm:$0xf]
        %v1899 = vld [vmem:[%s11 + $0x14] sm:$0xf]
        %v1902 = vunpack.c.l.b16 %v1898
        %v1903 = vunpack.c.l.b16 %v1899
        %v1904 = vpack.c.b16 %v1903, %v1902
        %v1907 = vsel %vm1492, %v1897, 0
        %1909 = vmatprep.subr.bf16.mxu0 0
        %1910 = vmatpush1.bf16.msra.mxu0 %v1904
        %1911 = vmatprep.subr.bf16.mxu0 0
        %1912 = vmatpush1.bf16.msra.mxu0 0
        %1913 = vmatprep.subr.bf16.mxu0 0
        %1914 = vmatpush1.bf16.msra.mxu0 0
        %1915 = vmatprep.subr.bf16.mxu0 0
        %1916 = vmatpush1.bf16.msra.mxu0 0
        %1917 = vmatprep.subr.bf16.mxu0 0
        %1918 = vmatpush1.bf16.msra.mxu0 0
        %1919 = vmatprep.subr.bf16.mxu0 0
        %1920 = vmatpush1.bf16.msra.mxu0 0
        %1921 = vmatprep.subr.bf16.mxu0 0
        %1922 = vmatpush1.bf16.msra.mxu0 0
        %1923 = vmatprep.subr.bf16.mxu0 0
        %1924 = vmatpush1.bf16.msra.mxu0 0
        %1925 = vmatprep.subr.bf16.mxu0 0
        %1926 = vmatpush1.bf16.msra.mxu0 0
        %1927 = vmatprep.subr.bf16.mxu0 0
        %1928 = vmatpush1.bf16.msra.mxu0 0
        %1929 = vmatprep.subr.bf16.mxu0 0
        %1930 = vmatpush1.bf16.msra.mxu0 0
        %1931 = vmatprep.subr.bf16.mxu0 0
        %1932 = vmatpush1.bf16.msra.mxu0 0
        %1933 = vmatprep.subr.bf16.mxu0 0
        %1934 = vmatpush1.bf16.msra.mxu0 0
        %1935 = vmatprep.subr.bf16.mxu0 0
        %1936 = vmatpush1.bf16.msra.mxu0 0
        %1937 = vmatprep.subr.bf16.mxu0 0
        %1938 = vmatpush1.bf16.msra.mxu0 0
        %1939 = vmatprep.subr.bf16.mxu0 0
        %1940 = vmatpush1.bf16.msra.mxu0 0
        %1941 = vmatprep.mubr.bf16.mxu0 0
        %1942 = vmatmul.mubr.bf16.gmra.mrb[0].mxu0 %v1907
        %v1943 = vpop.f32.mrb[0].mxu0
        %v1944 = vadd.f32 0.0, %v1943
        %v1945 = vpop.f32.mrb[0].mxu0
        %v1946 = vpop.f32.mrb[0].mxu0
        %v1947 = vadd.f32 0.0, %v1946
        %v1948 = vpop.f32.mrb[0].mxu0
        %1949 = vdwg.mxu0
        %v1950 = vadd.f32 %v1891, %v1944
        %v1951 = vadd.f32 %v1894, %v1947
        %v1952 = vpack.c.bf16 %v1788, %v1785
        %v1953 = vld [vmem:[%s11 + $0x18] sm:$0xf]
        %v1954 = vld [vmem:[%s11 + $0x1c] sm:$0xf]
        %v1957 = vunpack.c.l.b16 %v1953
        %v1958 = vunpack.c.l.b16 %v1954
        %v1959 = vpack.c.b16 %v1958, %v1957
        %v1962 = vsel %vm1492, %v1952, 0
        %1964 = vmatprep.subr.bf16.mxu0 0
        %1965 = vmatpush1.bf16.msra.mxu0 %v1959
        %1966 = vmatprep.subr.bf16.mxu0 0
        %1967 = vmatpush1.bf16.msra.mxu0 0
        %1968 = vmatprep.subr.bf16.mxu0 0
        %1969 = vmatpush1.bf16.msra.mxu0 0
        %1970 = vmatprep.subr.bf16.mxu0 0
        %1971 = vmatpush1.bf16.msra.mxu0 0
        %1972 = vmatprep.subr.bf16.mxu0 0
        %1973 = vmatpush1.bf16.msra.mxu0 0
        %1974 = vmatprep.subr.bf16.mxu0 0
        %1975 = vmatpush1.bf16.msra.mxu0 0
        %1976 = vmatprep.subr.bf16.mxu0 0
        %1977 = vmatpush1.bf16.msra.mxu0 0
        %1978 = vmatprep.subr.bf16.mxu0 0
        %1979 = vmatpush1.bf16.msra.mxu0 0
        %1980 = vmatprep.subr.bf16.mxu0 0
        %1981 = vmatpush1.bf16.msra.mxu0 0
        %1982 = vmatprep.subr.bf16.mxu0 0
        %1983 = vmatpush1.bf16.msra.mxu0 0
        %1984 = vmatprep.subr.bf16.mxu0 0
        %1985 = vmatpush1.bf16.msra.mxu0 0
        %1986 = vmatprep.subr.bf16.mxu0 0
        %1987 = vmatpush1.bf16.msra.mxu0 0
        %1988 = vmatprep.subr.bf16.mxu0 0
        %1989 = vmatpush1.bf16.msra.mxu0 0
        %1990 = vmatprep.subr.bf16.mxu0 0
        %1991 = vmatpush1.bf16.msra.mxu0 0
        %1992 = vmatprep.subr.bf16.mxu0 0
        %1993 = vmatpush1.bf16.msra.mxu0 0
        %1994 = vmatprep.subr.bf16.mxu0 0
        %1995 = vmatpush1.bf16.msra.mxu0 0
        %1996 = vmatprep.mubr.bf16.mxu0 0
        %1997 = vmatmul.mubr.bf16.gmra.mrb[0].mxu0 %v1962
        %v1998 = vpop.f32.mrb[0].mxu0
        %v1999 = vadd.f32 0.0, %v1998
        %v2000 = vpop.f32.mrb[0].mxu0
        %v2001 = vpop.f32.mrb[0].mxu0
        %v2002 = vadd.f32 0.0, %v2001
        %v2003 = vpop.f32.mrb[0].mxu0
        %2004 = vdwg.mxu0
        %v2005 = vadd.f32 %v1950, %v1999
        %v2006 = vadd.f32 %v1951, %v2002
        %v2007 = vld [vmem:[%s6] sm:$0xff]
        %v2008 = vld [vmem:[%s6 + $0x8] sm:$0xff]
        %2010 = vset.pattern.permute.xlu0 0
        %2011 = vperm.xlu0 %2010, %v2007
        %v2012 = vpop.permute.xlu0 %2011
        %2015 = vset.pattern.permute.xlu0 0
        %2016 = vperm.xlu0 %2015, %v2008
        %v2017 = vpop.permute.xlu0 %2016
        %v2019 = vadd.f32 %v2005, %v2012
        %v2020 = vadd.f32 %v2006, %v2017
        %v2021 = vmax.f32 %v2019, 0.0
        %v2022 = vmax.f32 %v2020, 0.0
        %v2023 = vld [vmem:[%s7] sm:$0x3]
        %v2024 = vpack.c.bf16 %v2022, %v2021
        %v2026 = vsel %vm1492, %v2023, 0
        %2028 = vmatprep.subr.bf16.mxu0 0
        %2029 = vmatpush1.bf16.msra.mxu0 %v2024
        %2030 = vmatprep.subr.bf16.mxu0 0
        %2031 = vmatpush1.bf16.msra.mxu0 0
        %2032 = vmatprep.subr.bf16.mxu0 0
        %2033 = vmatpush1.bf16.msra.mxu0 0
        %2034 = vmatprep.subr.bf16.mxu0 0
        %2035 = vmatpush1.bf16.msra.mxu0 0
        %2036 = vmatprep.subr.bf16.mxu0 0
        %2037 = vmatpush1.bf16.msra.mxu0 0
        %2038 = vmatprep.subr.bf16.mxu0 0
        %2039 = vmatpush1.bf16.msra.mxu0 0
        %2040 = vmatprep.subr.bf16.mxu0 0
        %2041 = vmatpush1.bf16.msra.mxu0 0
        %2042 = vmatprep.subr.bf16.mxu0 0
        %2043 = vmatpush1.bf16.msra.mxu0 0
        %2044 = vmatprep.subr.bf16.mxu0 0
        %2045 = vmatpush1.bf16.msra.mxu0 0
        %2046 = vmatprep.subr.bf16.mxu0 0
        %2047 = vmatpush1.bf16.msra.mxu0 0
        %2048 = vmatprep.subr.bf16.mxu0 0
        %2049 = vmatpush1.bf16.msra.mxu0 0
        %2050 = vmatprep.subr.bf16.mxu0 0
        %2051 = vmatpush1.bf16.msra.mxu0 0
        %2052 = vmatprep.subr.bf16.mxu0 0
        %2053 = vmatpush1.bf16.msra.mxu0 0
        %2054 = vmatprep.subr.bf16.mxu0 0
        %2055 = vmatpush1.bf16.msra.mxu0 0
        %2056 = vmatprep.subr.bf16.mxu0 0
        %2057 = vmatpush1.bf16.msra.mxu0 0
        %2058 = vmatprep.subr.bf16.mxu0 0
        %2059 = vmatpush1.bf16.msra.mxu0 0
        %2060 = vmatprep.mubr.bf16.mxu0 0
        %2061 = vmatmul.mubr.bf16.gmra.mrb[0].mxu0 %v2026
        %v2062 = vpop.f32.mrb[0].mxu0
        %v2063 = vadd.f32 0.0, %v2062
        %v2064 = vpop.f32.mrb[0].mxu0
        %v2065 = vpop.f32.mrb[0].mxu0
        %v2066 = vpop.f32.mrb[0].mxu0
        %2067 = vdwg.mxu0
        %v2068 = vld [vmem:[%s12] sm:$0xff]
        %v2069 = vld [vmem:[%s12 + $0x8] sm:$0xff]
        %v2070 = vld [vmem:[%s12 + $0x10] sm:$0xff]
        %v2071 = vld [vmem:[%s12 + $0x18] sm:$0xff]
        %v2072 = vld [vmem:[%s12 + $0x20] sm:$0xff]
        %v2073 = vld [vmem:[%s12 + $0x28] sm:$0xff]
        %v2074 = vld [vmem:[%s12 + $0x30] sm:$0xff]
        %v2075 = vld [vmem:[%s12 + $0x38] sm:$0xff]
        %v2076 = vld [vmem:[%s12 + $0x40] sm:$0xff]
        %v2077 = vld [vmem:[%s12 + $0x48] sm:$0xff]
        %v2078 = vld [vmem:[%s12 + $0x50] sm:$0xff]
        %v2079 = vld [vmem:[%s12 + $0x58] sm:$0xff]
        %v2080 = vld [vmem:[%s12 + $0x60] sm:$0xff]
        %v2081 = vld [vmem:[%s12 + $0x68] sm:$0xff]
        %v2082 = vld [vmem:[%s12 + $0x70] sm:$0xff]
        %v2083 = vld [vmem:[%s12 + $0x78] sm:$0xff]
        %v2084 = vld [vmem:[%s12 + $0x80] sm:$0xff]
        %v2085 = vld [vmem:[%s12 + $0x88] sm:$0xff]
        %v2086 = vld [vmem:[%s12 + $0x90] sm:$0xff]
        %v2087 = vld [vmem:[%s12 + $0x98] sm:$0xff]
        %v2088 = vld [vmem:[%s12 + $0xa0] sm:$0xff]
        %v2089 = vld [vmem:[%s12 + $0xa8] sm:$0xff]
        %v2090 = vld [vmem:[%s12 + $0xb0] sm:$0xff]
        %v2091 = vld [vmem:[%s12 + $0xb8] sm:$0xff]
        %v2092 = vld [vmem:[%s12 + $0xc0] sm:$0xff]
        %v2093 = vld [vmem:[%s12 + $0xc8] sm:$0xff]
        %v2094 = vld [vmem:[%s12 + $0xd0] sm:$0xff]
        %v2095 = vld [vmem:[%s12 + $0xd8] sm:$0xff]
        %v2096 = vld [vmem:[%s12 + $0xe0] sm:$0xff]
        %v2097 = vld [vmem:[%s12 + $0xe8] sm:$0xff]
        %v2098 = vld [vmem:[%s12 + $0xf0] sm:$0xff]
        %v2099 = vld [vmem:[%s12 + $0xf8] sm:$0xff]
        %v2101 = vrot.slane %v2063, 1
        %vm2102 = vcmask 523264
        %v2103 = vsel %vm2102, %v2101, 0
        %2105 = vmatprep.subr.mxu0 %v2085
        %2106 = vmatpush1.msra.mxu0 %v2084
        %2107 = vmatprep.subr.mxu0 %v2087
        %2108 = vmatpush1.msra.mxu0 %v2086
        %2109 = vmatprep.subr.mxu0 %v2089
        %2110 = vmatpush1.msra.mxu0 %v2088
        %2111 = vmatprep.subr.mxu0 %v2091
        %2112 = vmatpush1.msra.mxu0 %v2090
        %2113 = vmatprep.subr.mxu0 %v2093
        %2114 = vmatpush1.msra.mxu0 %v2092
        %2115 = vmatprep.subr.mxu0 %v2095
        %2116 = vmatpush1.msra.mxu0 %v2094
        %2117 = vmatprep.subr.mxu0 %v2097
        %2118 = vmatpush1.msra.mxu0 %v2096
        %2119 = vmatprep.subr.mxu0 %v2099
        %2120 = vmatpush1.msra.mxu0 %v2098
        %2121 = vmatprep.subr.mxu0 0.0
        %2122 = vmatpush1.msra.mxu0 0.0
        %2123 = vmatprep.subr.mxu0 0.0
        %2124 = vmatpush1.msra.mxu0 0.0
        %2125 = vmatprep.subr.mxu0 0.0
        %2126 = vmatpush1.msra.mxu0 0.0
        %2127 = vmatprep.subr.mxu0 0.0
        %2128 = vmatpush1.msra.mxu0 0.0
        %2129 = vmatprep.subr.mxu0 0.0
        %2130 = vmatpush1.msra.mxu0 0.0
        %2131 = vmatprep.subr.mxu0 0.0
        %2132 = vmatpush1.msra.mxu0 0.0
        %2133 = vmatprep.subr.mxu0 0.0
        %2134 = vmatpush1.msra.mxu0 0.0
        %2135 = vmatprep.subr.mxu0 0.0
        %2136 = vmatpush1.msra.mxu0 0.0
        %2137 = vmatprep.subr.mxu0 0.0
        %2138 = vmatpush1.msra.mxu0 0.0
        %2139 = vmatprep.subr.mxu0 0.0
        %2140 = vmatpush1.msra.mxu0 0.0
        %2141 = vmatprep.subr.mxu0 0.0
        %2142 = vmatpush1.msra.mxu0 0.0
        %2143 = vmatprep.subr.mxu0 0.0
        %2144 = vmatpush1.msra.mxu0 0.0
        %2145 = vmatprep.subr.mxu0 0.0
        %2146 = vmatpush1.msra.mxu0 0.0
        %2147 = vmatprep.subr.mxu0 0.0
        %2148 = vmatpush1.msra.mxu0 0.0
        %2149 = vmatprep.subr.mxu0 0.0
        %2150 = vmatpush1.msra.mxu0 0.0
        %2151 = vmatprep.subr.mxu0 0.0
        %2152 = vmatpush1.msra.mxu0 0.0
        %2153 = vmatprep.subr.mxu0 0.0
        %2154 = vmatpush1.msra.mxu0 0.0
        %2155 = vmatprep.subr.mxu0 0.0
        %2156 = vmatpush1.msra.mxu0 0.0
        %2157 = vmatprep.subr.mxu0 0.0
        %2158 = vmatpush1.msra.mxu0 0.0
        %2159 = vmatprep.subr.mxu0 0.0
        %2160 = vmatpush1.msra.mxu0 0.0
        %2161 = vmatprep.subr.mxu0 0.0
        %2162 = vmatpush1.msra.mxu0 0.0
        %2163 = vmatprep.subr.mxu0 0.0
        %2164 = vmatpush1.msra.mxu0 0.0
        %2165 = vmatprep.subr.mxu0 0.0
        %2166 = vmatpush1.msra.mxu0 0.0
        %2167 = vmatprep.subr.mxu0 0.0
        %2168 = vmatpush1.msra.mxu0 0.0
        %2169 = vmatprep.mubr.f32.mxu0 0.0
        %2170 = vmatmul.mubr.f32.gmra.mrb[0].mxu0 %v2103
        %v2171 = vpop.f32.mrb[0].mxu0
        %v2172 = vadd.f32 0.0, %v2171
        %v2173 = vpop.f32.mrb[0].mxu0
        %v2174 = vadd.f32 0.0, %v2173
        %2175 = vdwg.mxu0
        %v2176 = vsel %vm2102, %v2063, 0
        %2178 = vmatprep.subr.mxu0 %v2069
        %2179 = vmatpush1.msra.mxu0 %v2068
        %2180 = vmatprep.subr.mxu0 %v2071
        %2181 = vmatpush1.msra.mxu0 %v2070
        %2182 = vmatprep.subr.mxu0 %v2073
        %2183 = vmatpush1.msra.mxu0 %v2072
        %2184 = vmatprep.subr.mxu0 %v2075
        %2185 = vmatpush1.msra.mxu0 %v2074
        %2186 = vmatprep.subr.mxu0 %v2077
        %2187 = vmatpush1.msra.mxu0 %v2076
        %2188 = vmatprep.subr.mxu0 %v2079
        %2189 = vmatpush1.msra.mxu0 %v2078
        %2190 = vmatprep.subr.mxu0 %v2081
        %2191 = vmatpush1.msra.mxu0 %v2080
        %2192 = vmatprep.subr.mxu0 %v2083
        %2193 = vmatpush1.msra.mxu0 %v2082
        %2194 = vmatprep.subr.mxu0 0.0
        %2195 = vmatpush1.msra.mxu0 0.0
        %2196 = vmatprep.subr.mxu0 0.0
        %2197 = vmatpush1.msra.mxu0 0.0
        %2198 = vmatprep.subr.mxu0 0.0
        %2199 = vmatpush1.msra.mxu0 0.0
        %2200 = vmatprep.subr.mxu0 0.0
        %2201 = vmatpush1.msra.mxu0 0.0
        %2202 = vmatprep.subr.mxu0 0.0
        %2203 = vmatpush1.msra.mxu0 0.0
        %2204 = vmatprep.subr.mxu0 0.0
        %2205 = vmatpush1.msra.mxu0 0.0
        %2206 = vmatprep.subr.mxu0 0.0
        %2207 = vmatpush1.msra.mxu0 0.0
        %2208 = vmatprep.subr.mxu0 0.0
        %2209 = vmatpush1.msra.mxu0 0.0
        %2210 = vmatprep.subr.mxu0 0.0
        %2211 = vmatpush1.msra.mxu0 0.0
        %2212 = vmatprep.subr.mxu0 0.0
        %2213 = vmatpush1.msra.mxu0 0.0
        %2214 = vmatprep.subr.mxu0 0.0
        %2215 = vmatpush1.msra.mxu0 0.0
        %2216 = vmatprep.subr.mxu0 0.0
        %2217 = vmatpush1.msra.mxu0 0.0
        %2218 = vmatprep.subr.mxu0 0.0
        %2219 = vmatpush1.msra.mxu0 0.0
        %2220 = vmatprep.subr.mxu0 0.0
        %2221 = vmatpush1.msra.mxu0 0.0
        %2222 = vmatprep.subr.mxu0 0.0
        %2223 = vmatpush1.msra.mxu0 0.0
        %2224 = vmatprep.subr.mxu0 0.0
        %2225 = vmatpush1.msra.mxu0 0.0
        %2226 = vmatprep.subr.mxu0 0.0
        %2227 = vmatpush1.msra.mxu0 0.0
        %2228 = vmatprep.subr.mxu0 0.0
        %2229 = vmatpush1.msra.mxu0 0.0
        %2230 = vmatprep.subr.mxu0 0.0
        %2231 = vmatpush1.msra.mxu0 0.0
        %2232 = vmatprep.subr.mxu0 0.0
        %2233 = vmatpush1.msra.mxu0 0.0
        %2234 = vmatprep.subr.mxu0 0.0
        %2235 = vmatpush1.msra.mxu0 0.0
        %2236 = vmatprep.subr.mxu0 0.0
        %2237 = vmatpush1.msra.mxu0 0.0
        %2238 = vmatprep.subr.mxu0 0.0
        %2239 = vmatpush1.msra.mxu0 0.0
        %2240 = vmatprep.subr.mxu0 0.0
        %2241 = vmatpush1.msra.mxu0 0.0
        %2242 = vmatprep.mubr.f32.mxu0 0.0
        %2243 = vmatmul.mubr.f32.gmra.mrb[0].mxu0 %v2176
        %v2244 = vpop.f32.mrb[0].mxu0
        %v2245 = vadd.f32 %v2172, %v2244
        %v2246 = vpop.f32.mrb[0].mxu0
        %v2247 = vadd.f32 %v2174, %v2246
        %2248 = vdwg.mxu0
        %v2249 = vld [vmem:[%s12 + $0x100] sm:$0xff]
        %v2250 = vld [vmem:[%s12 + $0x108] sm:$0xff]
        %v2251 = vld [vmem:[%s12 + $0x110] sm:$0xff]
        %v2252 = vld [vmem:[%s12 + $0x118] sm:$0xff]
        %v2253 = vld [vmem:[%s12 + $0x120] sm:$0xff]
        %v2254 = vld [vmem:[%s12 + $0x128] sm:$0xff]
        %v2255 = vld [vmem:[%s12 + $0x130] sm:$0xff]
        %v2256 = vld [vmem:[%s12 + $0x138] sm:$0xff]
        %v2257 = vld [vmem:[%s12 + $0x140] sm:$0xff]
        %v2258 = vld [vmem:[%s12 + $0x148] sm:$0xff]
        %v2259 = vld [vmem:[%s12 + $0x150] sm:$0xff]
        %v2260 = vld [vmem:[%s12 + $0x158] sm:$0xff]
        %v2261 = vld [vmem:[%s12 + $0x160] sm:$0xff]
        %v2262 = vld [vmem:[%s12 + $0x168] sm:$0xff]
        %v2263 = vld [vmem:[%s12 + $0x170] sm:$0xff]
        %v2264 = vld [vmem:[%s12 + $0x178] sm:$0xff]
        %v2265 = vrot.slane %v2063, 2
        %v2266 = vsel %vm2102, %v2265, 0
        %2268 = vmatprep.subr.mxu0 %v2250
        %2269 = vmatpush1.msra.mxu0 %v2249
        %2270 = vmatprep.subr.mxu0 %v2252
        %2271 = vmatpush1.msra.mxu0 %v2251
        %2272 = vmatprep.subr.mxu0 %v2254
        %2273 = vmatpush1.msra.mxu0 %v2253
        %2274 = vmatprep.subr.mxu0 %v2256
        %2275 = vmatpush1.msra.mxu0 %v2255
        %2276 = vmatprep.subr.mxu0 %v2258
        %2277 = vmatpush1.msra.mxu0 %v2257
        %2278 = vmatprep.subr.mxu0 %v2260
        %2279 = vmatpush1.msra.mxu0 %v2259
        %2280 = vmatprep.subr.mxu0 %v2262
        %2281 = vmatpush1.msra.mxu0 %v2261
        %2282 = vmatprep.subr.mxu0 %v2264
        %2283 = vmatpush1.msra.mxu0 %v2263
        %2284 = vmatprep.subr.mxu0 0.0
        %2285 = vmatpush1.msra.mxu0 0.0
        %2286 = vmatprep.subr.mxu0 0.0
        %2287 = vmatpush1.msra.mxu0 0.0
        %2288 = vmatprep.subr.mxu0 0.0
        %2289 = vmatpush1.msra.mxu0 0.0
        %2290 = vmatprep.subr.mxu0 0.0
        %2291 = vmatpush1.msra.mxu0 0.0
        %2292 = vmatprep.subr.mxu0 0.0
        %2293 = vmatpush1.msra.mxu0 0.0
        %2294 = vmatprep.subr.mxu0 0.0
        %2295 = vmatpush1.msra.mxu0 0.0
        %2296 = vmatprep.subr.mxu0 0.0
        %2297 = vmatpush1.msra.mxu0 0.0
        %2298 = vmatprep.subr.mxu0 0.0
        %2299 = vmatpush1.msra.mxu0 0.0
        %2300 = vmatprep.subr.mxu0 0.0
        %2301 = vmatpush1.msra.mxu0 0.0
        %2302 = vmatprep.subr.mxu0 0.0
        %2303 = vmatpush1.msra.mxu0 0.0
        %2304 = vmatprep.subr.mxu0 0.0
        %2305 = vmatpush1.msra.mxu0 0.0
        %2306 = vmatprep.subr.mxu0 0.0
        %2307 = vmatpush1.msra.mxu0 0.0
        %2308 = vmatprep.subr.mxu0 0.0
        %2309 = vmatpush1.msra.mxu0 0.0
        %2310 = vmatprep.subr.mxu0 0.0
        %2311 = vmatpush1.msra.mxu0 0.0
        %2312 = vmatprep.subr.mxu0 0.0
        %2313 = vmatpush1.msra.mxu0 0.0
        %2314 = vmatprep.subr.mxu0 0.0
        %2315 = vmatpush1.msra.mxu0 0.0
        %2316 = vmatprep.subr.mxu0 0.0
        %2317 = vmatpush1.msra.mxu0 0.0
        %2318 = vmatprep.subr.mxu0 0.0
        %2319 = vmatpush1.msra.mxu0 0.0
        %2320 = vmatprep.subr.mxu0 0.0
        %2321 = vmatpush1.msra.mxu0 0.0
        %2322 = vmatprep.subr.mxu0 0.0
        %2323 = vmatpush1.msra.mxu0 0.0
        %2324 = vmatprep.subr.mxu0 0.0
        %2325 = vmatpush1.msra.mxu0 0.0
        %2326 = vmatprep.subr.mxu0 0.0
        %2327 = vmatpush1.msra.mxu0 0.0
        %2328 = vmatprep.subr.mxu0 0.0
        %2329 = vmatpush1.msra.mxu0 0.0
        %2330 = vmatprep.subr.mxu0 0.0
        %2331 = vmatpush1.msra.mxu0 0.0
        %2332 = vmatprep.mubr.f32.mxu0 0.0
        %2333 = vmatmul.mubr.f32.gmra.mrb[0].mxu0 %v2266
        %v2334 = vpop.f32.mrb[0].mxu0
        %v2335 = vadd.f32 0.0, %v2334
        %v2336 = vpop.f32.mrb[0].mxu0
        %v2337 = vadd.f32 0.0, %v2336
        %2338 = vdwg.mxu0
        %v2339 = vadd.f32 %v2245, %v2335
        %v2340 = vadd.f32 %v2247, %v2337
        %v2341 = vld [vmem:[%s12 + $0x180] sm:$0xff]
        %v2342 = vld [vmem:[%s12 + $0x188] sm:$0xff]
        %v2343 = vld [vmem:[%s12 + $0x190] sm:$0xff]
        %v2344 = vld [vmem:[%s12 + $0x198] sm:$0xff]
        %v2345 = vld [vmem:[%s12 + $0x1a0] sm:$0xff]
        %v2346 = vld [vmem:[%s12 + $0x1a8] sm:$0xff]
        %v2347 = vld [vmem:[%s12 + $0x1b0] sm:$0xff]
        %v2348 = vld [vmem:[%s12 + $0x1b8] sm:$0xff]
        %v2349 = vld [vmem:[%s12 + $0x1c0] sm:$0xff]
        %v2350 = vld [vmem:[%s12 + $0x1c8] sm:$0xff]
        %v2351 = vld [vmem:[%s12 + $0x1d0] sm:$0xff]
        %v2352 = vld [vmem:[%s12 + $0x1d8] sm:$0xff]
        %v2353 = vld [vmem:[%s12 + $0x1e0] sm:$0xff]
        %v2354 = vld [vmem:[%s12 + $0x1e8] sm:$0xff]
        %v2355 = vld [vmem:[%s12 + $0x1f0] sm:$0xff]
        %v2356 = vld [vmem:[%s12 + $0x1f8] sm:$0xff]
        %v2357 = vrot.slane %v2063, 3
        %v2358 = vsel %vm2102, %v2357, 0
        %2360 = vmatprep.subr.mxu0 %v2342
        %2361 = vmatpush1.msra.mxu0 %v2341
        %2362 = vmatprep.subr.mxu0 %v2344
        %2363 = vmatpush1.msra.mxu0 %v2343
        %2364 = vmatprep.subr.mxu0 %v2346
        %2365 = vmatpush1.msra.mxu0 %v2345
        %2366 = vmatprep.subr.mxu0 %v2348
        %2367 = vmatpush1.msra.mxu0 %v2347
        %2368 = vmatprep.subr.mxu0 %v2350
        %2369 = vmatpush1.msra.mxu0 %v2349
        %2370 = vmatprep.subr.mxu0 %v2352
        %2371 = vmatpush1.msra.mxu0 %v2351
        %2372 = vmatprep.subr.mxu0 %v2354
        %2373 = vmatpush1.msra.mxu0 %v2353
        %2374 = vmatprep.subr.mxu0 %v2356
        %2375 = vmatpush1.msra.mxu0 %v2355
        %2376 = vmatprep.subr.mxu0 0.0
        %2377 = vmatpush1.msra.mxu0 0.0
        %2378 = vmatprep.subr.mxu0 0.0
        %2379 = vmatpush1.msra.mxu0 0.0
        %2380 = vmatprep.subr.mxu0 0.0
        %2381 = vmatpush1.msra.mxu0 0.0
        %2382 = vmatprep.subr.mxu0 0.0
        %2383 = vmatpush1.msra.mxu0 0.0
        %2384 = vmatprep.subr.mxu0 0.0
        %2385 = vmatpush1.msra.mxu0 0.0
        %2386 = vmatprep.subr.mxu0 0.0
        %2387 = vmatpush1.msra.mxu0 0.0
        %2388 = vmatprep.subr.mxu0 0.0
        %2389 = vmatpush1.msra.mxu0 0.0
        %2390 = vmatprep.subr.mxu0 0.0
        %2391 = vmatpush1.msra.mxu0 0.0
        %2392 = vmatprep.subr.mxu0 0.0
        %2393 = vmatpush1.msra.mxu0 0.0
        %2394 = vmatprep.subr.mxu0 0.0
        %2395 = vmatpush1.msra.mxu0 0.0
        %2396 = vmatprep.subr.mxu0 0.0
        %2397 = vmatpush1.msra.mxu0 0.0
        %2398 = vmatprep.subr.mxu0 0.0
        %2399 = vmatpush1.msra.mxu0 0.0
        %2400 = vmatprep.subr.mxu0 0.0
        %2401 = vmatpush1.msra.mxu0 0.0
        %2402 = vmatprep.subr.mxu0 0.0
        %2403 = vmatpush1.msra.mxu0 0.0
        %2404 = vmatprep.subr.mxu0 0.0
        %2405 = vmatpush1.msra.mxu0 0.0
        %2406 = vmatprep.subr.mxu0 0.0
        %2407 = vmatpush1.msra.mxu0 0.0
        %2408 = vmatprep.subr.mxu0 0.0
        %2409 = vmatpush1.msra.mxu0 0.0
        %2410 = vmatprep.subr.mxu0 0.0
        %2411 = vmatpush1.msra.mxu0 0.0
        %2412 = vmatprep.subr.mxu0 0.0
        %2413 = vmatpush1.msra.mxu0 0.0
        %2414 = vmatprep.subr.mxu0 0.0
        %2415 = vmatpush1.msra.mxu0 0.0
        %2416 = vmatprep.subr.mxu0 0.0
        %2417 = vmatpush1.msra.mxu0 0.0
        %2418 = vmatprep.subr.mxu0 0.0
        %2419 = vmatpush1.msra.mxu0 0.0
        %2420 = vmatprep.subr.mxu0 0.0
        %2421 = vmatpush1.msra.mxu0 0.0
        %2422 = vmatprep.subr.mxu0 0.0
        %2423 = vmatpush1.msra.mxu0 0.0
        %2424 = vmatprep.mubr.f32.mxu0 0.0
        %2425 = vmatmul.mubr.f32.gmra.mrb[0].mxu0 %v2358
        %v2426 = vpop.f32.mrb[0].mxu0
        %v2427 = vadd.f32 0.0, %v2426
        %v2428 = vpop.f32.mrb[0].mxu0
        %v2429 = vadd.f32 0.0, %v2428
        %2430 = vdwg.mxu0
        %v2431 = vadd.f32 %v2339, %v2427
        %v2432 = vadd.f32 %v2340, %v2429
        %v2433 = vld [vmem:[#allocation3] sm:$0x1]
        %2435 = vset.pattern.permute.xlu0 0
        %2436 = vperm.xlu0 %2435, %v2433
        %v2437 = vpop.permute.xlu0 %2436
        %v2439 = vlaneseq
        %v2440 = vshrl.u32 %v2439, 7
        %v2441 = vsub.s32 0, %v2440
        %v2442 = vrot.slane %v2437, %v2441
        %v2443 = vadd.f32 %v2431, %v2442
        %v2444 = vadd.f32 %v2432, %v2442
        %v2445 = vxor.u32 %v2443, 2147483648
        %v2446 = vxor.u32 %v2444, 2147483648
        %v2447 = vmul.f32 %v2445, 1.442695
        %v2448 = vpow.pop %v2447
        %v2449 = vmul.f32 %v2446, 1.442695
        %v2450 = vpow.pop %v2449
        %v2451 = vadd.f32 %v2448, 1.0
        %v2452 = vadd.f32 %v2450, 1.0
        %v2453 = vrcp.pop %v2451
        %v2454 = vmul.f32 1.0, %v2453
        %v2455 = vrcp.pop %v2452
        %v2456 = vmul.f32 1.0, %v2455
        %v2459 = vcombine.low %v2454, %v2456
        %v2461 = vunpack.c.l.s4 1966171168
        %v2462 = vunpack.c.0.s8 %v2461
        %v2463 = vlaneseq
        %v2464 = vshrl.u32 %v2463, 7
        %v2465 = vsub.s32 %v2462, %v2464
        %v2466 = vrot.slane %v2459, %v2465
        %v2468 = vunpack.c.l.s4 1966171168
        %v2469 = vunpack.c.0.s8 %v2468
        %v2470 = vlaneseq
        %v2471 = vshrl.u32 %v2470, 7
        %v2472 = vsub.s32 %v2469, %v2471
        %v2473 = vrot.slane %v2466, %v2472
        %v2475 = vlaneseq
        %vm2476 = vcmp.ge.s32.totalorder %v2475, 0
        %vm2477 = vcmp.lt.s32.totalorder %v2475, 256
        %vm2478 = vmand %vm2476, %vm2477
        %2479 = vst.msk [vmem:[%s452] sm:$0x3] %vm2478, %v2473
        %p2480 = scmp.lt.s32.totalorder %s27, 1
        %s2481 = scalar_select %p2480, %s27, 1
        %s2482 = smul.addr %s2481, 2
        %s2483 = scalar_lea.vmem %s13, %s2482
        // Predicated region
        $region77: #{conv_autoencoder_forward.1} parent=71 // pred_check
          %p2484 = pneg %p323
        $region78: #{conv_autoencoder_forward.1} parent=71 // pred_check_branch
          %2486 = sbr.rel (%p2484) target = $region80
        $region79: #{conv_autoencoder_forward.1} parent=71 // pred_region
          _
        $region80: #{conv_autoencoder_forward.1} parent=71 // pred_fallthru
          _
      $region72: #{conv_autoencoder_forward.1} parent=5 // pred_fallthru
        _
      %p2487 = scmp.le.s32.totalorder 2, %s22
      // Predicated region
      $region81: #{conv_autoencoder_forward.1} parent=5 // pred_check
        %p2488 = pneg %p2487
      $region82: #{conv_autoencoder_forward.1} parent=5 // pred_check_branch
        %2490 = sbr.rel (%p2488) target = $region84
      $region83: #{conv_autoencoder_forward.1} parent=5 // pred_region
        %s2491 = ssub.s32 %s22, 2
        // Predicated region
        $region85: #{conv_autoencoder_forward.1} parent=83 // pred_check
          %p2492 = pneg %p329
        $region86: #{conv_autoencoder_forward.1} parent=83 // pred_check_branch
          %2494 = sbr.rel (%p2492) target = $region88
        $region87: #{conv_autoencoder_forward.1} parent=83 // pred_region
          %p2495 = scmp.lt.s32.totalorder %s28, 1
          %s2496 = scalar_select %p2495, %s28, 1
          %s2497 = smul.addr %s2496, 2
          %s2498 = scalar_lea.vmem %s13, %s2497
        $region88: #{conv_autoencoder_forward.1} parent=83 // pred_fallthru
          _
      $region84: #{conv_autoencoder_forward.1} parent=5 // pred_fallthru
        _
    $region6: #{conv_autoencoder_forward.1} parent=1 // loop_footer
      %s26 = sadd.s32 1, %s22
    $region7: #{conv_autoencoder_forward.1} parent=1 // loop_footer_branch
      %21 = sbr.rel target = $region3
    $region8: #{conv_autoencoder_forward.1} parent=1 // loop_exit
      _
    %2499 = vsyncpa [#allocation5], 1
    %s2500 = scalar_lea.sflag [#allocation5], 1
    %2501 = vsyncpa %s2500, 1

</llo_original>
